<compile_context>
chip_gen: v5e
topology: v5e:2x2
jax: 0.10.0
libtpu: 0.0.40
codegen_flags: <defaults>
</compile_context>

<pallas_src>
from functools import partial

import numpy as np
import jax
import jax.numpy as jnp
from jax.experimental import pallas as pl
from jax.experimental.pallas import tpu as pltpu  # noqa: F401  (TPU backend)

# ----------------------------- configuration -------------------------------
IMAGE_SIZE = (16, 16)
PATCH_SIZE = (4, 4)
N_CHANNELS = 4
N_HEADS = 4
MLP_HIDDEN = 128
N_ENC_BLOCKS = 2
N_DEC_BLOCKS = 2
MASK_FRACTION = 0.3
SEED = 42

N_PATCHES = (IMAGE_SIZE[0] // PATCH_SIZE[0]) * (IMAGE_SIZE[1] // PATCH_SIZE[1])   # 16
N_FEATURES = N_CHANNELS * PATCH_SIZE[0] * PATCH_SIZE[1]                            # 64
PRED_DIM = int(np.prod(PATCH_SIZE)) * N_CHANNELS                                    # 64

MXU_DTYPE = jnp.bfloat16   # matmul operand dtype (f32 accumulation); elementwise stays f32


def _round_up(x, m):
    return ((x + m - 1) // m) * m


# --------------------------- in-kernel math helpers -------------------------
def _gelu_tanh(x):
    # tanh-approx GELU (EUP tanh instead of a VALU erf polynomial).
    c = 0.7978845608028654  # sqrt(2/pi)
    return 0.5 * x * (1.0 + jnp.tanh(c * (x + 0.044715 * x * x * x)))


def _layernorm(x, g, b):
    mu = jnp.mean(x, axis=-1, keepdims=True)
    var = jnp.mean(jnp.square(x - mu), axis=-1, keepdims=True)   # biased var (torch LN)
    return (x - mu) * jax.lax.rsqrt(var + 1e-5) * g + b


# ------------------------------ fused Pallas kernel ------------------------------
def _mae_stack_kernel(x_ref, bias_ref, ew_ref, eb_ref,
                      ln1g_ref, ln1b_ref, wqkv_ref, bqkv_ref, wo_ref, bo_ref,
                      ln2g_ref, ln2b_ref, w1_ref, b1_ref, w2_ref, b2_ref,
                      o_ref, *, n_blocks, n_heads, extra_pos):
    """[optional in-proj] + n_blocks pre-norm transformer blocks + [optional out-proj].

    x_ref:    [M, D] f32, M = B * Lp (Lp 8-aligned; pad tokens neutralized via bias_ref)
    bias_ref: [M, M] f32 precomputed additive attention bias
              (block-diagonal same-sample mask + pad-key mask)
    wqkv:     [n_blocks, D, 3D] bf16 with layout [Q | K | V], heads contiguous dh-column
              slabs; the 1/sqrt(dh) attention scale is pre-folded into the Q columns.
    ew/eb:    extra linear (patch projection when extra_pos=='pre',
              decoder_pred when extra_pos=='post').
    """
    x = x_ref[...]                                  # [M, D] f32
    bias = bias_ref[...]                            # [M, M] f32
    d = x.shape[-1]
    dh = d // n_heads

    def mm(a, w):                                   # bf16 MXU matmul, f32 accumulate
        return jnp.dot(a.astype(MXU_DTYPE), w, preferred_element_type=jnp.float32)

    if extra_pos == "pre":                          # fused patch projection (encoder)
        x = mm(x, ew_ref[...]) + eb_ref[...]

    for blk in range(n_blocks):                     # static unroll; weights resident in VMEM
        # ---- LN1 + multi-head self-attention + residual ----
        h = _layernorm(x, ln1g_ref[blk], ln1b_ref[blk])
        qkv = mm(h, wqkv_ref[blk]) + bqkv_ref[blk]          # ONE [M,64]@[64,192] matmul
        heads = []
        for hh in range(n_heads):                           # static unroll over heads
            q = qkv[:, hh * dh:(hh + 1) * dh].astype(MXU_DTYPE)
            k = qkv[:, d + hh * dh:d + (hh + 1) * dh].astype(MXU_DTYPE)
            v = qkv[:, 2 * d + hh * dh:2 * d + (hh + 1) * dh].astype(MXU_DTYPE)
            # single [M,dh]@[dh,M] matmul over all samples; cross-sample / pad keys
            # are masked out by the precomputed additive bias.
            s = jax.lax.dot_general(q, k, (((1,), (1,)), ((), ())),
                                    preferred_element_type=jnp.float32) + bias
            s = s - jnp.max(s, axis=-1, keepdims=True)
            p = jnp.exp(s)
            p = p * pl.reciprocal(jnp.sum(p, axis=-1, keepdims=True), approx=True)
            heads.append(jnp.dot(p.astype(MXU_DTYPE), v,
                                 preferred_element_type=jnp.float32))
        attn = jnp.concatenate(heads, axis=-1)               # [M, D] concat over heads
        x = x + mm(attn, wo_ref[blk]) + bo_ref[blk]          # single out-projection

        # ---- LN2 + MLP (tanh-GELU) + residual ----
        h = _layernorm(x, ln2g_ref[blk], ln2b_ref[blk])
        h = mm(h, w1_ref[blk]) + b1_ref[blk]
        h = _gelu_tanh(h)
        h = mm(h, w2_ref[blk]) + b2_ref[blk]
        x = x + h

    if extra_pos == "post":                         # fused decoder_pred (decoder)
        x = mm(x, ew_ref[...]) + eb_ref[...]

    o_ref[...] = x


def transformer_stack_pallas(x2, attn_bias, extra_w, extra_b, blocks, *, extra_pos):
    """One ungridded pallas_call for a whole (proj +) block-stack (+ pred)."""
    m, d = x2.shape
    n_blocks = int(blocks["wqkv"].shape[0])
    out_dim = int(extra_w.shape[1]) if extra_pos == "post" else d
    kernel = partial(_mae_stack_kernel, n_blocks=n_blocks, n_heads=N_HEADS,
                     extra_pos=extra_pos)
    return pl.pallas_call(
        kernel,
        out_shape=jax.ShapeDtypeStruct((m, out_dim), jnp.float32),
        input_output_aliases=({0: 0} if out_dim == d else {}),
    )(x2, attn_bias, extra_w, extra_b,
      blocks["ln1_g"], blocks["ln1_b"], blocks["wqkv"], blocks["bqkv"],
      blocks["wo"], blocks["bo"], blocks["ln2_g"], blocks["ln2_b"],
      blocks["w1"], blocks["b1"], blocks["w2"], blocks["b2"])


# ------------------------------ model components ------------------------------
def patchify(x):
    # NCHW -> [B, n_patches, C*ph*pw]  (LinearEmbedding 'linear' token layout)
    B, C, H, W = x.shape
    ph, pw = PATCH_SIZE
    x = x.reshape(B, C, H // ph, ph, W // pw, pw)
    x = x.transpose(0, 2, 4, 1, 3, 5)            # B, gh, gw, C, ph, pw
    return x.reshape(B, (H // ph) * (W // pw), C * ph * pw)


def random_masking(x, mask_ratio, key):
    """Device-side per-sample random masking (jax.random, stays in the jitted graph)."""
    n, l, d = x.shape
    len_keep = int(l * (1 - mask_ratio))
    noise = jax.random.uniform(key, (n, l))
    ids_shuffle = jnp.argsort(noise, axis=1)
    ids_restore = jnp.argsort(ids_shuffle, axis=1)
    ids_keep = ids_shuffle[:, :len_keep]
    x_masked = jnp.take_along_axis(
        x, jnp.broadcast_to(ids_keep[:, :, None], (n, len_keep, d)), axis=1)
    # NOTE: the binary `mask` output of the reference is never consumed by the MAE
    # forward pass, so it is not materialized (dead work removed).
    return x_masked, ids_restore


def _make_attn_bias(batch, lp, l_valid):
    """Compile-time additive attention bias [B*Lp, B*Lp]:
    0 where key is in the same sample AND a valid (non-pad) token, -1e30 otherwise."""
    m = batch * lp
    r = np.arange(m)
    same = (r[:, None] // lp) == (r[None, :] // lp)
    valid = (r[None, :] % lp) < l_valid
    return jnp.asarray(np.where(same & valid, 0.0, -1e30).astype(np.float32))


@jax.jit
def vit_mae_forward(params, X, mask_key):
    B = X.shape[0]
    D = N_FEATURES

    # patchify only; the projection Linear is fused into the encoder kernel
    # (per-token linear commutes with the token gather, dropout=0 -> exact).
    patches = patchify(X)                                               # [B, 16, D]

    # per-sample random masking on the raw patch tokens
    x_keep, ids_restore = random_masking(patches, MASK_FRACTION, mask_key)
    n_kept = x_keep.shape[1]
    lp_enc = _round_up(n_kept, 8)
    xe = jnp.pad(x_keep, ((0, 0), (0, lp_enc - n_kept), (0, 0))).reshape(B * lp_enc, D)

    # ---- encoder: patch-proj + N_ENC_BLOCKS blocks in ONE pallas_call
    # TODO(synk): `self.encode` is not defined in the provided source; assumed to be the
    #             encoder TransformerBlockStack applied to the kept tokens.
    bias_enc = _make_attn_bias(B, lp_enc, n_kept)
    henc = transformer_stack_pallas(xe, bias_enc, params["proj"]["w"], params["proj"]["b"],
                                    params["encoder"], extra_pos="pre")
    Xenc = henc.reshape(B, lp_enc, D)[:, :n_kept, :]

    # ---- MAE restore (mirrors the reference, including its cls-slot handling)
    # TODO(synk): the data-dependent token permutation (ids_restore gather) has no clean
    #             single-kernel Pallas expression at this scale; kept as fused XLA glue.
    n_mask = ids_restore.shape[1] + 1 - n_kept
    mask_tokens = jnp.broadcast_to(params["mask_token"], (B, n_mask, D))
    X_ = jnp.concatenate([Xenc[:, 1:, :], mask_tokens], axis=1)          # [B, L, D]
    X_ = jnp.take_along_axis(X_, jnp.broadcast_to(ids_restore[:, :, None], X_.shape), axis=1)
    Xdec = jnp.concatenate([Xenc[:, :1, :], X_], axis=1)                 # [B, L+1, D]
    Xdec = Xdec.at[:, 1:, :].add(params["pos_emb"])                      # X[:,1:,:] += pos
    n_dec = Xdec.shape[1]
    lp_dec = _round_up(n_dec, 8)
    xd = jnp.pad(Xdec, ((0, 0), (0, lp_dec - n_dec), (0, 0))).reshape(B * lp_dec, D)

    # ---- decoder: N_DEC_BLOCKS blocks + decoder_pred in ONE pallas_call
    bias_dec = _make_attn_bias(B, lp_dec, n_dec)
    Y = transformer_stack_pallas(xd, bias_dec, params["pred"]["w"], params["pred"]["b"],
                                 params["decoder"], extra_pos="post")
    return Y.reshape(B, lp_dec, PRED_DIM)[:, :n_dec, :]


# ------------------------------ parameter init ------------------------------
def _trunc_normal(key, shape, std=0.02):
    return std * jax.random.truncated_normal(key, -2.0, 2.0, shape, jnp.float32)


def _linear_params(key, din, dout):
    k1, k2 = jax.random.split(key)
    lim = 1.0 / np.sqrt(din)
    return {"w": jax.random.uniform(k1, (din, dout), jnp.float32, -lim, lim),
            "b": jax.random.uniform(k2, (1, dout), jnp.float32, -lim, lim)}


def _block_params(key, d, hidden, n_heads):
    kq, kk, kv, ko, k1, k2 = jax.random.split(key, 6)
    dh = d // n_heads
    scale = 1.0 / np.sqrt(dh)
    q, k_, v = (_linear_params(kq, d, d), _linear_params(kk, d, d), _linear_params(kv, d, d))
    o = _linear_params(ko, d, d)
    m1, m2 = _linear_params(k1, d, hidden), _linear_params(k2, hidden, d)
    return {
        "ln1_g": jnp.ones((1, d), jnp.float32), "ln1_b": jnp.zeros((1, d), jnp.float32),
        "ln2_g": jnp.ones((1, d), jnp.float32), "ln2_b": jnp.zeros((1, d), jnp.float32),
        # fused QKV [D, 3D]: columns [Q | K | V], heads in contiguous dh-column slabs,
        # attention 1/sqrt(dh) folded into the Q weights/bias.
        "wqkv": jnp.concatenate([q["w"] * scale, k_["w"], v["w"]], axis=1).astype(MXU_DTYPE),
        "bqkv": jnp.concatenate([q["b"] * scale, k_["b"], v["b"]], axis=1),
        "wo": o["w"].astype(MXU_DTYPE), "bo": o["b"],
        "w1": m1["w"].astype(MXU_DTYPE), "b1": m1["b"],
        "w2": m2["w"].astype(MXU_DTYPE), "b2": m2["b"],
    }


def _stacked_blocks(key, d, hidden, n_heads, n_blocks):
    per = [_block_params(k, d, hidden, n_heads) for k in jax.random.split(key, n_blocks)]
    return {name: jnp.stack([p[name] for p in per], axis=0) for name in per[0]}


def init_params(key):
    kp, kpos, kmask, kenc, kdec, kpred = jax.random.split(key, 6)
    proj = _linear_params(kp, N_FEATURES, N_FEATURES)
    pred = _linear_params(kpred, N_FEATURES, PRED_DIM)
    return {
        "proj": {"w": proj["w"].astype(MXU_DTYPE), "b": proj["b"]},
        "pred": {"w": pred["w"].astype(MXU_DTYPE), "b": pred["b"]},
        "pos_emb": _trunc_normal(kpos, (1, N_PATCHES, N_FEATURES)),
        "mask_token": _trunc_normal(kmask, (1, 1, N_FEATURES)),
        "encoder": _stacked_blocks(kenc, N_FEATURES, MLP_HIDDEN, N_HEADS, N_ENC_BLOCKS),
        "decoder": _stacked_blocks(kdec, N_FEATURES, MLP_HIDDEN, N_HEADS, N_DEC_BLOCKS),
    }


# ------------------------------------ main ------------------------------------
if __name__ == "__main__":
    x = jax.random.normal(jax.random.PRNGKey(0),
                          (2, N_CHANNELS, IMAGE_SIZE[0], IMAGE_SIZE[1]), jnp.float32)
    params = init_params(jax.random.PRNGKey(1))
    mask_key = jax.random.PRNGKey(SEED)

    out = jax.block_until_ready(vit_mae_forward(params, x, mask_key))

    expected_shape = (2, N_PATCHES + 1, PRED_DIM)   # [B, L+1, prod(patch)*C]
    assert out.shape == expected_shape, (out.shape, expected_shape)
    assert out.dtype == jnp.float32
    assert bool(jnp.all(jnp.isfinite(out)))
    print("KERNEL_OK")
</pallas_src>

<mosaic_0001>
module attributes {stable_mosaic.version = 11 : i64} {
  func.func @_mae_stack_kernel(%arg0: memref<32x64xf32, #tpu.memory_space<vmem>>, %arg1: memref<32x32xf32, #tpu.memory_space<vmem>>, %arg2: memref<64x64xbf16, #tpu.memory_space<vmem>>, %arg3: memref<1x64xf32, #tpu.memory_space<vmem>>, %arg4: memref<2x1x64xf32, #tpu.memory_space<vmem>>, %arg5: memref<2x1x64xf32, #tpu.memory_space<vmem>>, %arg6: memref<2x64x192xbf16, #tpu.memory_space<vmem>>, %arg7: memref<2x1x192xf32, #tpu.memory_space<vmem>>, %arg8: memref<2x64x64xbf16, #tpu.memory_space<vmem>>, %arg9: memref<2x1x64xf32, #tpu.memory_space<vmem>>, %arg10: memref<2x1x64xf32, #tpu.memory_space<vmem>>, %arg11: memref<2x1x64xf32, #tpu.memory_space<vmem>>, %arg12: memref<2x64x128xbf16, #tpu.memory_space<vmem>>, %arg13: memref<2x1x128xf32, #tpu.memory_space<vmem>>, %arg14: memref<2x128x64xbf16, #tpu.memory_space<vmem>>, %arg15: memref<2x1x64xf32, #tpu.memory_space<vmem>>, %arg16: memref<32x64xf32, #tpu.memory_space<vmem>>) attributes {dimension_semantics = [], scalar_prefetch = 0 : i64, scratch_operands = 0 : i64, tpu.core_type = #tpu.core_type<tc>} {
    %c0 = arith.constant 0 : index
    %c0_0 = arith.constant 0 : index
    %0 = vector.load %arg0[%c0, %c0_0] : memref<32x64xf32, #tpu.memory_space<vmem>>, vector<32x64xf32>
    %c0_1 = arith.constant 0 : index
    %c0_2 = arith.constant 0 : index
    %1 = vector.load %arg1[%c0_1, %c0_2] : memref<32x32xf32, #tpu.memory_space<vmem>>, vector<32x32xf32>
    %c0_3 = arith.constant 0 : index
    %c0_4 = arith.constant 0 : index
    %2 = vector.load %arg2[%c0_3, %c0_4] : memref<64x64xbf16, #tpu.memory_space<vmem>>, vector<64x64xbf16>
    %3 = arith.truncf %0 : vector<32x64xf32> to vector<32x64xbf16>
    %cst = arith.constant dense<0.000000e+00> : vector<32x64xf32>
    %4 = tpu.matmul %3, %2, %cst {dimension_numbers = #tpu.dot_dimension_numbers<[1], [0], [0], [1], [0, 0, 1, 1], [], []>} : vector<32x64xbf16>, vector<64x64xbf16>, vector<32x64xf32> -> vector<32x64xf32>
    %c0_5 = arith.constant 0 : index
    %c0_6 = arith.constant 0 : index
    %5 = vector.load %arg3[%c0_5, %c0_6] : memref<1x64xf32, #tpu.memory_space<vmem>>, vector<1x64xf32>
    %6 = vector.broadcast %5 : vector<1x64xf32> to vector<32x64xf32>
    %7 = arith.addf %4, %6 : vector<32x64xf32>
    %c0_7 = arith.constant 0 : index
    %c0_8 = arith.constant 0 : index
    %c0_9 = arith.constant 0 : index
    %8 = vector.load %arg4[%c0_7, %c0_8, %c0_9] : memref<2x1x64xf32, #tpu.memory_space<vmem>>, vector<1x1x64xf32>
    %9 = vector.shape_cast %8 : vector<1x1x64xf32> to vector<1x64xf32>
    %c0_10 = arith.constant 0 : index
    %c0_11 = arith.constant 0 : index
    %c0_12 = arith.constant 0 : index
    %10 = vector.load %arg5[%c0_10, %c0_11, %c0_12] : memref<2x1x64xf32, #tpu.memory_space<vmem>>, vector<1x1x64xf32>
    %11 = vector.shape_cast %10 : vector<1x1x64xf32> to vector<1x64xf32>
    %cst_13 = arith.constant dense<0.000000e+00> : vector<32xf32>
    %12 = vector.multi_reduction <add>, %7, %cst_13 [1] : vector<32x64xf32> to vector<32xf32>
    %13 = vector.shape_cast %12 : vector<32xf32> to vector<32x1xf32>
    %cst_14 = arith.constant 6.400000e+01 : f32
    %14 = vector.broadcast %cst_14 : f32 to vector<32x1xf32>
    %15 = arith.divf %13, %14 : vector<32x1xf32>
    %16 = vector.broadcast %15 : vector<32x1xf32> to vector<32x64xf32>
    %17 = arith.subf %7, %16 : vector<32x64xf32>
    %18 = arith.mulf %17, %17 : vector<32x64xf32>
    %cst_15 = arith.constant dense<0.000000e+00> : vector<32xf32>
    %19 = vector.multi_reduction <add>, %18, %cst_15 [1] : vector<32x64xf32> to vector<32xf32>
    %20 = vector.shape_cast %19 : vector<32xf32> to vector<32x1xf32>
    %cst_16 = arith.constant 6.400000e+01 : f32
    %21 = vector.broadcast %cst_16 : f32 to vector<32x1xf32>
    %22 = arith.divf %20, %21 : vector<32x1xf32>
    %23 = vector.broadcast %15 : vector<32x1xf32> to vector<32x64xf32>
    %24 = arith.subf %7, %23 : vector<32x64xf32>
    %cst_17 = arith.constant 9.99999974E-6 : f32
    %25 = vector.broadcast %cst_17 : f32 to vector<32x1xf32>
    %26 = arith.addf %22, %25 : vector<32x1xf32>
    %27 = math.rsqrt %26 : vector<32x1xf32>
    %28 = vector.broadcast %27 : vector<32x1xf32> to vector<32x64xf32>
    %29 = arith.mulf %24, %28 : vector<32x64xf32>
    %30 = vector.broadcast %9 : vector<1x64xf32> to vector<32x64xf32>
    %31 = arith.mulf %29, %30 : vector<32x64xf32>
    %32 = vector.broadcast %11 : vector<1x64xf32> to vector<32x64xf32>
    %33 = arith.addf %31, %32 : vector<32x64xf32>
    %c0_18 = arith.constant 0 : index
    %c0_19 = arith.constant 0 : index
    %c0_20 = arith.constant 0 : index
    %34 = vector.load %arg6[%c0_18, %c0_19, %c0_20] : memref<2x64x192xbf16, #tpu.memory_space<vmem>>, vector<1x64x192xbf16>
    %35 = vector.shape_cast %34 : vector<1x64x192xbf16> to vector<64x192xbf16>
    %36 = arith.truncf %33 : vector<32x64xf32> to vector<32x64xbf16>
    %cst_21 = arith.constant dense<0.000000e+00> : vector<32x192xf32>
    %37 = tpu.matmul %36, %35, %cst_21 {dimension_numbers = #tpu.dot_dimension_numbers<[1], [0], [0], [1], [0, 0, 1, 1], [], []>} : vector<32x64xbf16>, vector<64x192xbf16>, vector<32x192xf32> -> vector<32x192xf32>
    %c0_22 = arith.constant 0 : index
    %c0_23 = arith.constant 0 : index
    %c0_24 = arith.constant 0 : index
    %38 = vector.load %arg7[%c0_22, %c0_23, %c0_24] : memref<2x1x192xf32, #tpu.memory_space<vmem>>, vector<1x1x192xf32>
    %39 = vector.shape_cast %38 : vector<1x1x192xf32> to vector<1x192xf32>
    %40 = vector.broadcast %39 : vector<1x192xf32> to vector<32x192xf32>
    %41 = arith.addf %37, %40 : vector<32x192xf32>
    %42 = vector.extract_strided_slice %41 {offsets = [0, 0], sizes = [32, 16], strides = [1, 1]} : vector<32x192xf32> to vector<32x16xf32>
    %43 = arith.truncf %42 : vector<32x16xf32> to vector<32x16xbf16>
    %44 = vector.extract_strided_slice %41 {offsets = [0, 64], sizes = [32, 16], strides = [1, 1]} : vector<32x192xf32> to vector<32x16xf32>
    %45 = arith.truncf %44 : vector<32x16xf32> to vector<32x16xbf16>
    %46 = vector.extract_strided_slice %41 {offsets = [0, 128], sizes = [32, 16], strides = [1, 1]} : vector<32x192xf32> to vector<32x16xf32>
    %47 = arith.truncf %46 : vector<32x16xf32> to vector<32x16xbf16>
    %cst_25 = arith.constant dense<0.000000e+00> : vector<32x32xf32>
    %48 = tpu.matmul %43, %45, %cst_25 {dimension_numbers = #tpu.dot_dimension_numbers<[1], [1], [0], [0], [0, 0, 1, 0], [], []>} : vector<32x16xbf16>, vector<32x16xbf16>, vector<32x32xf32> -> vector<32x32xf32>
    %49 = arith.addf %48, %1 : vector<32x32xf32>
    %cst_26 = arith.constant dense<0xFF800000> : vector<32xf32>
    %50 = vector.multi_reduction <maximumf>, %49, %cst_26 [1] : vector<32x32xf32> to vector<32xf32>
    %51 = vector.shape_cast %50 : vector<32xf32> to vector<32x1xf32>
    %52 = vector.broadcast %51 : vector<32x1xf32> to vector<32x32xf32>
    %53 = arith.subf %49, %52 : vector<32x32xf32>
    %54 = math.exp %53 : vector<32x32xf32>
    %cst_27 = arith.constant dense<0.000000e+00> : vector<32xf32>
    %55 = vector.multi_reduction <add>, %54, %cst_27 [1] : vector<32x32xf32> to vector<32xf32>
    %56 = vector.shape_cast %55 : vector<32xf32> to vector<32x1xf32>
    %57 = tpu.reciprocal %56 {approx = true} : vector<32x1xf32> -> vector<32x1xf32>
    %58 = vector.broadcast %57 : vector<32x1xf32> to vector<32x32xf32>
    %59 = arith.mulf %54, %58 : vector<32x32xf32>
    %60 = arith.truncf %59 : vector<32x32xf32> to vector<32x32xbf16>
    %cst_28 = arith.constant dense<0.000000e+00> : vector<32x16xf32>
    %61 = tpu.matmul %60, %47, %cst_28 {dimension_numbers = #tpu.dot_dimension_numbers<[1], [0], [0], [1], [0, 0, 1, 1], [], []>} : vector<32x32xbf16>, vector<32x16xbf16>, vector<32x16xf32> -> vector<32x16xf32>
    %62 = vector.extract_strided_slice %41 {offsets = [0, 16], sizes = [32, 16], strides = [1, 1]} : vector<32x192xf32> to vector<32x16xf32>
    %63 = arith.truncf %62 : vector<32x16xf32> to vector<32x16xbf16>
    %64 = vector.extract_strided_slice %41 {offsets = [0, 80], sizes = [32, 16], strides = [1, 1]} : vector<32x192xf32> to vector<32x16xf32>
    %65 = arith.truncf %64 : vector<32x16xf32> to vector<32x16xbf16>
    %66 = vector.extract_strided_slice %41 {offsets = [0, 144], sizes = [32, 16], strides = [1, 1]} : vector<32x192xf32> to vector<32x16xf32>
    %67 = arith.truncf %66 : vector<32x16xf32> to vector<32x16xbf16>
    %cst_29 = arith.constant dense<0.000000e+00> : vector<32x32xf32>
    %68 = tpu.matmul %63, %65, %cst_29 {dimension_numbers = #tpu.dot_dimension_numbers<[1], [1], [0], [0], [0, 0, 1, 0], [], []>} : vector<32x16xbf16>, vector<32x16xbf16>, vector<32x32xf32> -> vector<32x32xf32>
    %69 = arith.addf %68, %1 : vector<32x32xf32>
    %cst_30 = arith.constant dense<0xFF800000> : vector<32xf32>
    %70 = vector.multi_reduction <maximumf>, %69, %cst_30 [1] : vector<32x32xf32> to vector<32xf32>
    %71 = vector.shape_cast %70 : vector<32xf32> to vector<32x1xf32>
    %72 = vector.broadcast %71 : vector<32x1xf32> to vector<32x32xf32>
    %73 = arith.subf %69, %72 : vector<32x32xf32>
    %74 = math.exp %73 : vector<32x32xf32>
    %cst_31 = arith.constant dense<0.000000e+00> : vector<32xf32>
    %75 = vector.multi_reduction <add>, %74, %cst_31 [1] : vector<32x32xf32> to vector<32xf32>
    %76 = vector.shape_cast %75 : vector<32xf32> to vector<32x1xf32>
    %77 = tpu.reciprocal %76 {approx = true} : vector<32x1xf32> -> vector<32x1xf32>
    %78 = vector.broadcast %77 : vector<32x1xf32> to vector<32x32xf32>
    %79 = arith.mulf %74, %78 : vector<32x32xf32>
    %80 = arith.truncf %79 : vector<32x32xf32> to vector<32x32xbf16>
    %cst_32 = arith.constant dense<0.000000e+00> : vector<32x16xf32>
    %81 = tpu.matmul %80, %67, %cst_32 {dimension_numbers = #tpu.dot_dimension_numbers<[1], [0], [0], [1], [0, 0, 1, 1], [], []>} : vector<32x32xbf16>, vector<32x16xbf16>, vector<32x16xf32> -> vector<32x16xf32>
    %82 = vector.extract_strided_slice %41 {offsets = [0, 32], sizes = [32, 16], strides = [1, 1]} : vector<32x192xf32> to vector<32x16xf32>
    %83 = arith.truncf %82 : vector<32x16xf32> to vector<32x16xbf16>
    %84 = vector.extract_strided_slice %41 {offsets = [0, 96], sizes = [32, 16], strides = [1, 1]} : vector<32x192xf32> to vector<32x16xf32>
    %85 = arith.truncf %84 : vector<32x16xf32> to vector<32x16xbf16>
    %86 = vector.extract_strided_slice %41 {offsets = [0, 160], sizes = [32, 16], strides = [1, 1]} : vector<32x192xf32> to vector<32x16xf32>
    %87 = arith.truncf %86 : vector<32x16xf32> to vector<32x16xbf16>
    %cst_33 = arith.constant dense<0.000000e+00> : vector<32x32xf32>
    %88 = tpu.matmul %83, %85, %cst_33 {dimension_numbers = #tpu.dot_dimension_numbers<[1], [1], [0], [0], [0, 0, 1, 0], [], []>} : vector<32x16xbf16>, vector<32x16xbf16>, vector<32x32xf32> -> vector<32x32xf32>
    %89 = arith.addf %88, %1 : vector<32x32xf32>
    %cst_34 = arith.constant dense<0xFF800000> : vector<32xf32>
    %90 = vector.multi_reduction <maximumf>, %89, %cst_34 [1] : vector<32x32xf32> to vector<32xf32>
    %91 = vector.shape_cast %90 : vector<32xf32> to vector<32x1xf32>
    %92 = vector.broadcast %91 : vector<32x1xf32> to vector<32x32xf32>
    %93 = arith.subf %89, %92 : vector<32x32xf32>
    %94 = math.exp %93 : vector<32x32xf32>
    %cst_35 = arith.constant dense<0.000000e+00> : vector<32xf32>
    %95 = vector.multi_reduction <add>, %94, %cst_35 [1] : vector<32x32xf32> to vector<32xf32>
    %96 = vector.shape_cast %95 : vector<32xf32> to vector<32x1xf32>
    %97 = tpu.reciprocal %96 {approx = true} : vector<32x1xf32> -> vector<32x1xf32>
    %98 = vector.broadcast %97 : vector<32x1xf32> to vector<32x32xf32>
    %99 = arith.mulf %94, %98 : vector<32x32xf32>
    %100 = arith.truncf %99 : vector<32x32xf32> to vector<32x32xbf16>
    %cst_36 = arith.constant dense<0.000000e+00> : vector<32x16xf32>
    %101 = tpu.matmul %100, %87, %cst_36 {dimension_numbers = #tpu.dot_dimension_numbers<[1], [0], [0], [1], [0, 0, 1, 1], [], []>} : vector<32x32xbf16>, vector<32x16xbf16>, vector<32x16xf32> -> vector<32x16xf32>
    %102 = vector.extract_strided_slice %41 {offsets = [0, 48], sizes = [32, 16], strides = [1, 1]} : vector<32x192xf32> to vector<32x16xf32>
    %103 = arith.truncf %102 : vector<32x16xf32> to vector<32x16xbf16>
    %104 = vector.extract_strided_slice %41 {offsets = [0, 112], sizes = [32, 16], strides = [1, 1]} : vector<32x192xf32> to vector<32x16xf32>
    %105 = arith.truncf %104 : vector<32x16xf32> to vector<32x16xbf16>
    %106 = vector.extract_strided_slice %41 {offsets = [0, 176], sizes = [32, 16], strides = [1, 1]} : vector<32x192xf32> to vector<32x16xf32>
    %107 = arith.truncf %106 : vector<32x16xf32> to vector<32x16xbf16>
    %cst_37 = arith.constant dense<0.000000e+00> : vector<32x32xf32>
    %108 = tpu.matmul %103, %105, %cst_37 {dimension_numbers = #tpu.dot_dimension_numbers<[1], [1], [0], [0], [0, 0, 1, 0], [], []>} : vector<32x16xbf16>, vector<32x16xbf16>, vector<32x32xf32> -> vector<32x32xf32>
    %109 = arith.addf %108, %1 : vector<32x32xf32>
    %cst_38 = arith.constant dense<0xFF800000> : vector<32xf32>
    %110 = vector.multi_reduction <maximumf>, %109, %cst_38 [1] : vector<32x32xf32> to vector<32xf32>
    %111 = vector.shape_cast %110 : vector<32xf32> to vector<32x1xf32>
    %112 = vector.broadcast %111 : vector<32x1xf32> to vector<32x32xf32>
    %113 = arith.subf %109, %112 : vector<32x32xf32>
    %114 = math.exp %113 : vector<32x32xf32>
    %cst_39 = arith.constant dense<0.000000e+00> : vector<32xf32>
    %115 = vector.multi_reduction <add>, %114, %cst_39 [1] : vector<32x32xf32> to vector<32xf32>
    %116 = vector.shape_cast %115 : vector<32xf32> to vector<32x1xf32>
    %117 = tpu.reciprocal %116 {approx = true} : vector<32x1xf32> -> vector<32x1xf32>
    %118 = vector.broadcast %117 : vector<32x1xf32> to vector<32x32xf32>
    %119 = arith.mulf %114, %118 : vector<32x32xf32>
    %120 = arith.truncf %119 : vector<32x32xf32> to vector<32x32xbf16>
    %cst_40 = arith.constant dense<0.000000e+00> : vector<32x16xf32>
    %121 = tpu.matmul %120, %107, %cst_40 {dimension_numbers = #tpu.dot_dimension_numbers<[1], [0], [0], [1], [0, 0, 1, 1], [], []>} : vector<32x32xbf16>, vector<32x16xbf16>, vector<32x16xf32> -> vector<32x16xf32>
    %122 = tpu.concatenate %61, %81, %101, %121 in 1 : vector<32x16xf32>, vector<32x16xf32>, vector<32x16xf32>, vector<32x16xf32> -> vector<32x64xf32>
    %c0_41 = arith.constant 0 : index
    %c0_42 = arith.constant 0 : index
    %c0_43 = arith.constant 0 : index
    %123 = vector.load %arg8[%c0_41, %c0_42, %c0_43] : memref<2x64x64xbf16, #tpu.memory_space<vmem>>, vector<1x64x64xbf16>
    %124 = vector.shape_cast %123 : vector<1x64x64xbf16> to vector<64x64xbf16>
    %125 = arith.truncf %122 : vector<32x64xf32> to vector<32x64xbf16>
    %cst_44 = arith.constant dense<0.000000e+00> : vector<32x64xf32>
    %126 = tpu.matmul %125, %124, %cst_44 {dimension_numbers = #tpu.dot_dimension_numbers<[1], [0], [0], [1], [0, 0, 1, 1], [], []>} : vector<32x64xbf16>, vector<64x64xbf16>, vector<32x64xf32> -> vector<32x64xf32>
    %127 = arith.addf %7, %126 : vector<32x64xf32>
    %c0_45 = arith.constant 0 : index
    %c0_46 = arith.constant 0 : index
    %c0_47 = arith.constant 0 : index
    %128 = vector.load %arg9[%c0_45, %c0_46, %c0_47] : memref<2x1x64xf32, #tpu.memory_space<vmem>>, vector<1x1x64xf32>
    %129 = vector.shape_cast %128 : vector<1x1x64xf32> to vector<1x64xf32>
    %130 = vector.broadcast %129 : vector<1x64xf32> to vector<32x64xf32>
    %131 = arith.addf %127, %130 : vector<32x64xf32>
    %c0_48 = arith.constant 0 : index
    %c0_49 = arith.constant 0 : index
    %c0_50 = arith.constant 0 : index
    %132 = vector.load %arg10[%c0_48, %c0_49, %c0_50] : memref<2x1x64xf32, #tpu.memory_space<vmem>>, vector<1x1x64xf32>
    %133 = vector.shape_cast %132 : vector<1x1x64xf32> to vector<1x64xf32>
    %c0_51 = arith.constant 0 : index
    %c0_52 = arith.constant 0 : index
    %c0_53 = arith.constant 0 : index
    %134 = vector.load %arg11[%c0_51, %c0_52, %c0_53] : memref<2x1x64xf32, #tpu.memory_space<vmem>>, vector<1x1x64xf32>
    %135 = vector.shape_cast %134 : vector<1x1x64xf32> to vector<1x64xf32>
    %cst_54 = arith.constant dense<0.000000e+00> : vector<32xf32>
    %136 = vector.multi_reduction <add>, %131, %cst_54 [1] : vector<32x64xf32> to vector<32xf32>
    %137 = vector.shape_cast %136 : vector<32xf32> to vector<32x1xf32>
    %cst_55 = arith.constant 6.400000e+01 : f32
    %138 = vector.broadcast %cst_55 : f32 to vector<32x1xf32>
    %139 = arith.divf %137, %138 : vector<32x1xf32>
    %140 = vector.broadcast %139 : vector<32x1xf32> to vector<32x64xf32>
    %141 = arith.subf %131, %140 : vector<32x64xf32>
    %142 = arith.mulf %141, %141 : vector<32x64xf32>
    %cst_56 = arith.constant dense<0.000000e+00> : vector<32xf32>
    %143 = vector.multi_reduction <add>, %142, %cst_56 [1] : vector<32x64xf32> to vector<32xf32>
    %144 = vector.shape_cast %143 : vector<32xf32> to vector<32x1xf32>
    %cst_57 = arith.constant 6.400000e+01 : f32
    %145 = vector.broadcast %cst_57 : f32 to vector<32x1xf32>
    %146 = arith.divf %144, %145 : vector<32x1xf32>
    %147 = vector.broadcast %139 : vector<32x1xf32> to vector<32x64xf32>
    %148 = arith.subf %131, %147 : vector<32x64xf32>
    %cst_58 = arith.constant 9.99999974E-6 : f32
    %149 = vector.broadcast %cst_58 : f32 to vector<32x1xf32>
    %150 = arith.addf %146, %149 : vector<32x1xf32>
    %151 = math.rsqrt %150 : vector<32x1xf32>
    %152 = vector.broadcast %151 : vector<32x1xf32> to vector<32x64xf32>
    %153 = arith.mulf %148, %152 : vector<32x64xf32>
    %154 = vector.broadcast %133 : vector<1x64xf32> to vector<32x64xf32>
    %155 = arith.mulf %153, %154 : vector<32x64xf32>
    %156 = vector.broadcast %135 : vector<1x64xf32> to vector<32x64xf32>
    %157 = arith.addf %155, %156 : vector<32x64xf32>
    %c0_59 = arith.constant 0 : index
    %c0_60 = arith.constant 0 : index
    %c0_61 = arith.constant 0 : index
    %158 = vector.load %arg12[%c0_59, %c0_60, %c0_61] : memref<2x64x128xbf16, #tpu.memory_space<vmem>>, vector<1x64x128xbf16>
    %159 = vector.shape_cast %158 : vector<1x64x128xbf16> to vector<64x128xbf16>
    %160 = arith.truncf %157 : vector<32x64xf32> to vector<32x64xbf16>
    %cst_62 = arith.constant dense<0.000000e+00> : vector<32x128xf32>
    %161 = tpu.matmul %160, %159, %cst_62 {dimension_numbers = #tpu.dot_dimension_numbers<[1], [0], [0], [1], [0, 0, 1, 1], [], []>} : vector<32x64xbf16>, vector<64x128xbf16>, vector<32x128xf32> -> vector<32x128xf32>
    %c0_63 = arith.constant 0 : index
    %c0_64 = arith.constant 0 : index
    %c0_65 = arith.constant 0 : index
    %162 = vector.load %arg13[%c0_63, %c0_64, %c0_65] : memref<2x1x128xf32, #tpu.memory_space<vmem>>, vector<1x1x128xf32>
    %163 = vector.shape_cast %162 : vector<1x1x128xf32> to vector<1x128xf32>
    %164 = vector.broadcast %163 : vector<1x128xf32> to vector<32x128xf32>
    %165 = arith.addf %161, %164 : vector<32x128xf32>
    %cst_66 = arith.constant 5.000000e-01 : f32
    %166 = vector.broadcast %cst_66 : f32 to vector<32x128xf32>
    %167 = arith.mulf %166, %165 : vector<32x128xf32>
    %cst_67 = arith.constant 4.471500e-02 : f32
    %168 = vector.broadcast %cst_67 : f32 to vector<32x128xf32>
    %169 = arith.mulf %168, %165 : vector<32x128xf32>
    %170 = arith.mulf %169, %165 : vector<32x128xf32>
    %171 = arith.mulf %170, %165 : vector<32x128xf32>
    %172 = arith.addf %165, %171 : vector<32x128xf32>
    %cst_68 = arith.constant 0.797884583 : f32
    %173 = vector.broadcast %cst_68 : f32 to vector<32x128xf32>
    %174 = arith.mulf %173, %172 : vector<32x128xf32>
    %175 = math.tanh %174 : vector<32x128xf32>
    %cst_69 = arith.constant 1.000000e+00 : f32
    %176 = vector.broadcast %cst_69 : f32 to vector<32x128xf32>
    %177 = arith.addf %176, %175 : vector<32x128xf32>
    %178 = arith.mulf %167, %177 : vector<32x128xf32>
    %c0_70 = arith.constant 0 : index
    %c0_71 = arith.constant 0 : index
    %c0_72 = arith.constant 0 : index
    %179 = vector.load %arg14[%c0_70, %c0_71, %c0_72] : memref<2x128x64xbf16, #tpu.memory_space<vmem>>, vector<1x128x64xbf16>
    %180 = vector.shape_cast %179 : vector<1x128x64xbf16> to vector<128x64xbf16>
    %181 = arith.truncf %178 : vector<32x128xf32> to vector<32x128xbf16>
    %cst_73 = arith.constant dense<0.000000e+00> : vector<32x64xf32>
    %182 = tpu.matmul %181, %180, %cst_73 {dimension_numbers = #tpu.dot_dimension_numbers<[1], [0], [0], [1], [0, 0, 1, 1], [], []>} : vector<32x128xbf16>, vector<128x64xbf16>, vector<32x64xf32> -> vector<32x64xf32>
    %c0_74 = arith.constant 0 : index
    %c0_75 = arith.constant 0 : index
    %c0_76 = arith.constant 0 : index
    %183 = vector.load %arg15[%c0_74, %c0_75, %c0_76] : memref<2x1x64xf32, #tpu.memory_space<vmem>>, vector<1x1x64xf32>
    %184 = vector.shape_cast %183 : vector<1x1x64xf32> to vector<1x64xf32>
    %185 = vector.broadcast %184 : vector<1x64xf32> to vector<32x64xf32>
    %186 = arith.addf %182, %185 : vector<32x64xf32>
    %187 = arith.addf %131, %186 : vector<32x64xf32>
    %c1 = arith.constant 1 : index
    %c0_77 = arith.constant 0 : index
    %c0_78 = arith.constant 0 : index
    %188 = vector.load %arg4[%c1, %c0_77, %c0_78] : memref<2x1x64xf32, #tpu.memory_space<vmem>>, vector<1x1x64xf32>
    %189 = vector.shape_cast %188 : vector<1x1x64xf32> to vector<1x64xf32>
    %c1_79 = arith.constant 1 : index
    %c0_80 = arith.constant 0 : index
    %c0_81 = arith.constant 0 : index
    %190 = vector.load %arg5[%c1_79, %c0_80, %c0_81] : memref<2x1x64xf32, #tpu.memory_space<vmem>>, vector<1x1x64xf32>
    %191 = vector.shape_cast %190 : vector<1x1x64xf32> to vector<1x64xf32>
    %cst_82 = arith.constant dense<0.000000e+00> : vector<32xf32>
    %192 = vector.multi_reduction <add>, %187, %cst_82 [1] : vector<32x64xf32> to vector<32xf32>
    %193 = vector.shape_cast %192 : vector<32xf32> to vector<32x1xf32>
    %cst_83 = arith.constant 6.400000e+01 : f32
    %194 = vector.broadcast %cst_83 : f32 to vector<32x1xf32>
    %195 = arith.divf %193, %194 : vector<32x1xf32>
    %196 = vector.broadcast %195 : vector<32x1xf32> to vector<32x64xf32>
    %197 = arith.subf %187, %196 : vector<32x64xf32>
    %198 = arith.mulf %197, %197 : vector<32x64xf32>
    %cst_84 = arith.constant dense<0.000000e+00> : vector<32xf32>
    %199 = vector.multi_reduction <add>, %198, %cst_84 [1] : vector<32x64xf32> to vector<32xf32>
    %200 = vector.shape_cast %199 : vector<32xf32> to vector<32x1xf32>
    %cst_85 = arith.constant 6.400000e+01 : f32
    %201 = vector.broadcast %cst_85 : f32 to vector<32x1xf32>
    %202 = arith.divf %200, %201 : vector<32x1xf32>
    %203 = vector.broadcast %195 : vector<32x1xf32> to vector<32x64xf32>
    %204 = arith.subf %187, %203 : vector<32x64xf32>
    %cst_86 = arith.constant 9.99999974E-6 : f32
    %205 = vector.broadcast %cst_86 : f32 to vector<32x1xf32>
    %206 = arith.addf %202, %205 : vector<32x1xf32>
    %207 = math.rsqrt %206 : vector<32x1xf32>
    %208 = vector.broadcast %207 : vector<32x1xf32> to vector<32x64xf32>
    %209 = arith.mulf %204, %208 : vector<32x64xf32>
    %210 = vector.broadcast %189 : vector<1x64xf32> to vector<32x64xf32>
    %211 = arith.mulf %209, %210 : vector<32x64xf32>
    %212 = vector.broadcast %191 : vector<1x64xf32> to vector<32x64xf32>
    %213 = arith.addf %211, %212 : vector<32x64xf32>
    %c1_87 = arith.constant 1 : index
    %c0_88 = arith.constant 0 : index
    %c0_89 = arith.constant 0 : index
    %214 = vector.load %arg6[%c1_87, %c0_88, %c0_89] : memref<2x64x192xbf16, #tpu.memory_space<vmem>>, vector<1x64x192xbf16>
    %215 = vector.shape_cast %214 : vector<1x64x192xbf16> to vector<64x192xbf16>
    %216 = arith.truncf %213 : vector<32x64xf32> to vector<32x64xbf16>
    %cst_90 = arith.constant dense<0.000000e+00> : vector<32x192xf32>
    %217 = tpu.matmul %216, %215, %cst_90 {dimension_numbers = #tpu.dot_dimension_numbers<[1], [0], [0], [1], [0, 0, 1, 1], [], []>} : vector<32x64xbf16>, vector<64x192xbf16>, vector<32x192xf32> -> vector<32x192xf32>
    %c1_91 = arith.constant 1 : index
    %c0_92 = arith.constant 0 : index
    %c0_93 = arith.constant 0 : index
    %218 = vector.load %arg7[%c1_91, %c0_92, %c0_93] : memref<2x1x192xf32, #tpu.memory_space<vmem>>, vector<1x1x192xf32>
    %219 = vector.shape_cast %218 : vector<1x1x192xf32> to vector<1x192xf32>
    %220 = vector.broadcast %219 : vector<1x192xf32> to vector<32x192xf32>
    %221 = arith.addf %217, %220 : vector<32x192xf32>
    %222 = vector.extract_strided_slice %221 {offsets = [0, 0], sizes = [32, 16], strides = [1, 1]} : vector<32x192xf32> to vector<32x16xf32>
    %223 = arith.truncf %222 : vector<32x16xf32> to vector<32x16xbf16>
    %224 = vector.extract_strided_slice %221 {offsets = [0, 64], sizes = [32, 16], strides = [1, 1]} : vector<32x192xf32> to vector<32x16xf32>
    %225 = arith.truncf %224 : vector<32x16xf32> to vector<32x16xbf16>
    %226 = vector.extract_strided_slice %221 {offsets = [0, 128], sizes = [32, 16], strides = [1, 1]} : vector<32x192xf32> to vector<32x16xf32>
    %227 = arith.truncf %226 : vector<32x16xf32> to vector<32x16xbf16>
    %cst_94 = arith.constant dense<0.000000e+00> : vector<32x32xf32>
    %228 = tpu.matmul %223, %225, %cst_94 {dimension_numbers = #tpu.dot_dimension_numbers<[1], [1], [0], [0], [0, 0, 1, 0], [], []>} : vector<32x16xbf16>, vector<32x16xbf16>, vector<32x32xf32> -> vector<32x32xf32>
    %229 = arith.addf %228, %1 : vector<32x32xf32>
    %cst_95 = arith.constant dense<0xFF800000> : vector<32xf32>
    %230 = vector.multi_reduction <maximumf>, %229, %cst_95 [1] : vector<32x32xf32> to vector<32xf32>
    %231 = vector.shape_cast %230 : vector<32xf32> to vector<32x1xf32>
    %232 = vector.broadcast %231 : vector<32x1xf32> to vector<32x32xf32>
    %233 = arith.subf %229, %232 : vector<32x32xf32>
    %234 = math.exp %233 : vector<32x32xf32>
    %cst_96 = arith.constant dense<0.000000e+00> : vector<32xf32>
    %235 = vector.multi_reduction <add>, %234, %cst_96 [1] : vector<32x32xf32> to vector<32xf32>
    %236 = vector.shape_cast %235 : vector<32xf32> to vector<32x1xf32>
    %237 = tpu.reciprocal %236 {approx = true} : vector<32x1xf32> -> vector<32x1xf32>
    %238 = vector.broadcast %237 : vector<32x1xf32> to vector<32x32xf32>
    %239 = arith.mulf %234, %238 : vector<32x32xf32>
    %240 = arith.truncf %239 : vector<32x32xf32> to vector<32x32xbf16>
    %cst_97 = arith.constant dense<0.000000e+00> : vector<32x16xf32>
    %241 = tpu.matmul %240, %227, %cst_97 {dimension_numbers = #tpu.dot_dimension_numbers<[1], [0], [0], [1], [0, 0, 1, 1], [], []>} : vector<32x32xbf16>, vector<32x16xbf16>, vector<32x16xf32> -> vector<32x16xf32>
    %242 = vector.extract_strided_slice %221 {offsets = [0, 16], sizes = [32, 16], strides = [1, 1]} : vector<32x192xf32> to vector<32x16xf32>
    %243 = arith.truncf %242 : vector<32x16xf32> to vector<32x16xbf16>
    %244 = vector.extract_strided_slice %221 {offsets = [0, 80], sizes = [32, 16], strides = [1, 1]} : vector<32x192xf32> to vector<32x16xf32>
    %245 = arith.truncf %244 : vector<32x16xf32> to vector<32x16xbf16>
    %246 = vector.extract_strided_slice %221 {offsets = [0, 144], sizes = [32, 16], strides = [1, 1]} : vector<32x192xf32> to vector<32x16xf32>
    %247 = arith.truncf %246 : vector<32x16xf32> to vector<32x16xbf16>
    %cst_98 = arith.constant dense<0.000000e+00> : vector<32x32xf32>
    %248 = tpu.matmul %243, %245, %cst_98 {dimension_numbers = #tpu.dot_dimension_numbers<[1], [1], [0], [0], [0, 0, 1, 0], [], []>} : vector<32x16xbf16>, vector<32x16xbf16>, vector<32x32xf32> -> vector<32x32xf32>
    %249 = arith.addf %248, %1 : vector<32x32xf32>
    %cst_99 = arith.constant dense<0xFF800000> : vector<32xf32>
    %250 = vector.multi_reduction <maximumf>, %249, %cst_99 [1] : vector<32x32xf32> to vector<32xf32>
    %251 = vector.shape_cast %250 : vector<32xf32> to vector<32x1xf32>
    %252 = vector.broadcast %251 : vector<32x1xf32> to vector<32x32xf32>
    %253 = arith.subf %249, %252 : vector<32x32xf32>
    %254 = math.exp %253 : vector<32x32xf32>
    %cst_100 = arith.constant dense<0.000000e+00> : vector<32xf32>
    %255 = vector.multi_reduction <add>, %254, %cst_100 [1] : vector<32x32xf32> to vector<32xf32>
    %256 = vector.shape_cast %255 : vector<32xf32> to vector<32x1xf32>
    %257 = tpu.reciprocal %256 {approx = true} : vector<32x1xf32> -> vector<32x1xf32>
    %258 = vector.broadcast %257 : vector<32x1xf32> to vector<32x32xf32>
    %259 = arith.mulf %254, %258 : vector<32x32xf32>
    %260 = arith.truncf %259 : vector<32x32xf32> to vector<32x32xbf16>
    %cst_101 = arith.constant dense<0.000000e+00> : vector<32x16xf32>
    %261 = tpu.matmul %260, %247, %cst_101 {dimension_numbers = #tpu.dot_dimension_numbers<[1], [0], [0], [1], [0, 0, 1, 1], [], []>} : vector<32x32xbf16>, vector<32x16xbf16>, vector<32x16xf32> -> vector<32x16xf32>
    %262 = vector.extract_strided_slice %221 {offsets = [0, 32], sizes = [32, 16], strides = [1, 1]} : vector<32x192xf32> to vector<32x16xf32>
    %263 = arith.truncf %262 : vector<32x16xf32> to vector<32x16xbf16>
    %264 = vector.extract_strided_slice %221 {offsets = [0, 96], sizes = [32, 16], strides = [1, 1]} : vector<32x192xf32> to vector<32x16xf32>
    %265 = arith.truncf %264 : vector<32x16xf32> to vector<32x16xbf16>
    %266 = vector.extract_strided_slice %221 {offsets = [0, 160], sizes = [32, 16], strides = [1, 1]} : vector<32x192xf32> to vector<32x16xf32>
    %267 = arith.truncf %266 : vector<32x16xf32> to vector<32x16xbf16>
    %cst_102 = arith.constant dense<0.000000e+00> : vector<32x32xf32>
    %268 = tpu.matmul %263, %265, %cst_102 {dimension_numbers = #tpu.dot_dimension_numbers<[1], [1], [0], [0], [0, 0, 1, 0], [], []>} : vector<32x16xbf16>, vector<32x16xbf16>, vector<32x32xf32> -> vector<32x32xf32>
    %269 = arith.addf %268, %1 : vector<32x32xf32>
    %cst_103 = arith.constant dense<0xFF800000> : vector<32xf32>
    %270 = vector.multi_reduction <maximumf>, %269, %cst_103 [1] : vector<32x32xf32> to vector<32xf32>
    %271 = vector.shape_cast %270 : vector<32xf32> to vector<32x1xf32>
    %272 = vector.broadcast %271 : vector<32x1xf32> to vector<32x32xf32>
    %273 = arith.subf %269, %272 : vector<32x32xf32>
    %274 = math.exp %273 : vector<32x32xf32>
    %cst_104 = arith.constant dense<0.000000e+00> : vector<32xf32>
    %275 = vector.multi_reduction <add>, %274, %cst_104 [1] : vector<32x32xf32> to vector<32xf32>
    %276 = vector.shape_cast %275 : vector<32xf32> to vector<32x1xf32>
    %277 = tpu.reciprocal %276 {approx = true} : vector<32x1xf32> -> vector<32x1xf32>
    %278 = vector.broadcast %277 : vector<32x1xf32> to vector<32x32xf32>
    %279 = arith.mulf %274, %278 : vector<32x32xf32>
    %280 = arith.truncf %279 : vector<32x32xf32> to vector<32x32xbf16>
    %cst_105 = arith.constant dense<0.000000e+00> : vector<32x16xf32>
    %281 = tpu.matmul %280, %267, %cst_105 {dimension_numbers = #tpu.dot_dimension_numbers<[1], [0], [0], [1], [0, 0, 1, 1], [], []>} : vector<32x32xbf16>, vector<32x16xbf16>, vector<32x16xf32> -> vector<32x16xf32>
    %282 = vector.extract_strided_slice %221 {offsets = [0, 48], sizes = [32, 16], strides = [1, 1]} : vector<32x192xf32> to vector<32x16xf32>
    %283 = arith.truncf %282 : vector<32x16xf32> to vector<32x16xbf16>
    %284 = vector.extract_strided_slice %221 {offsets = [0, 112], sizes = [32, 16], strides = [1, 1]} : vector<32x192xf32> to vector<32x16xf32>
    %285 = arith.truncf %284 : vector<32x16xf32> to vector<32x16xbf16>
    %286 = vector.extract_strided_slice %221 {offsets = [0, 176], sizes = [32, 16], strides = [1, 1]} : vector<32x192xf32> to vector<32x16xf32>
    %287 = arith.truncf %286 : vector<32x16xf32> to vector<32x16xbf16>
    %cst_106 = arith.constant dense<0.000000e+00> : vector<32x32xf32>
    %288 = tpu.matmul %283, %285, %cst_106 {dimension_numbers = #tpu.dot_dimension_numbers<[1], [1], [0], [0], [0, 0, 1, 0], [], []>} : vector<32x16xbf16>, vector<32x16xbf16>, vector<32x32xf32> -> vector<32x32xf32>
    %289 = arith.addf %288, %1 : vector<32x32xf32>
    %cst_107 = arith.constant dense<0xFF800000> : vector<32xf32>
    %290 = vector.multi_reduction <maximumf>, %289, %cst_107 [1] : vector<32x32xf32> to vector<32xf32>
    %291 = vector.shape_cast %290 : vector<32xf32> to vector<32x1xf32>
    %292 = vector.broadcast %291 : vector<32x1xf32> to vector<32x32xf32>
    %293 = arith.subf %289, %292 : vector<32x32xf32>
    %294 = math.exp %293 : vector<32x32xf32>
    %cst_108 = arith.constant dense<0.000000e+00> : vector<32xf32>
    %295 = vector.multi_reduction <add>, %294, %cst_108 [1] : vector<32x32xf32> to vector<32xf32>
    %296 = vector.shape_cast %295 : vector<32xf32> to vector<32x1xf32>
    %297 = tpu.reciprocal %296 {approx = true} : vector<32x1xf32> -> vector<32x1xf32>
    %298 = vector.broadcast %297 : vector<32x1xf32> to vector<32x32xf32>
    %299 = arith.mulf %294, %298 : vector<32x32xf32>
    %300 = arith.truncf %299 : vector<32x32xf32> to vector<32x32xbf16>
    %cst_109 = arith.constant dense<0.000000e+00> : vector<32x16xf32>
    %301 = tpu.matmul %300, %287, %cst_109 {dimension_numbers = #tpu.dot_dimension_numbers<[1], [0], [0], [1], [0, 0, 1, 1], [], []>} : vector<32x32xbf16>, vector<32x16xbf16>, vector<32x16xf32> -> vector<32x16xf32>
    %302 = tpu.concatenate %241, %261, %281, %301 in 1 : vector<32x16xf32>, vector<32x16xf32>, vector<32x16xf32>, vector<32x16xf32> -> vector<32x64xf32>
    %c1_110 = arith.constant 1 : index
    %c0_111 = arith.constant 0 : index
    %c0_112 = arith.constant 0 : index
    %303 = vector.load %arg8[%c1_110, %c0_111, %c0_112] : memref<2x64x64xbf16, #tpu.memory_space<vmem>>, vector<1x64x64xbf16>
    %304 = vector.shape_cast %303 : vector<1x64x64xbf16> to vector<64x64xbf16>
    %305 = arith.truncf %302 : vector<32x64xf32> to vector<32x64xbf16>
    %cst_113 = arith.constant dense<0.000000e+00> : vector<32x64xf32>
    %306 = tpu.matmul %305, %304, %cst_113 {dimension_numbers = #tpu.dot_dimension_numbers<[1], [0], [0], [1], [0, 0, 1, 1], [], []>} : vector<32x64xbf16>, vector<64x64xbf16>, vector<32x64xf32> -> vector<32x64xf32>
    %307 = arith.addf %187, %306 : vector<32x64xf32>
    %c1_114 = arith.constant 1 : index
    %c0_115 = arith.constant 0 : index
    %c0_116 = arith.constant 0 : index
    %308 = vector.load %arg9[%c1_114, %c0_115, %c0_116] : memref<2x1x64xf32, #tpu.memory_space<vmem>>, vector<1x1x64xf32>
    %309 = vector.shape_cast %308 : vector<1x1x64xf32> to vector<1x64xf32>
    %310 = vector.broadcast %309 : vector<1x64xf32> to vector<32x64xf32>
    %311 = arith.addf %307, %310 : vector<32x64xf32>
    %c1_117 = arith.constant 1 : index
    %c0_118 = arith.constant 0 : index
    %c0_119 = arith.constant 0 : index
    %312 = vector.load %arg10[%c1_117, %c0_118, %c0_119] : memref<2x1x64xf32, #tpu.memory_space<vmem>>, vector<1x1x64xf32>
    %313 = vector.shape_cast %312 : vector<1x1x64xf32> to vector<1x64xf32>
    %c1_120 = arith.constant 1 : index
    %c0_121 = arith.constant 0 : index
    %c0_122 = arith.constant 0 : index
    %314 = vector.load %arg11[%c1_120, %c0_121, %c0_122] : memref<2x1x64xf32, #tpu.memory_space<vmem>>, vector<1x1x64xf32>
    %315 = vector.shape_cast %314 : vector<1x1x64xf32> to vector<1x64xf32>
    %cst_123 = arith.constant dense<0.000000e+00> : vector<32xf32>
    %316 = vector.multi_reduction <add>, %311, %cst_123 [1] : vector<32x64xf32> to vector<32xf32>
    %317 = vector.shape_cast %316 : vector<32xf32> to vector<32x1xf32>
    %cst_124 = arith.constant 6.400000e+01 : f32
    %318 = vector.broadcast %cst_124 : f32 to vector<32x1xf32>
    %319 = arith.divf %317, %318 : vector<32x1xf32>
    %320 = vector.broadcast %319 : vector<32x1xf32> to vector<32x64xf32>
    %321 = arith.subf %311, %320 : vector<32x64xf32>
    %322 = arith.mulf %321, %321 : vector<32x64xf32>
    %cst_125 = arith.constant dense<0.000000e+00> : vector<32xf32>
    %323 = vector.multi_reduction <add>, %322, %cst_125 [1] : vector<32x64xf32> to vector<32xf32>
    %324 = vector.shape_cast %323 : vector<32xf32> to vector<32x1xf32>
    %cst_126 = arith.constant 6.400000e+01 : f32
    %325 = vector.broadcast %cst_126 : f32 to vector<32x1xf32>
    %326 = arith.divf %324, %325 : vector<32x1xf32>
    %327 = vector.broadcast %319 : vector<32x1xf32> to vector<32x64xf32>
    %328 = arith.subf %311, %327 : vector<32x64xf32>
    %cst_127 = arith.constant 9.99999974E-6 : f32
    %329 = vector.broadcast %cst_127 : f32 to vector<32x1xf32>
    %330 = arith.addf %326, %329 : vector<32x1xf32>
    %331 = math.rsqrt %330 : vector<32x1xf32>
    %332 = vector.broadcast %331 : vector<32x1xf32> to vector<32x64xf32>
    %333 = arith.mulf %328, %332 : vector<32x64xf32>
    %334 = vector.broadcast %313 : vector<1x64xf32> to vector<32x64xf32>
    %335 = arith.mulf %333, %334 : vector<32x64xf32>
    %336 = vector.broadcast %315 : vector<1x64xf32> to vector<32x64xf32>
    %337 = arith.addf %335, %336 : vector<32x64xf32>
    %c1_128 = arith.constant 1 : index
    %c0_129 = arith.constant 0 : index
    %c0_130 = arith.constant 0 : index
    %338 = vector.load %arg12[%c1_128, %c0_129, %c0_130] : memref<2x64x128xbf16, #tpu.memory_space<vmem>>, vector<1x64x128xbf16>
    %339 = vector.shape_cast %338 : vector<1x64x128xbf16> to vector<64x128xbf16>
    %340 = arith.truncf %337 : vector<32x64xf32> to vector<32x64xbf16>
    %cst_131 = arith.constant dense<0.000000e+00> : vector<32x128xf32>
    %341 = tpu.matmul %340, %339, %cst_131 {dimension_numbers = #tpu.dot_dimension_numbers<[1], [0], [0], [1], [0, 0, 1, 1], [], []>} : vector<32x64xbf16>, vector<64x128xbf16>, vector<32x128xf32> -> vector<32x128xf32>
    %c1_132 = arith.constant 1 : index
    %c0_133 = arith.constant 0 : index
    %c0_134 = arith.constant 0 : index
    %342 = vector.load %arg13[%c1_132, %c0_133, %c0_134] : memref<2x1x128xf32, #tpu.memory_space<vmem>>, vector<1x1x128xf32>
    %343 = vector.shape_cast %342 : vector<1x1x128xf32> to vector<1x128xf32>
    %344 = vector.broadcast %343 : vector<1x128xf32> to vector<32x128xf32>
    %345 = arith.addf %341, %344 : vector<32x128xf32>
    %cst_135 = arith.constant 5.000000e-01 : f32
    %346 = vector.broadcast %cst_135 : f32 to vector<32x128xf32>
    %347 = arith.mulf %346, %345 : vector<32x128xf32>
    %cst_136 = arith.constant 4.471500e-02 : f32
    %348 = vector.broadcast %cst_136 : f32 to vector<32x128xf32>
    %349 = arith.mulf %348, %345 : vector<32x128xf32>
    %350 = arith.mulf %349, %345 : vector<32x128xf32>
    %351 = arith.mulf %350, %345 : vector<32x128xf32>
    %352 = arith.addf %345, %351 : vector<32x128xf32>
    %cst_137 = arith.constant 0.797884583 : f32
    %353 = vector.broadcast %cst_137 : f32 to vector<32x128xf32>
    %354 = arith.mulf %353, %352 : vector<32x128xf32>
    %355 = math.tanh %354 : vector<32x128xf32>
    %cst_138 = arith.constant 1.000000e+00 : f32
    %356 = vector.broadcast %cst_138 : f32 to vector<32x128xf32>
    %357 = arith.addf %356, %355 : vector<32x128xf32>
    %358 = arith.mulf %347, %357 : vector<32x128xf32>
    %c1_139 = arith.constant 1 : index
    %c0_140 = arith.constant 0 : index
    %c0_141 = arith.constant 0 : index
    %359 = vector.load %arg14[%c1_139, %c0_140, %c0_141] : memref<2x128x64xbf16, #tpu.memory_space<vmem>>, vector<1x128x64xbf16>
    %360 = vector.shape_cast %359 : vector<1x128x64xbf16> to vector<128x64xbf16>
    %361 = arith.truncf %358 : vector<32x128xf32> to vector<32x128xbf16>
    %cst_142 = arith.constant dense<0.000000e+00> : vector<32x64xf32>
    %362 = tpu.matmul %361, %360, %cst_142 {dimension_numbers = #tpu.dot_dimension_numbers<[1], [0], [0], [1], [0, 0, 1, 1], [], []>} : vector<32x128xbf16>, vector<128x64xbf16>, vector<32x64xf32> -> vector<32x64xf32>
    %c1_143 = arith.constant 1 : index
    %c0_144 = arith.constant 0 : index
    %c0_145 = arith.constant 0 : index
    %363 = vector.load %arg15[%c1_143, %c0_144, %c0_145] : memref<2x1x64xf32, #tpu.memory_space<vmem>>, vector<1x1x64xf32>
    %364 = vector.shape_cast %363 : vector<1x1x64xf32> to vector<1x64xf32>
    %365 = vector.broadcast %364 : vector<1x64xf32> to vector<32x64xf32>
    %366 = arith.addf %362, %365 : vector<32x64xf32>
    %367 = arith.addf %311, %366 : vector<32x64xf32>
    %c0_146 = arith.constant 0 : index
    %c0_147 = arith.constant 0 : index
    %368 = vector.load %arg16[%c0_146, %c0_147] : memref<32x64xf32, #tpu.memory_space<vmem>>, vector<32x64xf32>
    tpu.vector_store %arg16[%c0_146, %c0_147], %367 {strides = array<i32>} : memref<32x64xf32, #tpu.memory_space<vmem>>, vector<32x64xf32>,
    return
  }
}

module attributes {stable_mosaic.version = 11 : i64} {
  func.func @_mae_stack_kernel(%arg0: memref<48x64xf32, #tpu.memory_space<vmem>>, %arg1: memref<48x48xf32, #tpu.memory_space<vmem>>, %arg2: memref<64x64xbf16, #tpu.memory_space<vmem>>, %arg3: memref<1x64xf32, #tpu.memory_space<vmem>>, %arg4: memref<2x1x64xf32, #tpu.memory_space<vmem>>, %arg5: memref<2x1x64xf32, #tpu.memory_space<vmem>>, %arg6: memref<2x64x192xbf16, #tpu.memory_space<vmem>>, %arg7: memref<2x1x192xf32, #tpu.memory_space<vmem>>, %arg8: memref<2x64x64xbf16, #tpu.memory_space<vmem>>, %arg9: memref<2x1x64xf32, #tpu.memory_space<vmem>>, %arg10: memref<2x1x64xf32, #tpu.memory_space<vmem>>, %arg11: memref<2x1x64xf32, #tpu.memory_space<vmem>>, %arg12: memref<2x64x128xbf16, #tpu.memory_space<vmem>>, %arg13: memref<2x1x128xf32, #tpu.memory_space<vmem>>, %arg14: memref<2x128x64xbf16, #tpu.memory_space<vmem>>, %arg15: memref<2x1x64xf32, #tpu.memory_space<vmem>>, %arg16: memref<48x64xf32, #tpu.memory_space<vmem>>) attributes {dimension_semantics = [], scalar_prefetch = 0 : i64, scratch_operands = 0 : i64, tpu.core_type = #tpu.core_type<tc>} {
    %c0 = arith.constant 0 : index
    %c0_0 = arith.constant 0 : index
    %0 = vector.load %arg0[%c0, %c0_0] : memref<48x64xf32, #tpu.memory_space<vmem>>, vector<48x64xf32>
    %c0_1 = arith.constant 0 : index
    %c0_2 = arith.constant 0 : index
    %1 = vector.load %arg1[%c0_1, %c0_2] : memref<48x48xf32, #tpu.memory_space<vmem>>, vector<48x48xf32>
    %c0_3 = arith.constant 0 : index
    %c0_4 = arith.constant 0 : index
    %c0_5 = arith.constant 0 : index
    %2 = vector.load %arg4[%c0_3, %c0_4, %c0_5] : memref<2x1x64xf32, #tpu.memory_space<vmem>>, vector<1x1x64xf32>
    %3 = vector.shape_cast %2 : vector<1x1x64xf32> to vector<1x64xf32>
    %c0_6 = arith.constant 0 : index
    %c0_7 = arith.constant 0 : index
    %c0_8 = arith.constant 0 : index
    %4 = vector.load %arg5[%c0_6, %c0_7, %c0_8] : memref<2x1x64xf32, #tpu.memory_space<vmem>>, vector<1x1x64xf32>
    %5 = vector.shape_cast %4 : vector<1x1x64xf32> to vector<1x64xf32>
    %cst = arith.constant dense<0.000000e+00> : vector<48xf32>
    %6 = vector.multi_reduction <add>, %0, %cst [1] : vector<48x64xf32> to vector<48xf32>
    %7 = vector.shape_cast %6 : vector<48xf32> to vector<48x1xf32>
    %cst_9 = arith.constant 6.400000e+01 : f32
    %8 = vector.broadcast %cst_9 : f32 to vector<48x1xf32>
    %9 = arith.divf %7, %8 : vector<48x1xf32>
    %10 = vector.broadcast %9 : vector<48x1xf32> to vector<48x64xf32>
    %11 = arith.subf %0, %10 : vector<48x64xf32>
    %12 = arith.mulf %11, %11 : vector<48x64xf32>
    %cst_10 = arith.constant dense<0.000000e+00> : vector<48xf32>
    %13 = vector.multi_reduction <add>, %12, %cst_10 [1] : vector<48x64xf32> to vector<48xf32>
    %14 = vector.shape_cast %13 : vector<48xf32> to vector<48x1xf32>
    %cst_11 = arith.constant 6.400000e+01 : f32
    %15 = vector.broadcast %cst_11 : f32 to vector<48x1xf32>
    %16 = arith.divf %14, %15 : vector<48x1xf32>
    %17 = vector.broadcast %9 : vector<48x1xf32> to vector<48x64xf32>
    %18 = arith.subf %0, %17 : vector<48x64xf32>
    %cst_12 = arith.constant 9.99999974E-6 : f32
    %19 = vector.broadcast %cst_12 : f32 to vector<48x1xf32>
    %20 = arith.addf %16, %19 : vector<48x1xf32>
    %21 = math.rsqrt %20 : vector<48x1xf32>
    %22 = vector.broadcast %21 : vector<48x1xf32> to vector<48x64xf32>
    %23 = arith.mulf %18, %22 : vector<48x64xf32>
    %24 = vector.broadcast %3 : vector<1x64xf32> to vector<48x64xf32>
    %25 = arith.mulf %23, %24 : vector<48x64xf32>
    %26 = vector.broadcast %5 : vector<1x64xf32> to vector<48x64xf32>
    %27 = arith.addf %25, %26 : vector<48x64xf32>
    %c0_13 = arith.constant 0 : index
    %c0_14 = arith.constant 0 : index
    %c0_15 = arith.constant 0 : index
    %28 = vector.load %arg6[%c0_13, %c0_14, %c0_15] : memref<2x64x192xbf16, #tpu.memory_space<vmem>>, vector<1x64x192xbf16>
    %29 = vector.shape_cast %28 : vector<1x64x192xbf16> to vector<64x192xbf16>
    %30 = arith.truncf %27 : vector<48x64xf32> to vector<48x64xbf16>
    %cst_16 = arith.constant dense<0.000000e+00> : vector<48x192xf32>
    %31 = tpu.matmul %30, %29, %cst_16 {dimension_numbers = #tpu.dot_dimension_numbers<[1], [0], [0], [1], [0, 0, 1, 1], [], []>} : vector<48x64xbf16>, vector<64x192xbf16>, vector<48x192xf32> -> vector<48x192xf32>
    %c0_17 = arith.constant 0 : index
    %c0_18 = arith.constant 0 : index
    %c0_19 = arith.constant 0 : index
    %32 = vector.load %arg7[%c0_17, %c0_18, %c0_19] : memref<2x1x192xf32, #tpu.memory_space<vmem>>, vector<1x1x192xf32>
    %33 = vector.shape_cast %32 : vector<1x1x192xf32> to vector<1x192xf32>
    %34 = vector.broadcast %33 : vector<1x192xf32> to vector<48x192xf32>
    %35 = arith.addf %31, %34 : vector<48x192xf32>
    %36 = vector.extract_strided_slice %35 {offsets = [0, 0], sizes = [48, 16], strides = [1, 1]} : vector<48x192xf32> to vector<48x16xf32>
    %37 = arith.truncf %36 : vector<48x16xf32> to vector<48x16xbf16>
    %38 = vector.extract_strided_slice %35 {offsets = [0, 64], sizes = [48, 16], strides = [1, 1]} : vector<48x192xf32> to vector<48x16xf32>
    %39 = arith.truncf %38 : vector<48x16xf32> to vector<48x16xbf16>
    %40 = vector.extract_strided_slice %35 {offsets = [0, 128], sizes = [48, 16], strides = [1, 1]} : vector<48x192xf32> to vector<48x16xf32>
    %41 = arith.truncf %40 : vector<48x16xf32> to vector<48x16xbf16>
    %cst_20 = arith.constant dense<0.000000e+00> : vector<48x48xf32>
    %42 = tpu.matmul %37, %39, %cst_20 {dimension_numbers = #tpu.dot_dimension_numbers<[1], [1], [0], [0], [0, 0, 1, 0], [], []>} : vector<48x16xbf16>, vector<48x16xbf16>, vector<48x48xf32> -> vector<48x48xf32>
    %43 = arith.addf %42, %1 : vector<48x48xf32>
    %cst_21 = arith.constant dense<0xFF800000> : vector<48xf32>
    %44 = vector.multi_reduction <maximumf>, %43, %cst_21 [1] : vector<48x48xf32> to vector<48xf32>
    %45 = vector.shape_cast %44 : vector<48xf32> to vector<48x1xf32>
    %46 = vector.broadcast %45 : vector<48x1xf32> to vector<48x48xf32>
    %47 = arith.subf %43, %46 : vector<48x48xf32>
    %48 = math.exp %47 : vector<48x48xf32>
    %cst_22 = arith.constant dense<0.000000e+00> : vector<48xf32>
    %49 = vector.multi_reduction <add>, %48, %cst_22 [1] : vector<48x48xf32> to vector<48xf32>
    %50 = vector.shape_cast %49 : vector<48xf32> to vector<48x1xf32>
    %51 = tpu.reciprocal %50 {approx = true} : vector<48x1xf32> -> vector<48x1xf32>
    %52 = vector.broadcast %51 : vector<48x1xf32> to vector<48x48xf32>
    %53 = arith.mulf %48, %52 : vector<48x48xf32>
    %54 = arith.truncf %53 : vector<48x48xf32> to vector<48x48xbf16>
    %cst_23 = arith.constant dense<0.000000e+00> : vector<48x16xf32>
    %55 = tpu.matmul %54, %41, %cst_23 {dimension_numbers = #tpu.dot_dimension_numbers<[1], [0], [0], [1], [0, 0, 1, 1], [], []>} : vector<48x48xbf16>, vector<48x16xbf16>, vector<48x16xf32> -> vector<48x16xf32>
    %56 = vector.extract_strided_slice %35 {offsets = [0, 16], sizes = [48, 16], strides = [1, 1]} : vector<48x192xf32> to vector<48x16xf32>
    %57 = arith.truncf %56 : vector<48x16xf32> to vector<48x16xbf16>
    %58 = vector.extract_strided_slice %35 {offsets = [0, 80], sizes = [48, 16], strides = [1, 1]} : vector<48x192xf32> to vector<48x16xf32>
    %59 = arith.truncf %58 : vector<48x16xf32> to vector<48x16xbf16>
    %60 = vector.extract_strided_slice %35 {offsets = [0, 144], sizes = [48, 16], strides = [1, 1]} : vector<48x192xf32> to vector<48x16xf32>
    %61 = arith.truncf %60 : vector<48x16xf32> to vector<48x16xbf16>
    %cst_24 = arith.constant dense<0.000000e+00> : vector<48x48xf32>
    %62 = tpu.matmul %57, %59, %cst_24 {dimension_numbers = #tpu.dot_dimension_numbers<[1], [1], [0], [0], [0, 0, 1, 0], [], []>} : vector<48x16xbf16>, vector<48x16xbf16>, vector<48x48xf32> -> vector<48x48xf32>
    %63 = arith.addf %62, %1 : vector<48x48xf32>
    %cst_25 = arith.constant dense<0xFF800000> : vector<48xf32>
    %64 = vector.multi_reduction <maximumf>, %63, %cst_25 [1] : vector<48x48xf32> to vector<48xf32>
    %65 = vector.shape_cast %64 : vector<48xf32> to vector<48x1xf32>
    %66 = vector.broadcast %65 : vector<48x1xf32> to vector<48x48xf32>
    %67 = arith.subf %63, %66 : vector<48x48xf32>
    %68 = math.exp %67 : vector<48x48xf32>
    %cst_26 = arith.constant dense<0.000000e+00> : vector<48xf32>
    %69 = vector.multi_reduction <add>, %68, %cst_26 [1] : vector<48x48xf32> to vector<48xf32>
    %70 = vector.shape_cast %69 : vector<48xf32> to vector<48x1xf32>
    %71 = tpu.reciprocal %70 {approx = true} : vector<48x1xf32> -> vector<48x1xf32>
    %72 = vector.broadcast %71 : vector<48x1xf32> to vector<48x48xf32>
    %73 = arith.mulf %68, %72 : vector<48x48xf32>
    %74 = arith.truncf %73 : vector<48x48xf32> to vector<48x48xbf16>
    %cst_27 = arith.constant dense<0.000000e+00> : vector<48x16xf32>
    %75 = tpu.matmul %74, %61, %cst_27 {dimension_numbers = #tpu.dot_dimension_numbers<[1], [0], [0], [1], [0, 0, 1, 1], [], []>} : vector<48x48xbf16>, vector<48x16xbf16>, vector<48x16xf32> -> vector<48x16xf32>
    %76 = vector.extract_strided_slice %35 {offsets = [0, 32], sizes = [48, 16], strides = [1, 1]} : vector<48x192xf32> to vector<48x16xf32>
    %77 = arith.truncf %76 : vector<48x16xf32> to vector<48x16xbf16>
    %78 = vector.extract_strided_slice %35 {offsets = [0, 96], sizes = [48, 16], strides = [1, 1]} : vector<48x192xf32> to vector<48x16xf32>
    %79 = arith.truncf %78 : vector<48x16xf32> to vector<48x16xbf16>
    %80 = vector.extract_strided_slice %35 {offsets = [0, 160], sizes = [48, 16], strides = [1, 1]} : vector<48x192xf32> to vector<48x16xf32>
    %81 = arith.truncf %80 : vector<48x16xf32> to vector<48x16xbf16>
    %cst_28 = arith.constant dense<0.000000e+00> : vector<48x48xf32>
    %82 = tpu.matmul %77, %79, %cst_28 {dimension_numbers = #tpu.dot_dimension_numbers<[1], [1], [0], [0], [0, 0, 1, 0], [], []>} : vector<48x16xbf16>, vector<48x16xbf16>, vector<48x48xf32> -> vector<48x48xf32>
    %83 = arith.addf %82, %1 : vector<48x48xf32>
    %cst_29 = arith.constant dense<0xFF800000> : vector<48xf32>
    %84 = vector.multi_reduction <maximumf>, %83, %cst_29 [1] : vector<48x48xf32> to vector<48xf32>
    %85 = vector.shape_cast %84 : vector<48xf32> to vector<48x1xf32>
    %86 = vector.broadcast %85 : vector<48x1xf32> to vector<48x48xf32>
    %87 = arith.subf %83, %86 : vector<48x48xf32>
    %88 = math.exp %87 : vector<48x48xf32>
    %cst_30 = arith.constant dense<0.000000e+00> : vector<48xf32>
    %89 = vector.multi_reduction <add>, %88, %cst_30 [1] : vector<48x48xf32> to vector<48xf32>
    %90 = vector.shape_cast %89 : vector<48xf32> to vector<48x1xf32>
    %91 = tpu.reciprocal %90 {approx = true} : vector<48x1xf32> -> vector<48x1xf32>
    %92 = vector.broadcast %91 : vector<48x1xf32> to vector<48x48xf32>
    %93 = arith.mulf %88, %92 : vector<48x48xf32>
    %94 = arith.truncf %93 : vector<48x48xf32> to vector<48x48xbf16>
    %cst_31 = arith.constant dense<0.000000e+00> : vector<48x16xf32>
    %95 = tpu.matmul %94, %81, %cst_31 {dimension_numbers = #tpu.dot_dimension_numbers<[1], [0], [0], [1], [0, 0, 1, 1], [], []>} : vector<48x48xbf16>, vector<48x16xbf16>, vector<48x16xf32> -> vector<48x16xf32>
    %96 = vector.extract_strided_slice %35 {offsets = [0, 48], sizes = [48, 16], strides = [1, 1]} : vector<48x192xf32> to vector<48x16xf32>
    %97 = arith.truncf %96 : vector<48x16xf32> to vector<48x16xbf16>
    %98 = vector.extract_strided_slice %35 {offsets = [0, 112], sizes = [48, 16], strides = [1, 1]} : vector<48x192xf32> to vector<48x16xf32>
    %99 = arith.truncf %98 : vector<48x16xf32> to vector<48x16xbf16>
    %100 = vector.extract_strided_slice %35 {offsets = [0, 176], sizes = [48, 16], strides = [1, 1]} : vector<48x192xf32> to vector<48x16xf32>
    %101 = arith.truncf %100 : vector<48x16xf32> to vector<48x16xbf16>
    %cst_32 = arith.constant dense<0.000000e+00> : vector<48x48xf32>
    %102 = tpu.matmul %97, %99, %cst_32 {dimension_numbers = #tpu.dot_dimension_numbers<[1], [1], [0], [0], [0, 0, 1, 0], [], []>} : vector<48x16xbf16>, vector<48x16xbf16>, vector<48x48xf32> -> vector<48x48xf32>
    %103 = arith.addf %102, %1 : vector<48x48xf32>
    %cst_33 = arith.constant dense<0xFF800000> : vector<48xf32>
    %104 = vector.multi_reduction <maximumf>, %103, %cst_33 [1] : vector<48x48xf32> to vector<48xf32>
    %105 = vector.shape_cast %104 : vector<48xf32> to vector<48x1xf32>
    %106 = vector.broadcast %105 : vector<48x1xf32> to vector<48x48xf32>
    %107 = arith.subf %103, %106 : vector<48x48xf32>
    %108 = math.exp %107 : vector<48x48xf32>
    %cst_34 = arith.constant dense<0.000000e+00> : vector<48xf32>
    %109 = vector.multi_reduction <add>, %108, %cst_34 [1] : vector<48x48xf32> to vector<48xf32>
    %110 = vector.shape_cast %109 : vector<48xf32> to vector<48x1xf32>
    %111 = tpu.reciprocal %110 {approx = true} : vector<48x1xf32> -> vector<48x1xf32>
    %112 = vector.broadcast %111 : vector<48x1xf32> to vector<48x48xf32>
    %113 = arith.mulf %108, %112 : vector<48x48xf32>
    %114 = arith.truncf %113 : vector<48x48xf32> to vector<48x48xbf16>
    %cst_35 = arith.constant dense<0.000000e+00> : vector<48x16xf32>
    %115 = tpu.matmul %114, %101, %cst_35 {dimension_numbers = #tpu.dot_dimension_numbers<[1], [0], [0], [1], [0, 0, 1, 1], [], []>} : vector<48x48xbf16>, vector<48x16xbf16>, vector<48x16xf32> -> vector<48x16xf32>
    %116 = tpu.concatenate %55, %75, %95, %115 in 1 : vector<48x16xf32>, vector<48x16xf32>, vector<48x16xf32>, vector<48x16xf32> -> vector<48x64xf32>
    %c0_36 = arith.constant 0 : index
    %c0_37 = arith.constant 0 : index
    %c0_38 = arith.constant 0 : index
    %117 = vector.load %arg8[%c0_36, %c0_37, %c0_38] : memref<2x64x64xbf16, #tpu.memory_space<vmem>>, vector<1x64x64xbf16>
    %118 = vector.shape_cast %117 : vector<1x64x64xbf16> to vector<64x64xbf16>
    %119 = arith.truncf %116 : vector<48x64xf32> to vector<48x64xbf16>
    %cst_39 = arith.constant dense<0.000000e+00> : vector<48x64xf32>
    %120 = tpu.matmul %119, %118, %cst_39 {dimension_numbers = #tpu.dot_dimension_numbers<[1], [0], [0], [1], [0, 0, 1, 1], [], []>} : vector<48x64xbf16>, vector<64x64xbf16>, vector<48x64xf32> -> vector<48x64xf32>
    %121 = arith.addf %0, %120 : vector<48x64xf32>
    %c0_40 = arith.constant 0 : index
    %c0_41 = arith.constant 0 : index
    %c0_42 = arith.constant 0 : index
    %122 = vector.load %arg9[%c0_40, %c0_41, %c0_42] : memref<2x1x64xf32, #tpu.memory_space<vmem>>, vector<1x1x64xf32>
    %123 = vector.shape_cast %122 : vector<1x1x64xf32> to vector<1x64xf32>
    %124 = vector.broadcast %123 : vector<1x64xf32> to vector<48x64xf32>
    %125 = arith.addf %121, %124 : vector<48x64xf32>
    %c0_43 = arith.constant 0 : index
    %c0_44 = arith.constant 0 : index
    %c0_45 = arith.constant 0 : index
    %126 = vector.load %arg10[%c0_43, %c0_44, %c0_45] : memref<2x1x64xf32, #tpu.memory_space<vmem>>, vector<1x1x64xf32>
    %127 = vector.shape_cast %126 : vector<1x1x64xf32> to vector<1x64xf32>
    %c0_46 = arith.constant 0 : index
    %c0_47 = arith.constant 0 : index
    %c0_48 = arith.constant 0 : index
    %128 = vector.load %arg11[%c0_46, %c0_47, %c0_48] : memref<2x1x64xf32, #tpu.memory_space<vmem>>, vector<1x1x64xf32>
    %129 = vector.shape_cast %128 : vector<1x1x64xf32> to vector<1x64xf32>
    %cst_49 = arith.constant dense<0.000000e+00> : vector<48xf32>
    %130 = vector.multi_reduction <add>, %125, %cst_49 [1] : vector<48x64xf32> to vector<48xf32>
    %131 = vector.shape_cast %130 : vector<48xf32> to vector<48x1xf32>
    %cst_50 = arith.constant 6.400000e+01 : f32
    %132 = vector.broadcast %cst_50 : f32 to vector<48x1xf32>
    %133 = arith.divf %131, %132 : vector<48x1xf32>
    %134 = vector.broadcast %133 : vector<48x1xf32> to vector<48x64xf32>
    %135 = arith.subf %125, %134 : vector<48x64xf32>
    %136 = arith.mulf %135, %135 : vector<48x64xf32>
    %cst_51 = arith.constant dense<0.000000e+00> : vector<48xf32>
    %137 = vector.multi_reduction <add>, %136, %cst_51 [1] : vector<48x64xf32> to vector<48xf32>
    %138 = vector.shape_cast %137 : vector<48xf32> to vector<48x1xf32>
    %cst_52 = arith.constant 6.400000e+01 : f32
    %139 = vector.broadcast %cst_52 : f32 to vector<48x1xf32>
    %140 = arith.divf %138, %139 : vector<48x1xf32>
    %141 = vector.broadcast %133 : vector<48x1xf32> to vector<48x64xf32>
    %142 = arith.subf %125, %141 : vector<48x64xf32>
    %cst_53 = arith.constant 9.99999974E-6 : f32
    %143 = vector.broadcast %cst_53 : f32 to vector<48x1xf32>
    %144 = arith.addf %140, %143 : vector<48x1xf32>
    %145 = math.rsqrt %144 : vector<48x1xf32>
    %146 = vector.broadcast %145 : vector<48x1xf32> to vector<48x64xf32>
    %147 = arith.mulf %142, %146 : vector<48x64xf32>
    %148 = vector.broadcast %127 : vector<1x64xf32> to vector<48x64xf32>
    %149 = arith.mulf %147, %148 : vector<48x64xf32>
    %150 = vector.broadcast %129 : vector<1x64xf32> to vector<48x64xf32>
    %151 = arith.addf %149, %150 : vector<48x64xf32>
    %c0_54 = arith.constant 0 : index
    %c0_55 = arith.constant 0 : index
    %c0_56 = arith.constant 0 : index
    %152 = vector.load %arg12[%c0_54, %c0_55, %c0_56] : memref<2x64x128xbf16, #tpu.memory_space<vmem>>, vector<1x64x128xbf16>
    %153 = vector.shape_cast %152 : vector<1x64x128xbf16> to vector<64x128xbf16>
    %154 = arith.truncf %151 : vector<48x64xf32> to vector<48x64xbf16>
    %cst_57 = arith.constant dense<0.000000e+00> : vector<48x128xf32>
    %155 = tpu.matmul %154, %153, %cst_57 {dimension_numbers = #tpu.dot_dimension_numbers<[1], [0], [0], [1], [0, 0, 1, 1], [], []>} : vector<48x64xbf16>, vector<64x128xbf16>, vector<48x128xf32> -> vector<48x128xf32>
    %c0_58 = arith.constant 0 : index
    %c0_59 = arith.constant 0 : index
    %c0_60 = arith.constant 0 : index
    %156 = vector.load %arg13[%c0_58, %c0_59, %c0_60] : memref<2x1x128xf32, #tpu.memory_space<vmem>>, vector<1x1x128xf32>
    %157 = vector.shape_cast %156 : vector<1x1x128xf32> to vector<1x128xf32>
    %158 = vector.broadcast %157 : vector<1x128xf32> to vector<48x128xf32>
    %159 = arith.addf %155, %158 : vector<48x128xf32>
    %cst_61 = arith.constant 5.000000e-01 : f32
    %160 = vector.broadcast %cst_61 : f32 to vector<48x128xf32>
    %161 = arith.mulf %160, %159 : vector<48x128xf32>
    %cst_62 = arith.constant 4.471500e-02 : f32
    %162 = vector.broadcast %cst_62 : f32 to vector<48x128xf32>
    %163 = arith.mulf %162, %159 : vector<48x128xf32>
    %164 = arith.mulf %163, %159 : vector<48x128xf32>
    %165 = arith.mulf %164, %159 : vector<48x128xf32>
    %166 = arith.addf %159, %165 : vector<48x128xf32>
    %cst_63 = arith.constant 0.797884583 : f32
    %167 = vector.broadcast %cst_63 : f32 to vector<48x128xf32>
    %168 = arith.mulf %167, %166 : vector<48x128xf32>
    %169 = math.tanh %168 : vector<48x128xf32>
    %cst_64 = arith.constant 1.000000e+00 : f32
    %170 = vector.broadcast %cst_64 : f32 to vector<48x128xf32>
    %171 = arith.addf %170, %169 : vector<48x128xf32>
    %172 = arith.mulf %161, %171 : vector<48x128xf32>
    %c0_65 = arith.constant 0 : index
    %c0_66 = arith.constant 0 : index
    %c0_67 = arith.constant 0 : index
    %173 = vector.load %arg14[%c0_65, %c0_66, %c0_67] : memref<2x128x64xbf16, #tpu.memory_space<vmem>>, vector<1x128x64xbf16>
    %174 = vector.shape_cast %173 : vector<1x128x64xbf16> to vector<128x64xbf16>
    %175 = arith.truncf %172 : vector<48x128xf32> to vector<48x128xbf16>
    %cst_68 = arith.constant dense<0.000000e+00> : vector<48x64xf32>
    %176 = tpu.matmul %175, %174, %cst_68 {dimension_numbers = #tpu.dot_dimension_numbers<[1], [0], [0], [1], [0, 0, 1, 1], [], []>} : vector<48x128xbf16>, vector<128x64xbf16>, vector<48x64xf32> -> vector<48x64xf32>
    %c0_69 = arith.constant 0 : index
    %c0_70 = arith.constant 0 : index
    %c0_71 = arith.constant 0 : index
    %177 = vector.load %arg15[%c0_69, %c0_70, %c0_71] : memref<2x1x64xf32, #tpu.memory_space<vmem>>, vector<1x1x64xf32>
    %178 = vector.shape_cast %177 : vector<1x1x64xf32> to vector<1x64xf32>
    %179 = vector.broadcast %178 : vector<1x64xf32> to vector<48x64xf32>
    %180 = arith.addf %176, %179 : vector<48x64xf32>
    %181 = arith.addf %125, %180 : vector<48x64xf32>
    %c1 = arith.constant 1 : index
    %c0_72 = arith.constant 0 : index
    %c0_73 = arith.constant 0 : index
    %182 = vector.load %arg4[%c1, %c0_72, %c0_73] : memref<2x1x64xf32, #tpu.memory_space<vmem>>, vector<1x1x64xf32>
    %183 = vector.shape_cast %182 : vector<1x1x64xf32> to vector<1x64xf32>
    %c1_74 = arith.constant 1 : index
    %c0_75 = arith.constant 0 : index
    %c0_76 = arith.constant 0 : index
    %184 = vector.load %arg5[%c1_74, %c0_75, %c0_76] : memref<2x1x64xf32, #tpu.memory_space<vmem>>, vector<1x1x64xf32>
    %185 = vector.shape_cast %184 : vector<1x1x64xf32> to vector<1x64xf32>
    %cst_77 = arith.constant dense<0.000000e+00> : vector<48xf32>
    %186 = vector.multi_reduction <add>, %181, %cst_77 [1] : vector<48x64xf32> to vector<48xf32>
    %187 = vector.shape_cast %186 : vector<48xf32> to vector<48x1xf32>
    %cst_78 = arith.constant 6.400000e+01 : f32
    %188 = vector.broadcast %cst_78 : f32 to vector<48x1xf32>
    %189 = arith.divf %187, %188 : vector<48x1xf32>
    %190 = vector.broadcast %189 : vector<48x1xf32> to vector<48x64xf32>
    %191 = arith.subf %181, %190 : vector<48x64xf32>
    %192 = arith.mulf %191, %191 : vector<48x64xf32>
    %cst_79 = arith.constant dense<0.000000e+00> : vector<48xf32>
    %193 = vector.multi_reduction <add>, %192, %cst_79 [1] : vector<48x64xf32> to vector<48xf32>
    %194 = vector.shape_cast %193 : vector<48xf32> to vector<48x1xf32>
    %cst_80 = arith.constant 6.400000e+01 : f32
    %195 = vector.broadcast %cst_80 : f32 to vector<48x1xf32>
    %196 = arith.divf %194, %195 : vector<48x1xf32>
    %197 = vector.broadcast %189 : vector<48x1xf32> to vector<48x64xf32>
    %198 = arith.subf %181, %197 : vector<48x64xf32>
    %cst_81 = arith.constant 9.99999974E-6 : f32
    %199 = vector.broadcast %cst_81 : f32 to vector<48x1xf32>
    %200 = arith.addf %196, %199 : vector<48x1xf32>
    %201 = math.rsqrt %200 : vector<48x1xf32>
    %202 = vector.broadcast %201 : vector<48x1xf32> to vector<48x64xf32>
    %203 = arith.mulf %198, %202 : vector<48x64xf32>
    %204 = vector.broadcast %183 : vector<1x64xf32> to vector<48x64xf32>
    %205 = arith.mulf %203, %204 : vector<48x64xf32>
    %206 = vector.broadcast %185 : vector<1x64xf32> to vector<48x64xf32>
    %207 = arith.addf %205, %206 : vector<48x64xf32>
    %c1_82 = arith.constant 1 : index
    %c0_83 = arith.constant 0 : index
    %c0_84 = arith.constant 0 : index
    %208 = vector.load %arg6[%c1_82, %c0_83, %c0_84] : memref<2x64x192xbf16, #tpu.memory_space<vmem>>, vector<1x64x192xbf16>
    %209 = vector.shape_cast %208 : vector<1x64x192xbf16> to vector<64x192xbf16>
    %210 = arith.truncf %207 : vector<48x64xf32> to vector<48x64xbf16>
    %cst_85 = arith.constant dense<0.000000e+00> : vector<48x192xf32>
    %211 = tpu.matmul %210, %209, %cst_85 {dimension_numbers = #tpu.dot_dimension_numbers<[1], [0], [0], [1], [0, 0, 1, 1], [], []>} : vector<48x64xbf16>, vector<64x192xbf16>, vector<48x192xf32> -> vector<48x192xf32>
    %c1_86 = arith.constant 1 : index
    %c0_87 = arith.constant 0 : index
    %c0_88 = arith.constant 0 : index
    %212 = vector.load %arg7[%c1_86, %c0_87, %c0_88] : memref<2x1x192xf32, #tpu.memory_space<vmem>>, vector<1x1x192xf32>
    %213 = vector.shape_cast %212 : vector<1x1x192xf32> to vector<1x192xf32>
    %214 = vector.broadcast %213 : vector<1x192xf32> to vector<48x192xf32>
    %215 = arith.addf %211, %214 : vector<48x192xf32>
    %216 = vector.extract_strided_slice %215 {offsets = [0, 0], sizes = [48, 16], strides = [1, 1]} : vector<48x192xf32> to vector<48x16xf32>
    %217 = arith.truncf %216 : vector<48x16xf32> to vector<48x16xbf16>
    %218 = vector.extract_strided_slice %215 {offsets = [0, 64], sizes = [48, 16], strides = [1, 1]} : vector<48x192xf32> to vector<48x16xf32>
    %219 = arith.truncf %218 : vector<48x16xf32> to vector<48x16xbf16>
    %220 = vector.extract_strided_slice %215 {offsets = [0, 128], sizes = [48, 16], strides = [1, 1]} : vector<48x192xf32> to vector<48x16xf32>
    %221 = arith.truncf %220 : vector<48x16xf32> to vector<48x16xbf16>
    %cst_89 = arith.constant dense<0.000000e+00> : vector<48x48xf32>
    %222 = tpu.matmul %217, %219, %cst_89 {dimension_numbers = #tpu.dot_dimension_numbers<[1], [1], [0], [0], [0, 0, 1, 0], [], []>} : vector<48x16xbf16>, vector<48x16xbf16>, vector<48x48xf32> -> vector<48x48xf32>
    %223 = arith.addf %222, %1 : vector<48x48xf32>
    %cst_90 = arith.constant dense<0xFF800000> : vector<48xf32>
    %224 = vector.multi_reduction <maximumf>, %223, %cst_90 [1] : vector<48x48xf32> to vector<48xf32>
    %225 = vector.shape_cast %224 : vector<48xf32> to vector<48x1xf32>
    %226 = vector.broadcast %225 : vector<48x1xf32> to vector<48x48xf32>
    %227 = arith.subf %223, %226 : vector<48x48xf32>
    %228 = math.exp %227 : vector<48x48xf32>
    %cst_91 = arith.constant dense<0.000000e+00> : vector<48xf32>
    %229 = vector.multi_reduction <add>, %228, %cst_91 [1] : vector<48x48xf32> to vector<48xf32>
    %230 = vector.shape_cast %229 : vector<48xf32> to vector<48x1xf32>
    %231 = tpu.reciprocal %230 {approx = true} : vector<48x1xf32> -> vector<48x1xf32>
    %232 = vector.broadcast %231 : vector<48x1xf32> to vector<48x48xf32>
    %233 = arith.mulf %228, %232 : vector<48x48xf32>
    %234 = arith.truncf %233 : vector<48x48xf32> to vector<48x48xbf16>
    %cst_92 = arith.constant dense<0.000000e+00> : vector<48x16xf32>
    %235 = tpu.matmul %234, %221, %cst_92 {dimension_numbers = #tpu.dot_dimension_numbers<[1], [0], [0], [1], [0, 0, 1, 1], [], []>} : vector<48x48xbf16>, vector<48x16xbf16>, vector<48x16xf32> -> vector<48x16xf32>
    %236 = vector.extract_strided_slice %215 {offsets = [0, 16], sizes = [48, 16], strides = [1, 1]} : vector<48x192xf32> to vector<48x16xf32>
    %237 = arith.truncf %236 : vector<48x16xf32> to vector<48x16xbf16>
    %238 = vector.extract_strided_slice %215 {offsets = [0, 80], sizes = [48, 16], strides = [1, 1]} : vector<48x192xf32> to vector<48x16xf32>
    %239 = arith.truncf %238 : vector<48x16xf32> to vector<48x16xbf16>
    %240 = vector.extract_strided_slice %215 {offsets = [0, 144], sizes = [48, 16], strides = [1, 1]} : vector<48x192xf32> to vector<48x16xf32>
    %241 = arith.truncf %240 : vector<48x16xf32> to vector<48x16xbf16>
    %cst_93 = arith.constant dense<0.000000e+00> : vector<48x48xf32>
    %242 = tpu.matmul %237, %239, %cst_93 {dimension_numbers = #tpu.dot_dimension_numbers<[1], [1], [0], [0], [0, 0, 1, 0], [], []>} : vector<48x16xbf16>, vector<48x16xbf16>, vector<48x48xf32> -> vector<48x48xf32>
    %243 = arith.addf %242, %1 : vector<48x48xf32>
    %cst_94 = arith.constant dense<0xFF800000> : vector<48xf32>
    %244 = vector.multi_reduction <maximumf>, %243, %cst_94 [1] : vector<48x48xf32> to vector<48xf32>
    %245 = vector.shape_cast %244 : vector<48xf32> to vector<48x1xf32>
    %246 = vector.broadcast %245 : vector<48x1xf32> to vector<48x48xf32>
    %247 = arith.subf %243, %246 : vector<48x48xf32>
    %248 = math.exp %247 : vector<48x48xf32>
    %cst_95 = arith.constant dense<0.000000e+00> : vector<48xf32>
    %249 = vector.multi_reduction <add>, %248, %cst_95 [1] : vector<48x48xf32> to vector<48xf32>
    %250 = vector.shape_cast %249 : vector<48xf32> to vector<48x1xf32>
    %251 = tpu.reciprocal %250 {approx = true} : vector<48x1xf32> -> vector<48x1xf32>
    %252 = vector.broadcast %251 : vector<48x1xf32> to vector<48x48xf32>
    %253 = arith.mulf %248, %252 : vector<48x48xf32>
    %254 = arith.truncf %253 : vector<48x48xf32> to vector<48x48xbf16>
    %cst_96 = arith.constant dense<0.000000e+00> : vector<48x16xf32>
    %255 = tpu.matmul %254, %241, %cst_96 {dimension_numbers = #tpu.dot_dimension_numbers<[1], [0], [0], [1], [0, 0, 1, 1], [], []>} : vector<48x48xbf16>, vector<48x16xbf16>, vector<48x16xf32> -> vector<48x16xf32>
    %256 = vector.extract_strided_slice %215 {offsets = [0, 32], sizes = [48, 16], strides = [1, 1]} : vector<48x192xf32> to vector<48x16xf32>
    %257 = arith.truncf %256 : vector<48x16xf32> to vector<48x16xbf16>
    %258 = vector.extract_strided_slice %215 {offsets = [0, 96], sizes = [48, 16], strides = [1, 1]} : vector<48x192xf32> to vector<48x16xf32>
    %259 = arith.truncf %258 : vector<48x16xf32> to vector<48x16xbf16>
    %260 = vector.extract_strided_slice %215 {offsets = [0, 160], sizes = [48, 16], strides = [1, 1]} : vector<48x192xf32> to vector<48x16xf32>
    %261 = arith.truncf %260 : vector<48x16xf32> to vector<48x16xbf16>
    %cst_97 = arith.constant dense<0.000000e+00> : vector<48x48xf32>
    %262 = tpu.matmul %257, %259, %cst_97 {dimension_numbers = #tpu.dot_dimension_numbers<[1], [1], [0], [0], [0, 0, 1, 0], [], []>} : vector<48x16xbf16>, vector<48x16xbf16>, vector<48x48xf32> -> vector<48x48xf32>
    %263 = arith.addf %262, %1 : vector<48x48xf32>
    %cst_98 = arith.constant dense<0xFF800000> : vector<48xf32>
    %264 = vector.multi_reduction <maximumf>, %263, %cst_98 [1] : vector<48x48xf32> to vector<48xf32>
    %265 = vector.shape_cast %264 : vector<48xf32> to vector<48x1xf32>
    %266 = vector.broadcast %265 : vector<48x1xf32> to vector<48x48xf32>
    %267 = arith.subf %263, %266 : vector<48x48xf32>
    %268 = math.exp %267 : vector<48x48xf32>
    %cst_99 = arith.constant dense<0.000000e+00> : vector<48xf32>
    %269 = vector.multi_reduction <add>, %268, %cst_99 [1] : vector<48x48xf32> to vector<48xf32>
    %270 = vector.shape_cast %269 : vector<48xf32> to vector<48x1xf32>
    %271 = tpu.reciprocal %270 {approx = true} : vector<48x1xf32> -> vector<48x1xf32>
    %272 = vector.broadcast %271 : vector<48x1xf32> to vector<48x48xf32>
    %273 = arith.mulf %268, %272 : vector<48x48xf32>
    %274 = arith.truncf %273 : vector<48x48xf32> to vector<48x48xbf16>
    %cst_100 = arith.constant dense<0.000000e+00> : vector<48x16xf32>
    %275 = tpu.matmul %274, %261, %cst_100 {dimension_numbers = #tpu.dot_dimension_numbers<[1], [0], [0], [1], [0, 0, 1, 1], [], []>} : vector<48x48xbf16>, vector<48x16xbf16>, vector<48x16xf32> -> vector<48x16xf32>
    %276 = vector.extract_strided_slice %215 {offsets = [0, 48], sizes = [48, 16], strides = [1, 1]} : vector<48x192xf32> to vector<48x16xf32>
    %277 = arith.truncf %276 : vector<48x16xf32> to vector<48x16xbf16>
    %278 = vector.extract_strided_slice %215 {offsets = [0, 112], sizes = [48, 16], strides = [1, 1]} : vector<48x192xf32> to vector<48x16xf32>
    %279 = arith.truncf %278 : vector<48x16xf32> to vector<48x16xbf16>
    %280 = vector.extract_strided_slice %215 {offsets = [0, 176], sizes = [48, 16], strides = [1, 1]} : vector<48x192xf32> to vector<48x16xf32>
    %281 = arith.truncf %280 : vector<48x16xf32> to vector<48x16xbf16>
    %cst_101 = arith.constant dense<0.000000e+00> : vector<48x48xf32>
    %282 = tpu.matmul %277, %279, %cst_101 {dimension_numbers = #tpu.dot_dimension_numbers<[1], [1], [0], [0], [0, 0, 1, 0], [], []>} : vector<48x16xbf16>, vector<48x16xbf16>, vector<48x48xf32> -> vector<48x48xf32>
    %283 = arith.addf %282, %1 : vector<48x48xf32>
    %cst_102 = arith.constant dense<0xFF800000> : vector<48xf32>
    %284 = vector.multi_reduction <maximumf>, %283, %cst_102 [1] : vector<48x48xf32> to vector<48xf32>
    %285 = vector.shape_cast %284 : vector<48xf32> to vector<48x1xf32>
    %286 = vector.broadcast %285 : vector<48x1xf32> to vector<48x48xf32>
    %287 = arith.subf %283, %286 : vector<48x48xf32>
    %288 = math.exp %287 : vector<48x48xf32>
    %cst_103 = arith.constant dense<0.000000e+00> : vector<48xf32>
    %289 = vector.multi_reduction <add>, %288, %cst_103 [1] : vector<48x48xf32> to vector<48xf32>
    %290 = vector.shape_cast %289 : vector<48xf32> to vector<48x1xf32>
    %291 = tpu.reciprocal %290 {approx = true} : vector<48x1xf32> -> vector<48x1xf32>
    %292 = vector.broadcast %291 : vector<48x1xf32> to vector<48x48xf32>
    %293 = arith.mulf %288, %292 : vector<48x48xf32>
    %294 = arith.truncf %293 : vector<48x48xf32> to vector<48x48xbf16>
    %cst_104 = arith.constant dense<0.000000e+00> : vector<48x16xf32>
    %295 = tpu.matmul %294, %281, %cst_104 {dimension_numbers = #tpu.dot_dimension_numbers<[1], [0], [0], [1], [0, 0, 1, 1], [], []>} : vector<48x48xbf16>, vector<48x16xbf16>, vector<48x16xf32> -> vector<48x16xf32>
    %296 = tpu.concatenate %235, %255, %275, %295 in 1 : vector<48x16xf32>, vector<48x16xf32>, vector<48x16xf32>, vector<48x16xf32> -> vector<48x64xf32>
    %c1_105 = arith.constant 1 : index
    %c0_106 = arith.constant 0 : index
    %c0_107 = arith.constant 0 : index
    %297 = vector.load %arg8[%c1_105, %c0_106, %c0_107] : memref<2x64x64xbf16, #tpu.memory_space<vmem>>, vector<1x64x64xbf16>
    %298 = vector.shape_cast %297 : vector<1x64x64xbf16> to vector<64x64xbf16>
    %299 = arith.truncf %296 : vector<48x64xf32> to vector<48x64xbf16>
    %cst_108 = arith.constant dense<0.000000e+00> : vector<48x64xf32>
    %300 = tpu.matmul %299, %298, %cst_108 {dimension_numbers = #tpu.dot_dimension_numbers<[1], [0], [0], [1], [0, 0, 1, 1], [], []>} : vector<48x64xbf16>, vector<64x64xbf16>, vector<48x64xf32> -> vector<48x64xf32>
    %301 = arith.addf %181, %300 : vector<48x64xf32>
    %c1_109 = arith.constant 1 : index
    %c0_110 = arith.constant 0 : index
    %c0_111 = arith.constant 0 : index
    %302 = vector.load %arg9[%c1_109, %c0_110, %c0_111] : memref<2x1x64xf32, #tpu.memory_space<vmem>>, vector<1x1x64xf32>
    %303 = vector.shape_cast %302 : vector<1x1x64xf32> to vector<1x64xf32>
    %304 = vector.broadcast %303 : vector<1x64xf32> to vector<48x64xf32>
    %305 = arith.addf %301, %304 : vector<48x64xf32>
    %c1_112 = arith.constant 1 : index
    %c0_113 = arith.constant 0 : index
    %c0_114 = arith.constant 0 : index
    %306 = vector.load %arg10[%c1_112, %c0_113, %c0_114] : memref<2x1x64xf32, #tpu.memory_space<vmem>>, vector<1x1x64xf32>
    %307 = vector.shape_cast %306 : vector<1x1x64xf32> to vector<1x64xf32>
    %c1_115 = arith.constant 1 : index
    %c0_116 = arith.constant 0 : index
    %c0_117 = arith.constant 0 : index
    %308 = vector.load %arg11[%c1_115, %c0_116, %c0_117] : memref<2x1x64xf32, #tpu.memory_space<vmem>>, vector<1x1x64xf32>
    %309 = vector.shape_cast %308 : vector<1x1x64xf32> to vector<1x64xf32>
    %cst_118 = arith.constant dense<0.000000e+00> : vector<48xf32>
    %310 = vector.multi_reduction <add>, %305, %cst_118 [1] : vector<48x64xf32> to vector<48xf32>
    %311 = vector.shape_cast %310 : vector<48xf32> to vector<48x1xf32>
    %cst_119 = arith.constant 6.400000e+01 : f32
    %312 = vector.broadcast %cst_119 : f32 to vector<48x1xf32>
    %313 = arith.divf %311, %312 : vector<48x1xf32>
    %314 = vector.broadcast %313 : vector<48x1xf32> to vector<48x64xf32>
    %315 = arith.subf %305, %314 : vector<48x64xf32>
    %316 = arith.mulf %315, %315 : vector<48x64xf32>
    %cst_120 = arith.constant dense<0.000000e+00> : vector<48xf32>
    %317 = vector.multi_reduction <add>, %316, %cst_120 [1] : vector<48x64xf32> to vector<48xf32>
    %318 = vector.shape_cast %317 : vector<48xf32> to vector<48x1xf32>
    %cst_121 = arith.constant 6.400000e+01 : f32
    %319 = vector.broadcast %cst_121 : f32 to vector<48x1xf32>
    %320 = arith.divf %318, %319 : vector<48x1xf32>
    %321 = vector.broadcast %313 : vector<48x1xf32> to vector<48x64xf32>
    %322 = arith.subf %305, %321 : vector<48x64xf32>
    %cst_122 = arith.constant 9.99999974E-6 : f32
    %323 = vector.broadcast %cst_122 : f32 to vector<48x1xf32>
    %324 = arith.addf %320, %323 : vector<48x1xf32>
    %325 = math.rsqrt %324 : vector<48x1xf32>
    %326 = vector.broadcast %325 : vector<48x1xf32> to vector<48x64xf32>
    %327 = arith.mulf %322, %326 : vector<48x64xf32>
    %328 = vector.broadcast %307 : vector<1x64xf32> to vector<48x64xf32>
    %329 = arith.mulf %327, %328 : vector<48x64xf32>
    %330 = vector.broadcast %309 : vector<1x64xf32> to vector<48x64xf32>
    %331 = arith.addf %329, %330 : vector<48x64xf32>
    %c1_123 = arith.constant 1 : index
    %c0_124 = arith.constant 0 : index
    %c0_125 = arith.constant 0 : index
    %332 = vector.load %arg12[%c1_123, %c0_124, %c0_125] : memref<2x64x128xbf16, #tpu.memory_space<vmem>>, vector<1x64x128xbf16>
    %333 = vector.shape_cast %332 : vector<1x64x128xbf16> to vector<64x128xbf16>
    %334 = arith.truncf %331 : vector<48x64xf32> to vector<48x64xbf16>
    %cst_126 = arith.constant dense<0.000000e+00> : vector<48x128xf32>
    %335 = tpu.matmul %334, %333, %cst_126 {dimension_numbers = #tpu.dot_dimension_numbers<[1], [0], [0], [1], [0, 0, 1, 1], [], []>} : vector<48x64xbf16>, vector<64x128xbf16>, vector<48x128xf32> -> vector<48x128xf32>
    %c1_127 = arith.constant 1 : index
    %c0_128 = arith.constant 0 : index
    %c0_129 = arith.constant 0 : index
    %336 = vector.load %arg13[%c1_127, %c0_128, %c0_129] : memref<2x1x128xf32, #tpu.memory_space<vmem>>, vector<1x1x128xf32>
    %337 = vector.shape_cast %336 : vector<1x1x128xf32> to vector<1x128xf32>
    %338 = vector.broadcast %337 : vector<1x128xf32> to vector<48x128xf32>
    %339 = arith.addf %335, %338 : vector<48x128xf32>
    %cst_130 = arith.constant 5.000000e-01 : f32
    %340 = vector.broadcast %cst_130 : f32 to vector<48x128xf32>
    %341 = arith.mulf %340, %339 : vector<48x128xf32>
    %cst_131 = arith.constant 4.471500e-02 : f32
    %342 = vector.broadcast %cst_131 : f32 to vector<48x128xf32>
    %343 = arith.mulf %342, %339 : vector<48x128xf32>
    %344 = arith.mulf %343, %339 : vector<48x128xf32>
    %345 = arith.mulf %344, %339 : vector<48x128xf32>
    %346 = arith.addf %339, %345 : vector<48x128xf32>
    %cst_132 = arith.constant 0.797884583 : f32
    %347 = vector.broadcast %cst_132 : f32 to vector<48x128xf32>
    %348 = arith.mulf %347, %346 : vector<48x128xf32>
    %349 = math.tanh %348 : vector<48x128xf32>
    %cst_133 = arith.constant 1.000000e+00 : f32
    %350 = vector.broadcast %cst_133 : f32 to vector<48x128xf32>
    %351 = arith.addf %350, %349 : vector<48x128xf32>
    %352 = arith.mulf %341, %351 : vector<48x128xf32>
    %c1_134 = arith.constant 1 : index
    %c0_135 = arith.constant 0 : index
    %c0_136 = arith.constant 0 : index
    %353 = vector.load %arg14[%c1_134, %c0_135, %c0_136] : memref<2x128x64xbf16, #tpu.memory_space<vmem>>, vector<1x128x64xbf16>
    %354 = vector.shape_cast %353 : vector<1x128x64xbf16> to vector<128x64xbf16>
    %355 = arith.truncf %352 : vector<48x128xf32> to vector<48x128xbf16>
    %cst_137 = arith.constant dense<0.000000e+00> : vector<48x64xf32>
    %356 = tpu.matmul %355, %354, %cst_137 {dimension_numbers = #tpu.dot_dimension_numbers<[1], [0], [0], [1], [0, 0, 1, 1], [], []>} : vector<48x128xbf16>, vector<128x64xbf16>, vector<48x64xf32> -> vector<48x64xf32>
    %c1_138 = arith.constant 1 : index
    %c0_139 = arith.constant 0 : index
    %c0_140 = arith.constant 0 : index
    %357 = vector.load %arg15[%c1_138, %c0_139, %c0_140] : memref<2x1x64xf32, #tpu.memory_space<vmem>>, vector<1x1x64xf32>
    %358 = vector.shape_cast %357 : vector<1x1x64xf32> to vector<1x64xf32>
    %359 = vector.broadcast %358 : vector<1x64xf32> to vector<48x64xf32>
    %360 = arith.addf %356, %359 : vector<48x64xf32>
    %361 = arith.addf %305, %360 : vector<48x64xf32>
    %c0_141 = arith.constant 0 : index
    %c0_142 = arith.constant 0 : index
    %362 = vector.load %arg2[%c0_141, %c0_142] : memref<64x64xbf16, #tpu.memory_space<vmem>>, vector<64x64xbf16>
    %363 = arith.truncf %361 : vector<48x64xf32> to vector<48x64xbf16>
    %cst_143 = arith.constant dense<0.000000e+00> : vector<48x64xf32>
    %364 = tpu.matmul %363, %362, %cst_143 {dimension_numbers = #tpu.dot_dimension_numbers<[1], [0], [0], [1], [0, 0, 1, 1], [], []>} : vector<48x64xbf16>, vector<64x64xbf16>, vector<48x64xf32> -> vector<48x64xf32>
    %c0_144 = arith.constant 0 : index
    %c0_145 = arith.constant 0 : index
    %365 = vector.load %arg3[%c0_144, %c0_145] : memref<1x64xf32, #tpu.memory_space<vmem>>, vector<1x64xf32>
    %366 = vector.broadcast %365 : vector<1x64xf32> to vector<48x64xf32>
    %367 = arith.addf %364, %366 : vector<48x64xf32>
    %c0_146 = arith.constant 0 : index
    %c0_147 = arith.constant 0 : index
    %368 = vector.load %arg16[%c0_146, %c0_147] : memref<48x64xf32, #tpu.memory_space<vmem>>, vector<48x64xf32>
    tpu.vector_store %arg16[%c0_146, %c0_147], %367 {strides = array<i32>} : memref<48x64xf32, #tpu.memory_space<vmem>>, vector<48x64xf32>,
    return
  }
}

</mosaic_0001>

<llo_original>
// kernel: vit_mae_forward.2
$region0: #{vit_mae_forward.2}
  #allocation0 [shape = 'u32[]', space=smem, size = 0x4, offset = 0x4, fixed_abs, tag = 'smem constant byte address 0x4 - core index']
  #allocation1 [shape = 'u32[72,128]{1,0:T(1,128)}', space=vmem, size = 0x9000, scoped, tag = 'internal scratch']
  %s0 = inlined_call_operand.vmem [shape: f32[32,64], index: 0, kind: input, shape index: {}, may-alias: {0,16}]
  %s1 = inlined_call_operand.vmem [shape: f32[32,32], index: 1, kind: input, shape index: {}]
  %s2 = inlined_call_operand.vmem [shape: bf16[64,64], index: 2, kind: input, shape index: {}]
  %s3 = inlined_call_operand.vmem [shape: f32[1,64], index: 3, kind: input, shape index: {}]
  %s4 = inlined_call_operand.vmem [shape: f32[2,1,64], index: 4, kind: input, shape index: {}]
  %s5 = inlined_call_operand.vmem [shape: f32[2,1,64], index: 5, kind: input, shape index: {}]
  %s6 = inlined_call_operand.vmem [shape: bf16[2,64,192], index: 6, kind: input, shape index: {}]
  %s7 = inlined_call_operand.vmem [shape: f32[2,1,192], index: 7, kind: input, shape index: {}]
  %s8 = inlined_call_operand.vmem [shape: bf16[2,64,64], index: 8, kind: input, shape index: {}]
  %s9 = inlined_call_operand.vmem [shape: f32[2,1,64], index: 9, kind: input, shape index: {}]
  %s10 = inlined_call_operand.vmem [shape: f32[2,1,64], index: 10, kind: input, shape index: {}]
  %s11 = inlined_call_operand.vmem [shape: f32[2,1,64], index: 11, kind: input, shape index: {}]
  %s12 = inlined_call_operand.vmem [shape: bf16[2,64,128], index: 12, kind: input, shape index: {}]
  %s13 = inlined_call_operand.vmem [shape: f32[2,1,128], index: 13, kind: input, shape index: {}]
  %s14 = inlined_call_operand.vmem [shape: bf16[2,128,64], index: 14, kind: input, shape index: {}]
  %s15 = inlined_call_operand.vmem [shape: f32[2,1,64], index: 15, kind: input, shape index: {}]
  %s16 = inlined_call_operand.vmem [shape: f32[32,64], index: 16, kind: output, shape index: {}, may-alias: {0,16}]
  %s17 = sld [smem:[#allocation0]]
  $region74: #{vit_mae_forward.2} parent=0
    _
  %s19 = ssub.s32 1, %s17
  %s20 = scalar_select 0, %s19, %s17
  // Predicated region
  $region2: #{vit_mae_forward.2} parent=0 // pred_check
    _
  $region3: #{vit_mae_forward.2} parent=0 // pred_check_branch
    %22 = sbr.rel (0) target = $region5
  $region4: #{vit_mae_forward.2} parent=0 // pred_region
    _
  $region5: #{vit_mae_forward.2} parent=0 // pred_fallthru
    _
  // Predicated region
  $region6: #{vit_mae_forward.2} parent=0 // pred_check
    _
  $region7: #{vit_mae_forward.2} parent=0 // pred_check_branch
    %24 = sbr.rel (0) target = $region9
  $region8: #{vit_mae_forward.2} parent=0 // pred_region
    _
  $region9: #{vit_mae_forward.2} parent=0 // pred_fallthru
    _
  // Predicated region
  $region10: #{vit_mae_forward.2} parent=0 // pred_check
    _
  $region11: #{vit_mae_forward.2} parent=0 // pred_check_branch
    %26 = sbr.rel (0) target = $region13
  $region12: #{vit_mae_forward.2} parent=0 // pred_region
    _
  $region13: #{vit_mae_forward.2} parent=0 // pred_fallthru
    _
  // Predicated region
  $region14: #{vit_mae_forward.2} parent=0 // pred_check
    _
  $region15: #{vit_mae_forward.2} parent=0 // pred_check_branch
    %28 = sbr.rel (0) target = $region17
  $region16: #{vit_mae_forward.2} parent=0 // pred_region
    _
  $region17: #{vit_mae_forward.2} parent=0 // pred_fallthru
    _
  // Predicated region
  $region18: #{vit_mae_forward.2} parent=0 // pred_check
    _
  $region19: #{vit_mae_forward.2} parent=0 // pred_check_branch
    %30 = sbr.rel (0) target = $region21
  $region20: #{vit_mae_forward.2} parent=0 // pred_region
    _
  $region21: #{vit_mae_forward.2} parent=0 // pred_fallthru
    _
  // Predicated region
  $region22: #{vit_mae_forward.2} parent=0 // pred_check
    _
  $region23: #{vit_mae_forward.2} parent=0 // pred_check_branch
    %32 = sbr.rel (0) target = $region25
  $region24: #{vit_mae_forward.2} parent=0 // pred_region
    _
  $region25: #{vit_mae_forward.2} parent=0 // pred_fallthru
    _
  // Predicated region
  $region26: #{vit_mae_forward.2} parent=0 // pred_check
    _
  $region27: #{vit_mae_forward.2} parent=0 // pred_check_branch
    %34 = sbr.rel (0) target = $region29
  $region28: #{vit_mae_forward.2} parent=0 // pred_region
    _
  $region29: #{vit_mae_forward.2} parent=0 // pred_fallthru
    _
  // Predicated region
  $region30: #{vit_mae_forward.2} parent=0 // pred_check
    _
  $region31: #{vit_mae_forward.2} parent=0 // pred_check_branch
    %36 = sbr.rel (0) target = $region33
  $region32: #{vit_mae_forward.2} parent=0 // pred_region
    _
  $region33: #{vit_mae_forward.2} parent=0 // pred_fallthru
    _
  // Predicated region
  $region34: #{vit_mae_forward.2} parent=0 // pred_check
    _
  $region35: #{vit_mae_forward.2} parent=0 // pred_check_branch
    %38 = sbr.rel (0) target = $region37
  $region36: #{vit_mae_forward.2} parent=0 // pred_region
    _
  $region37: #{vit_mae_forward.2} parent=0 // pred_fallthru
    _
  // Predicated region
  $region38: #{vit_mae_forward.2} parent=0 // pred_check
    _
  $region39: #{vit_mae_forward.2} parent=0 // pred_check_branch
    %40 = sbr.rel (0) target = $region41
  $region40: #{vit_mae_forward.2} parent=0 // pred_region
    _
  $region41: #{vit_mae_forward.2} parent=0 // pred_fallthru
    _
  // Predicated region
  $region42: #{vit_mae_forward.2} parent=0 // pred_check
    _
  $region43: #{vit_mae_forward.2} parent=0 // pred_check_branch
    %42 = sbr.rel (0) target = $region45
  $region44: #{vit_mae_forward.2} parent=0 // pred_region
    _
  $region45: #{vit_mae_forward.2} parent=0 // pred_fallthru
    _
  // Predicated region
  $region46: #{vit_mae_forward.2} parent=0 // pred_check
    _
  $region47: #{vit_mae_forward.2} parent=0 // pred_check_branch
    %44 = sbr.rel (0) target = $region49
  $region48: #{vit_mae_forward.2} parent=0 // pred_region
    _
  $region49: #{vit_mae_forward.2} parent=0 // pred_fallthru
    _
  // Predicated region
  $region50: #{vit_mae_forward.2} parent=0 // pred_check
    _
  $region51: #{vit_mae_forward.2} parent=0 // pred_check_branch
    %46 = sbr.rel (0) target = $region53
  $region52: #{vit_mae_forward.2} parent=0 // pred_region
    _
  $region53: #{vit_mae_forward.2} parent=0 // pred_fallthru
    _
  // Predicated region
  $region54: #{vit_mae_forward.2} parent=0 // pred_check
    _
  $region55: #{vit_mae_forward.2} parent=0 // pred_check_branch
    %48 = sbr.rel (0) target = $region57
  $region56: #{vit_mae_forward.2} parent=0 // pred_region
    _
  $region57: #{vit_mae_forward.2} parent=0 // pred_fallthru
    _
  // Predicated region
  $region58: #{vit_mae_forward.2} parent=0 // pred_check
    _
  $region59: #{vit_mae_forward.2} parent=0 // pred_check_branch
    %50 = sbr.rel (0) target = $region61
  $region60: #{vit_mae_forward.2} parent=0 // pred_region
    _
  $region61: #{vit_mae_forward.2} parent=0 // pred_fallthru
    _
  // Predicated region
  $region62: #{vit_mae_forward.2} parent=0 // pred_check
    _
  $region63: #{vit_mae_forward.2} parent=0 // pred_check_branch
    %52 = sbr.rel (0) target = $region65
  $region64: #{vit_mae_forward.2} parent=0 // pred_region
    _
  $region65: #{vit_mae_forward.2} parent=0 // pred_fallthru
    _
  %v54 = vld [vmem:[%s0] sm:$0xff]
  %v55 = vld [vmem:[%s0 + $0x8] sm:$0xff]
  %v56 = vld [vmem:[%s0 + $0x10] sm:$0xff]
  %v57 = vld [vmem:[%s0 + $0x18] sm:$0xff]
  %v58 = vld [vmem:[%s1] sm:$0xff]
  %v59 = vld [vmem:[%s1 + $0x8] sm:$0xff]
  %v60 = vld [vmem:[%s1 + $0x10] sm:$0xff]
  %v61 = vld [vmem:[%s1 + $0x18] sm:$0xff]
  %v62 = vld [vmem:[%s2] sm:$0xf]
  %v63 = vld [vmem:[%s2 + $0x4] sm:$0xf]
  %v64 = vld [vmem:[%s2 + $0x8] sm:$0xf]
  %v65 = vld [vmem:[%s2 + $0xc] sm:$0xf]
  %v66 = vld [vmem:[%s2 + $0x10] sm:$0xf]
  %v67 = vld [vmem:[%s2 + $0x14] sm:$0xf]
  %v68 = vld [vmem:[%s2 + $0x18] sm:$0xf]
  %v69 = vld [vmem:[%s2 + $0x1c] sm:$0xf]
  %v70 = vpack.c.bf16 %v55, %v54
  %v71 = vpack.c.bf16 %v57, %v56
  %v72 = vld [vmem:[%s3] sm:$0x1]
  %v74 = vperm.slane %v72, 0
  %v84 = vunpack.c.l.b16 %v62
  %v85 = vunpack.c.l.b16 %v63
  %v86 = vunpack.c.l.b16 %v64
  %v87 = vunpack.c.l.b16 %v65
  %v88 = vunpack.c.l.b16 %v66
  %v89 = vunpack.c.l.b16 %v67
  %v90 = vunpack.c.l.b16 %v68
  %v91 = vunpack.c.l.b16 %v69
  %v92 = vpack.c.b16 %v85, %v84
  %v93 = vpack.c.b16 %v87, %v86
  %v94 = vpack.c.b16 %v89, %v88
  %v95 = vpack.c.b16 %v91, %v90
  %vm100 = vcmask 523264
  %v102 = vsel %vm100, %v70, 0
  %v105 = vsel %vm100, %v71, 0
  %107 = vmatpush.bf16.msra.mxu0 0
  %108 = vmatpush.bf16.msra.mxu0 0
  %109 = vmatpush.bf16.msra.mxu0 0
  %110 = vmatpush.bf16.msra.mxu0 0
  %111 = vmatpush.bf16.msra.mxu0 %v95
  %112 = vmatpush.bf16.msra.mxu0 %v94
  %113 = vmatpush.bf16.msra.mxu0 %v93
  %114 = vmatpush.bf16.msra.mxu0 %v92
  %115 = vmatmul.bf16.gmra.mxu0 %v102
  %v116 = vpop.f32.mrf.mxu0
  %v117 = vadd.f32 %v74, %v116
  %v118 = vpop.f32.mrf.mxu0
  %v119 = vadd.f32 %v74, %v118
  %120 = vmatmul.bf16.gmra.mxu0 %v105
  %v121 = vpop.f32.mrf.mxu0
  %v122 = vadd.f32 %v74, %v121
  %v123 = vpop.f32.mrf.mxu0
  %v124 = vadd.f32 %v74, %v123
  %125 = vdwg.mxu0
  %v126 = vld [vmem:[%s4] sm:$0x1]
  %v127 = vld [vmem:[%s5] sm:$0x1]
  %v128 = vsel %vm100, %v117, 0.0
  %129 = vadd.xlane.f32.xlu0 %v128
  %v130 = vpop.xlane.xlu0 %129
  %v131 = vsel %vm100, %v119, 0.0
  %132 = vadd.xlane.f32.xlu0 %v131
  %v133 = vpop.xlane.xlu0 %132
  %v134 = vsel %vm100, %v122, 0.0
  %135 = vadd.xlane.f32.xlu0 %v134
  %v136 = vpop.xlane.xlu0 %135
  %v137 = vsel %vm100, %v124, 0.0
  %138 = vadd.xlane.f32.xlu0 %v137
  %v139 = vpop.xlane.xlu0 %138
  %v140 = vrcp.pop 64.0
  %v141 = vmul.f32 64.0, %v140
  %v142 = vsub.f32 1.0, %v141
  %v143 = vmul.f32 %v140, %v142
  %v144 = vadd.f32 %v140, %v143
  %vm145 = vweird.f32 %v140
  %v146 = vsel %vm145, %v140, %v144
  %v147 = vmul.f32 %v130, %v146
  %v148 = vmul.f32 %v133, %v146
  %v149 = vmul.f32 %v136, %v146
  %v150 = vmul.f32 %v139, %v146
  %v151 = vsub.f32 %v117, %v147
  %v152 = vsub.f32 %v119, %v148
  %v153 = vsub.f32 %v122, %v149
  %v154 = vsub.f32 %v124, %v150
  %v155 = vmul.f32 %v151, %v151
  %v156 = vmul.f32 %v152, %v152
  %v157 = vmul.f32 %v153, %v153
  %v158 = vmul.f32 %v154, %v154
  %v159 = vsel %vm100, %v155, 0.0
  %160 = vadd.xlane.f32.xlu0 %v159
  %v161 = vpop.xlane.xlu0 %160
  %v162 = vsel %vm100, %v156, 0.0
  %163 = vadd.xlane.f32.xlu0 %v162
  %v164 = vpop.xlane.xlu0 %163
  %v165 = vsel %vm100, %v157, 0.0
  %166 = vadd.xlane.f32.xlu0 %v165
  %v167 = vpop.xlane.xlu0 %166
  %v168 = vsel %vm100, %v158, 0.0
  %169 = vadd.xlane.f32.xlu0 %v168
  %v170 = vpop.xlane.xlu0 %169
  %v171 = vmul.f32 %v161, %v146
  %v172 = vmul.f32 %v164, %v146
  %v173 = vmul.f32 %v167, %v146
  %v174 = vmul.f32 %v170, %v146
  %v175 = vadd.f32 %v171, 1e-05
  %v176 = vadd.f32 %v172, 1e-05
  %v177 = vadd.f32 %v173, 1e-05
  %v178 = vadd.f32 %v174, 1e-05
  %v179 = vrsqrt.pop %v175
  %v180 = vmul.f32 %v179, %v175
  %v181 = vmul.f32 %v180, %v179
  %v182 = vmul.f32 0.5, %v181
  %v183 = vsub.f32 1.5, %v182
  %v184 = vmul.f32 %v179, %v183
  %vm185 = vweird.f32 %v175
  %vm186 = vweird.f32 %v179
  %vm187 = vmor %vm185, %vm186
  %v188 = vsel %vm187, %v179, %v184
  %v189 = vrsqrt.pop %v176
  %v190 = vmul.f32 %v189, %v176
  %v191 = vmul.f32 %v190, %v189
  %v192 = vmul.f32 0.5, %v191
  %v193 = vsub.f32 1.5, %v192
  %v194 = vmul.f32 %v189, %v193
  %vm195 = vweird.f32 %v176
  %vm196 = vweird.f32 %v189
  %vm197 = vmor %vm195, %vm196
  %v198 = vsel %vm197, %v189, %v194
  %v199 = vrsqrt.pop %v177
  %v200 = vmul.f32 %v199, %v177
  %v201 = vmul.f32 %v200, %v199
  %v202 = vmul.f32 0.5, %v201
  %v203 = vsub.f32 1.5, %v202
  %v204 = vmul.f32 %v199, %v203
  %vm205 = vweird.f32 %v177
  %vm206 = vweird.f32 %v199
  %vm207 = vmor %vm205, %vm206
  %v208 = vsel %vm207, %v199, %v204
  %v209 = vrsqrt.pop %v178
  %v210 = vmul.f32 %v209, %v178
  %v211 = vmul.f32 %v210, %v209
  %v212 = vmul.f32 0.5, %v211
  %v213 = vsub.f32 1.5, %v212
  %v214 = vmul.f32 %v209, %v213
  %vm215 = vweird.f32 %v178
  %vm216 = vweird.f32 %v209
  %vm217 = vmor %vm215, %vm216
  %v218 = vsel %vm217, %v209, %v214
  %v219 = vmul.f32 %v151, %v188
  %v220 = vmul.f32 %v152, %v198
  %v221 = vmul.f32 %v153, %v208
  %v222 = vmul.f32 %v154, %v218
  %v224 = vperm.slane %v126, 0
  %v226 = vmul.f32 %v219, %v224
  %v227 = vmul.f32 %v220, %v224
  %v228 = vmul.f32 %v221, %v224
  %v229 = vmul.f32 %v222, %v224
  %v231 = vperm.slane %v127, 0
  %v233 = vadd.f32 %v226, %v231
  %v234 = vadd.f32 %v227, %v231
  %v235 = vadd.f32 %v228, %v231
  %v236 = vadd.f32 %v229, %v231
  %v237 = vld [vmem:[%s6] sm:$0xff]
  %v238 = vld [vmem:[%s6 + $0x8] sm:$0xff]
  %v239 = vld [vmem:[%s6 + $0x10] sm:$0xff]
  %v240 = vld [vmem:[%s6 + $0x18] sm:$0xff]
  %v241 = vld [vmem:[%s6 + $0x20] sm:$0xff]
  %v242 = vld [vmem:[%s6 + $0x28] sm:$0xff]
  %v243 = vld [vmem:[%s6 + $0x30] sm:$0xff]
  %v244 = vld [vmem:[%s6 + $0x38] sm:$0xff]
  %v245 = vpack.c.bf16 %v234, %v233
  %v246 = vpack.c.bf16 %v236, %v235
  %v247 = vld [vmem:[%s7] sm:$0x3]
  %v249 = vperm.slane %v247, 0
  %v250 = vperm.slane %v247, 1
  %v261 = vunpack.c.l.b16 %v237
  %v262 = vunpack.c.h.b16 %v237
  %v263 = vunpack.c.l.b16 %v238
  %v264 = vunpack.c.h.b16 %v238
  %v265 = vunpack.c.l.b16 %v239
  %v266 = vunpack.c.h.b16 %v239
  %v267 = vunpack.c.l.b16 %v240
  %v268 = vunpack.c.h.b16 %v240
  %v269 = vunpack.c.l.b16 %v241
  %v270 = vunpack.c.h.b16 %v241
  %v271 = vunpack.c.l.b16 %v242
  %v272 = vunpack.c.h.b16 %v242
  %v273 = vunpack.c.l.b16 %v243
  %v274 = vunpack.c.h.b16 %v243
  %v275 = vunpack.c.l.b16 %v244
  %v276 = vunpack.c.h.b16 %v244
  %v277 = vpack.c.b16 %v263, %v261
  %v278 = vpack.c.b16 %v264, %v262
  %v279 = vpack.c.b16 %v267, %v265
  %v280 = vpack.c.b16 %v268, %v266
  %v281 = vpack.c.b16 %v271, %v269
  %v282 = vpack.c.b16 %v272, %v270
  %v283 = vpack.c.b16 %v275, %v273
  %v284 = vpack.c.b16 %v276, %v274
  %v294 = vsel %vm100, %v245, 0
  %v297 = vsel %vm100, %v246, 0
  %299 = vmatpush.bf16.msra.mxu0 0
  %300 = vmatpush.bf16.msra.mxu0 0
  %301 = vmatpush.bf16.msra.mxu0 0
  %302 = vmatpush.bf16.msra.mxu0 0
  %303 = vmatpush.bf16.msra.mxu0 %v283
  %304 = vmatpush.bf16.msra.mxu0 %v281
  %305 = vmatpush.bf16.msra.mxu0 %v279
  %306 = vmatpush.bf16.msra.mxu0 %v277
  %307 = vmatmul.bf16.gmra.mxu0 %v294
  %v308 = vpop.f32.mrf.mxu0
  %v309 = vadd.f32 %v249, %v308
  %v310 = vpop.f32.mrf.mxu0
  %v311 = vadd.f32 %v249, %v310
  %312 = vmatmul.bf16.gmra.mxu0 %v297
  %v313 = vpop.f32.mrf.mxu0
  %v314 = vadd.f32 %v249, %v313
  %v315 = vpop.f32.mrf.mxu0
  %v316 = vadd.f32 %v249, %v315
  %317 = vdwg.mxu0
  %318 = vmatpush.bf16.msra.mxu0 0
  %319 = vmatpush.bf16.msra.mxu0 0
  %320 = vmatpush.bf16.msra.mxu0 0
  %321 = vmatpush.bf16.msra.mxu0 0
  %322 = vmatpush.bf16.msra.mxu0 %v284
  %323 = vmatpush.bf16.msra.mxu0 %v282
  %324 = vmatpush.bf16.msra.mxu0 %v280
  %325 = vmatpush.bf16.msra.mxu0 %v278
  %326 = vmatmul.bf16.gmra.mxu0 %v294
  %v327 = vpop.f32.mrf.mxu0
  %v328 = vadd.f32 %v250, %v327
  %v329 = vpop.f32.mrf.mxu0
  %v330 = vadd.f32 %v250, %v329
  %331 = vmatmul.bf16.gmra.mxu0 %v297
  %v332 = vpop.f32.mrf.mxu0
  %v333 = vadd.f32 %v250, %v332
  %v334 = vpop.f32.mrf.mxu0
  %v335 = vadd.f32 %v250, %v334
  %336 = vdwg.mxu0
  %v337 = vpack.c.bf16 %v311, %v309
  %v338 = vpack.c.bf16 %v316, %v314
  %v339 = vpack.c.bf16 %v330, %v328
  %v340 = vpack.c.bf16 %v335, %v333
  %343 = vrot.lane.b32.xlu0 %v337, 64
  %v344 = vpop.permute.xlu0 %343
  %345 = vrot.lane.b32.xlu0 %v338, 64
  %v346 = vpop.permute.xlu0 %345
  %vm347 = vcmask 130048
  %v349 = vsel %vm347, %v337, 0
  %v352 = vsel %vm347, %v338, 0
  %v355 = vsel %vm347, %v344, 0
  %v358 = vsel %vm347, %v346, 0
  %360 = vmatpush.bf16.xpose.msra.mxu0 0
  %361 = vmatpush.bf16.xpose.msra.mxu0 0
  %362 = vmatpush.bf16.xpose.msra.mxu0 0
  %363 = vmatpush.bf16.xpose.msra.mxu0 0
  %364 = vmatpush.bf16.xpose.msra.mxu0 0
  %365 = vmatpush.bf16.xpose.msra.mxu0 0
  %366 = vmatpush.bf16.xpose.msra.mxu0 %v358
  %367 = vmatpush.bf16.xpose.msra.mxu0 %v355
  %368 = vmatmul.bf16.gmra.mxu0 %v349
  %v369 = vpop.f32.mrf.mxu0
  %v370 = vadd.f32 %v58, %v369
  %v371 = vpop.f32.mrf.mxu0
  %v372 = vadd.f32 %v59, %v371
  %373 = vmatmul.bf16.gmra.mxu0 %v352
  %v374 = vpop.f32.mrf.mxu0
  %v375 = vadd.f32 %v60, %v374
  %v376 = vpop.f32.mrf.mxu0
  %v377 = vadd.f32 %v61, %v376
  %378 = vdwg.mxu0
  %vm379 = vcmask 261120
  %v380 = vsel %vm379, %v370, -inf
  %381 = vmax.xlane.f32.xlu0 %v380
  %v382 = vpop.xlane.xlu0 %381
  %v383 = vsel %vm379, %v372, -inf
  %384 = vmax.xlane.f32.xlu0 %v383
  %v385 = vpop.xlane.xlu0 %384
  %v386 = vsel %vm379, %v375, -inf
  %387 = vmax.xlane.f32.xlu0 %v386
  %v388 = vpop.xlane.xlu0 %387
  %v389 = vsel %vm379, %v377, -inf
  %390 = vmax.xlane.f32.xlu0 %v389
  %v391 = vpop.xlane.xlu0 %390
  %v392 = vsub.f32 %v370, %v382
  %v393 = vsub.f32 %v372, %v385
  %v394 = vsub.f32 %v375, %v388
  %v395 = vsub.f32 %v377, %v391
  %v396 = vmul.f32 %v392, 1.442695
  %v397 = vpow.pop %v396
  %v398 = vmul.f32 %v393, 1.442695
  %v399 = vpow.pop %v398
  %v400 = vmul.f32 %v394, 1.442695
  %v401 = vpow.pop %v400
  %v402 = vmul.f32 %v395, 1.442695
  %v403 = vpow.pop %v402
  %v404 = vsel %vm379, %v397, 0.0
  %405 = vadd.xlane.f32.xlu0 %v404
  %v406 = vpop.xlane.xlu0 %405
  %v407 = vsel %vm379, %v399, 0.0
  %408 = vadd.xlane.f32.xlu0 %v407
  %v409 = vpop.xlane.xlu0 %408
  %v410 = vsel %vm379, %v401, 0.0
  %411 = vadd.xlane.f32.xlu0 %v410
  %v412 = vpop.xlane.xlu0 %411
  %v413 = vsel %vm379, %v403, 0.0
  %414 = vadd.xlane.f32.xlu0 %v413
  %v415 = vpop.xlane.xlu0 %414
  %v416 = vrcp.pop %v406
  %v417 = vrcp.pop %v409
  %v418 = vrcp.pop %v412
  %v419 = vrcp.pop %v415
  %v420 = vmul.f32 %v397, %v416
  %v421 = vmul.f32 %v399, %v417
  %v422 = vmul.f32 %v401, %v418
  %v423 = vmul.f32 %v403, %v419
  %v424 = vpack.c.bf16 %v421, %v420
  %v425 = vpack.c.bf16 %v423, %v422
  %v427 = vsel %vm379, %v424, 0
  %v430 = vsel %vm379, %v425, 0
  %432 = vmatpush.bf16.msra.mxu0 0
  %433 = vmatpush.bf16.msra.mxu0 0
  %434 = vmatpush.bf16.msra.mxu0 0
  %435 = vmatpush.bf16.msra.mxu0 0
  %436 = vmatpush.bf16.msra.mxu0 0
  %437 = vmatpush.bf16.msra.mxu0 0
  %438 = vmatpush.bf16.msra.mxu0 %v340
  %439 = vmatpush.bf16.msra.mxu0 %v339
  %440 = vmatmul.bf16.gmra.mxu0 %v427
  %v441 = vpop.f32.mrf.mxu0
  %v442 = vadd.f32 0.0, %v441
  %v443 = vpop.f32.mrf.mxu0
  %v444 = vadd.f32 0.0, %v443
  %445 = vmatmul.bf16.gmra.mxu0 %v430
  %v446 = vpop.f32.mrf.mxu0
  %v447 = vadd.f32 0.0, %v446
  %v448 = vpop.f32.mrf.mxu0
  %v449 = vadd.f32 0.0, %v448
  %450 = vdwg.mxu0
  %451 = vrot.lane.b32.xlu0 %v337, 112
  %v452 = vpop.permute.xlu0 %451
  %453 = vrot.lane.b32.xlu0 %v338, 112
  %v454 = vpop.permute.xlu0 %453
  %455 = vrot.lane.b32.xlu0 %v337, 48
  %v456 = vpop.permute.xlu0 %455
  %457 = vrot.lane.b32.xlu0 %v338, 48
  %v458 = vpop.permute.xlu0 %457
  %v460 = vsel %vm347, %v452, 0
  %v463 = vsel %vm347, %v454, 0
  %v466 = vsel %vm347, %v456, 0
  %v469 = vsel %vm347, %v458, 0
  %471 = vmatpush.bf16.xpose.msra.mxu0 0
  %472 = vmatpush.bf16.xpose.msra.mxu0 0
  %473 = vmatpush.bf16.xpose.msra.mxu0 0
  %474 = vmatpush.bf16.xpose.msra.mxu0 0
  %475 = vmatpush.bf16.xpose.msra.mxu0 0
  %476 = vmatpush.bf16.xpose.msra.mxu0 0
  %477 = vmatpush.bf16.xpose.msra.mxu0 %v469
  %478 = vmatpush.bf16.xpose.msra.mxu0 %v466
  %479 = vmatmul.bf16.gmra.mxu0 %v460
  %v480 = vpop.f32.mrf.mxu0
  %v481 = vadd.f32 %v58, %v480
  %v482 = vpop.f32.mrf.mxu0
  %v483 = vadd.f32 %v59, %v482
  %484 = vmatmul.bf16.gmra.mxu0 %v463
  %v485 = vpop.f32.mrf.mxu0
  %v486 = vadd.f32 %v60, %v485
  %v487 = vpop.f32.mrf.mxu0
  %v488 = vadd.f32 %v61, %v487
  %489 = vdwg.mxu0
  %v490 = vsel %vm379, %v481, -inf
  %491 = vmax.xlane.f32.xlu0 %v490
  %v492 = vpop.xlane.xlu0 %491
  %v493 = vsel %vm379, %v483, -inf
  %494 = vmax.xlane.f32.xlu0 %v493
  %v495 = vpop.xlane.xlu0 %494
  %v496 = vsel %vm379, %v486, -inf
  %497 = vmax.xlane.f32.xlu0 %v496
  %v498 = vpop.xlane.xlu0 %497
  %v499 = vsel %vm379, %v488, -inf
  %500 = vmax.xlane.f32.xlu0 %v499
  %v501 = vpop.xlane.xlu0 %500
  %v502 = vsub.f32 %v481, %v492
  %v503 = vsub.f32 %v483, %v495
  %v504 = vsub.f32 %v486, %v498
  %v505 = vsub.f32 %v488, %v501
  %v506 = vmul.f32 %v502, 1.442695
  %v507 = vpow.pop %v506
  %v508 = vmul.f32 %v503, 1.442695
  %v509 = vpow.pop %v508
  %v510 = vmul.f32 %v504, 1.442695
  %v511 = vpow.pop %v510
  %v512 = vmul.f32 %v505, 1.442695
  %v513 = vpow.pop %v512
  %v514 = vsel %vm379, %v507, 0.0
  %515 = vadd.xlane.f32.xlu0 %v514
  %v516 = vpop.xlane.xlu0 %515
  %v517 = vsel %vm379, %v509, 0.0
  %518 = vadd.xlane.f32.xlu0 %v517
  %v519 = vpop.xlane.xlu0 %518
  %v520 = vsel %vm379, %v511, 0.0
  %521 = vadd.xlane.f32.xlu0 %v520
  %v522 = vpop.xlane.xlu0 %521
  %v523 = vsel %vm379, %v513, 0.0
  %524 = vadd.xlane.f32.xlu0 %v523
  %v525 = vpop.xlane.xlu0 %524
  %v526 = vrcp.pop %v516
  %v527 = vrcp.pop %v519
  %v528 = vrcp.pop %v522
  %v529 = vrcp.pop %v525
  %v530 = vmul.f32 %v507, %v526
  %v531 = vmul.f32 %v509, %v527
  %v532 = vmul.f32 %v511, %v528
  %v533 = vmul.f32 %v513, %v529
  %v534 = vpack.c.bf16 %v531, %v530
  %v535 = vpack.c.bf16 %v533, %v532
  %538 = vrot.lane.b32.xlu0 %v339, 112
  %v539 = vpop.permute.xlu0 %538
  %540 = vrot.lane.b32.xlu0 %v340, 112
  %v541 = vpop.permute.xlu0 %540
  %v545 = vsel %vm379, %v534, 0
  %v548 = vsel %vm379, %v535, 0
  %550 = vmatpush.bf16.msra.mxu0 0
  %551 = vmatpush.bf16.msra.mxu0 0
  %552 = vmatpush.bf16.msra.mxu0 0
  %553 = vmatpush.bf16.msra.mxu0 0
  %554 = vmatpush.bf16.msra.mxu0 0
  %555 = vmatpush.bf16.msra.mxu0 0
  %556 = vmatpush.bf16.msra.mxu0 %v541
  %557 = vmatpush.bf16.msra.mxu0 %v539
  %558 = vmatmul.bf16.gmra.mxu0 %v545
  %v559 = vpop.f32.mrf.mxu0
  %v560 = vadd.f32 0.0, %v559
  %v561 = vpop.f32.mrf.mxu0
  %v562 = vadd.f32 0.0, %v561
  %563 = vmatmul.bf16.gmra.mxu0 %v548
  %v564 = vpop.f32.mrf.mxu0
  %v565 = vadd.f32 0.0, %v564
  %v566 = vpop.f32.mrf.mxu0
  %v567 = vadd.f32 0.0, %v566
  %568 = vdwg.mxu0
  %569 = vrot.lane.b32.xlu0 %v337, 96
  %v570 = vpop.permute.xlu0 %569
  %571 = vrot.lane.b32.xlu0 %v338, 96
  %v572 = vpop.permute.xlu0 %571
  %573 = vrot.lane.b32.xlu0 %v337, 32
  %v574 = vpop.permute.xlu0 %573
  %575 = vrot.lane.b32.xlu0 %v338, 32
  %v576 = vpop.permute.xlu0 %575
  %v578 = vsel %vm347, %v570, 0
  %v581 = vsel %vm347, %v572, 0
  %v584 = vsel %vm347, %v574, 0
  %v587 = vsel %vm347, %v576, 0
  %589 = vmatpush.bf16.xpose.msra.mxu0 0
  %590 = vmatpush.bf16.xpose.msra.mxu0 0
  %591 = vmatpush.bf16.xpose.msra.mxu0 0
  %592 = vmatpush.bf16.xpose.msra.mxu0 0
  %593 = vmatpush.bf16.xpose.msra.mxu0 0
  %594 = vmatpush.bf16.xpose.msra.mxu0 0
  %595 = vmatpush.bf16.xpose.msra.mxu0 %v587
  %596 = vmatpush.bf16.xpose.msra.mxu0 %v584
  %597 = vmatmul.bf16.gmra.mxu0 %v578
  %v598 = vpop.f32.mrf.mxu0
  %v599 = vadd.f32 %v58, %v598
  %v600 = vpop.f32.mrf.mxu0
  %v601 = vadd.f32 %v59, %v600
  %602 = vmatmul.bf16.gmra.mxu0 %v581
  %v603 = vpop.f32.mrf.mxu0
  %v604 = vadd.f32 %v60, %v603
  %v605 = vpop.f32.mrf.mxu0
  %v606 = vadd.f32 %v61, %v605
  %607 = vdwg.mxu0
  %v608 = vsel %vm379, %v599, -inf
  %609 = vmax.xlane.f32.xlu0 %v608
  %v610 = vpop.xlane.xlu0 %609
  %v611 = vsel %vm379, %v601, -inf
  %612 = vmax.xlane.f32.xlu0 %v611
  %v613 = vpop.xlane.xlu0 %612
  %v614 = vsel %vm379, %v604, -inf
  %615 = vmax.xlane.f32.xlu0 %v614
  %v616 = vpop.xlane.xlu0 %615
  %v617 = vsel %vm379, %v606, -inf
  %618 = vmax.xlane.f32.xlu0 %v617
  %v619 = vpop.xlane.xlu0 %618
  %v620 = vsub.f32 %v599, %v610
  %v621 = vsub.f32 %v601, %v613
  %v622 = vsub.f32 %v604, %v616
  %v623 = vsub.f32 %v606, %v619
  %v624 = vmul.f32 %v620, 1.442695
  %v625 = vpow.pop %v624
  %v626 = vmul.f32 %v621, 1.442695
  %v627 = vpow.pop %v626
  %v628 = vmul.f32 %v622, 1.442695
  %v629 = vpow.pop %v628
  %v630 = vmul.f32 %v623, 1.442695
  %v631 = vpow.pop %v630
  %v632 = vsel %vm379, %v625, 0.0
  %633 = vadd.xlane.f32.xlu0 %v632
  %v634 = vpop.xlane.xlu0 %633
  %v635 = vsel %vm379, %v627, 0.0
  %636 = vadd.xlane.f32.xlu0 %v635
  %v637 = vpop.xlane.xlu0 %636
  %v638 = vsel %vm379, %v629, 0.0
  %639 = vadd.xlane.f32.xlu0 %v638
  %v640 = vpop.xlane.xlu0 %639
  %v641 = vsel %vm379, %v631, 0.0
  %642 = vadd.xlane.f32.xlu0 %v641
  %v643 = vpop.xlane.xlu0 %642
  %v644 = vrcp.pop %v634
  %v645 = vrcp.pop %v637
  %v646 = vrcp.pop %v640
  %v647 = vrcp.pop %v643
  %v648 = vmul.f32 %v625, %v644
  %v649 = vmul.f32 %v627, %v645
  %v650 = vmul.f32 %v629, %v646
  %v651 = vmul.f32 %v631, %v647
  %v652 = vpack.c.bf16 %v649, %v648
  %v653 = vpack.c.bf16 %v651, %v650
  %654 = vrot.lane.b32.xlu0 %v339, 96
  %v655 = vpop.permute.xlu0 %654
  %656 = vrot.lane.b32.xlu0 %v340, 96
  %v657 = vpop.permute.xlu0 %656
  %v661 = vsel %vm379, %v652, 0
  %v664 = vsel %vm379, %v653, 0
  %666 = vmatpush.bf16.msra.mxu0 0
  %667 = vmatpush.bf16.msra.mxu0 0
  %668 = vmatpush.bf16.msra.mxu0 0
  %669 = vmatpush.bf16.msra.mxu0 0
  %670 = vmatpush.bf16.msra.mxu0 0
  %671 = vmatpush.bf16.msra.mxu0 0
  %672 = vmatpush.bf16.msra.mxu0 %v657
  %673 = vmatpush.bf16.msra.mxu0 %v655
  %674 = vmatmul.bf16.gmra.mxu0 %v661
  %v675 = vpop.f32.mrf.mxu0
  %v676 = vadd.f32 0.0, %v675
  %v677 = vpop.f32.mrf.mxu0
  %v678 = vadd.f32 0.0, %v677
  %679 = vmatmul.bf16.gmra.mxu0 %v664
  %v680 = vpop.f32.mrf.mxu0
  %v681 = vadd.f32 0.0, %v680
  %v682 = vpop.f32.mrf.mxu0
  %v683 = vadd.f32 0.0, %v682
  %684 = vdwg.mxu0
  %685 = vrot.lane.b32.xlu0 %v337, 80
  %v686 = vpop.permute.xlu0 %685
  %687 = vrot.lane.b32.xlu0 %v338, 80
  %v688 = vpop.permute.xlu0 %687
  %689 = vrot.lane.b32.xlu0 %v337, 16
  %v690 = vpop.permute.xlu0 %689
  %691 = vrot.lane.b32.xlu0 %v338, 16
  %v692 = vpop.permute.xlu0 %691
  %v694 = vsel %vm347, %v686, 0
  %v697 = vsel %vm347, %v688, 0
  %v700 = vsel %vm347, %v690, 0
  %v703 = vsel %vm347, %v692, 0
  %705 = vmatpush.bf16.xpose.msra.mxu0 0
  %706 = vmatpush.bf16.xpose.msra.mxu0 0
  %707 = vmatpush.bf16.xpose.msra.mxu0 0
  %708 = vmatpush.bf16.xpose.msra.mxu0 0
  %709 = vmatpush.bf16.xpose.msra.mxu0 0
  %710 = vmatpush.bf16.xpose.msra.mxu0 0
  %711 = vmatpush.bf16.xpose.msra.mxu0 %v703
  %712 = vmatpush.bf16.xpose.msra.mxu0 %v700
  %713 = vmatmul.bf16.gmra.mxu0 %v694
  %v714 = vpop.f32.mrf.mxu0
  %v715 = vadd.f32 %v58, %v714
  %v716 = vpop.f32.mrf.mxu0
  %v717 = vadd.f32 %v59, %v716
  %718 = vmatmul.bf16.gmra.mxu0 %v697
  %v719 = vpop.f32.mrf.mxu0
  %v720 = vadd.f32 %v60, %v719
  %v721 = vpop.f32.mrf.mxu0
  %v722 = vadd.f32 %v61, %v721
  %723 = vdwg.mxu0
  %v724 = vsel %vm379, %v715, -inf
  %725 = vmax.xlane.f32.xlu0 %v724
  %v726 = vpop.xlane.xlu0 %725
  %v727 = vsel %vm379, %v717, -inf
  %728 = vmax.xlane.f32.xlu0 %v727
  %v729 = vpop.xlane.xlu0 %728
  %v730 = vsel %vm379, %v720, -inf
  %731 = vmax.xlane.f32.xlu0 %v730
  %v732 = vpop.xlane.xlu0 %731
  %v733 = vsel %vm379, %v722, -inf
  %734 = vmax.xlane.f32.xlu0 %v733
  %v735 = vpop.xlane.xlu0 %734
  %v736 = vsub.f32 %v715, %v726
  %v737 = vsub.f32 %v717, %v729
  %v738 = vsub.f32 %v720, %v732
  %v739 = vsub.f32 %v722, %v735
  %v740 = vmul.f32 %v736, 1.442695
  %v741 = vpow.pop %v740
  %v742 = vmul.f32 %v737, 1.442695
  %v743 = vpow.pop %v742
  %v744 = vmul.f32 %v738, 1.442695
  %v745 = vpow.pop %v744
  %v746 = vmul.f32 %v739, 1.442695
  %v747 = vpow.pop %v746
  %v748 = vsel %vm379, %v741, 0.0
  %749 = vadd.xlane.f32.xlu0 %v748
  %v750 = vpop.xlane.xlu0 %749
  %v751 = vsel %vm379, %v743, 0.0
  %752 = vadd.xlane.f32.xlu0 %v751
  %v753 = vpop.xlane.xlu0 %752
  %v754 = vsel %vm379, %v745, 0.0
  %755 = vadd.xlane.f32.xlu0 %v754
  %v756 = vpop.xlane.xlu0 %755
  %v757 = vsel %vm379, %v747, 0.0
  %758 = vadd.xlane.f32.xlu0 %v757
  %v759 = vpop.xlane.xlu0 %758
  %v760 = vrcp.pop %v750
  %v761 = vrcp.pop %v753
  %v762 = vrcp.pop %v756
  %v763 = vrcp.pop %v759
  %v764 = vmul.f32 %v741, %v760
  %v765 = vmul.f32 %v743, %v761
  %v766 = vmul.f32 %v745, %v762
  %v767 = vmul.f32 %v747, %v763
  %v768 = vpack.c.bf16 %v765, %v764
  %v769 = vpack.c.bf16 %v767, %v766
  %770 = vrot.lane.b32.xlu0 %v339, 80
  %v771 = vpop.permute.xlu0 %770
  %772 = vrot.lane.b32.xlu0 %v340, 80
  %v773 = vpop.permute.xlu0 %772
  %v777 = vsel %vm379, %v768, 0
  %v780 = vsel %vm379, %v769, 0
  %782 = vmatpush.bf16.msra.mxu0 0
  %783 = vmatpush.bf16.msra.mxu0 0
  %784 = vmatpush.bf16.msra.mxu0 0
  %785 = vmatpush.bf16.msra.mxu0 0
  %786 = vmatpush.bf16.msra.mxu0 0
  %787 = vmatpush.bf16.msra.mxu0 0
  %788 = vmatpush.bf16.msra.mxu0 %v773
  %789 = vmatpush.bf16.msra.mxu0 %v771
  %790 = vmatmul.bf16.gmra.mxu0 %v777
  %v791 = vpop.f32.mrf.mxu0
  %v792 = vadd.f32 0.0, %v791
  %v793 = vpop.f32.mrf.mxu0
  %v794 = vadd.f32 0.0, %v793
  %795 = vmatmul.bf16.gmra.mxu0 %v780
  %v796 = vpop.f32.mrf.mxu0
  %v797 = vadd.f32 0.0, %v796
  %v798 = vpop.f32.mrf.mxu0
  %v799 = vadd.f32 0.0, %v798
  %800 = vdwg.mxu0
  %805 = vrot.lane.b32.xlu0 %v560, 16
  %v806 = vpop.permute.xlu0 %805
  %807 = vrot.lane.b32.xlu0 %v562, 16
  %v808 = vpop.permute.xlu0 %807
  %809 = vrot.lane.b32.xlu0 %v565, 16
  %v810 = vpop.permute.xlu0 %809
  %811 = vrot.lane.b32.xlu0 %v567, 16
  %v812 = vpop.permute.xlu0 %811
  %821 = vrot.lane.b32.xlu0 %v676, 32
  %v822 = vpop.permute.xlu0 %821
  %823 = vrot.lane.b32.xlu0 %v678, 32
  %v824 = vpop.permute.xlu0 %823
  %825 = vrot.lane.b32.xlu0 %v681, 32
  %v826 = vpop.permute.xlu0 %825
  %827 = vrot.lane.b32.xlu0 %v683, 32
  %v828 = vpop.permute.xlu0 %827
  %837 = vrot.lane.b32.xlu0 %v792, 48
  %v838 = vpop.permute.xlu0 %837
  %839 = vrot.lane.b32.xlu0 %v794, 48
  %v840 = vpop.permute.xlu0 %839
  %841 = vrot.lane.b32.xlu0 %v797, 48
  %v842 = vpop.permute.xlu0 %841
  %843 = vrot.lane.b32.xlu0 %v799, 48
  %v844 = vpop.permute.xlu0 %843
  %v849 = vsel %vm347, %v442, %v806
  %v850 = vsel %vm347, %v444, %v808
  %v851 = vsel %vm347, %v447, %v810
  %v852 = vsel %vm347, %v449, %v812
  %v853 = vsel %vm379, %v849, %v822
  %v854 = vsel %vm379, %v850, %v824
  %v855 = vsel %vm379, %v851, %v826
  %v856 = vsel %vm379, %v852, %v828
  %vm857 = vcmask 392192
  %v858 = vsel %vm857, %v853, %v838
  %v859 = vsel %vm857, %v854, %v840
  %v860 = vsel %vm857, %v855, %v842
  %v861 = vsel %vm857, %v856, %v844
  %v862 = vld [vmem:[%s8] sm:$0xf]
  %v863 = vld [vmem:[%s8 + $0x4] sm:$0xf]
  %v864 = vld [vmem:[%s8 + $0x8] sm:$0xf]
  %v865 = vld [vmem:[%s8 + $0xc] sm:$0xf]
  %v866 = vld [vmem:[%s8 + $0x10] sm:$0xf]
  %v867 = vld [vmem:[%s8 + $0x14] sm:$0xf]
  %v868 = vld [vmem:[%s8 + $0x18] sm:$0xf]
  %v869 = vld [vmem:[%s8 + $0x1c] sm:$0xf]
  %v870 = vpack.c.bf16 %v859, %v858
  %v871 = vpack.c.bf16 %v861, %v860
  %v880 = vunpack.c.l.b16 %v862
  %v881 = vunpack.c.l.b16 %v863
  %v882 = vunpack.c.l.b16 %v864
  %v883 = vunpack.c.l.b16 %v865
  %v884 = vunpack.c.l.b16 %v866
  %v885 = vunpack.c.l.b16 %v867
  %v886 = vunpack.c.l.b16 %v868
  %v887 = vunpack.c.l.b16 %v869
  %v888 = vpack.c.b16 %v881, %v880
  %v889 = vpack.c.b16 %v883, %v882
  %v890 = vpack.c.b16 %v885, %v884
  %v891 = vpack.c.b16 %v887, %v886
  %v897 = vsel %vm100, %v870, 0
  %v900 = vsel %vm100, %v871, 0
  %902 = vmatpush.bf16.msra.mxu0 0
  %903 = vmatpush.bf16.msra.mxu0 0
  %904 = vmatpush.bf16.msra.mxu0 0
  %905 = vmatpush.bf16.msra.mxu0 0
  %906 = vmatpush.bf16.msra.mxu0 %v891
  %907 = vmatpush.bf16.msra.mxu0 %v890
  %908 = vmatpush.bf16.msra.mxu0 %v889
  %909 = vmatpush.bf16.msra.mxu0 %v888
  %910 = vmatmul.bf16.gmra.mxu0 %v897
  %v911 = vpop.f32.mrf.mxu0
  %v912 = vadd.f32 0.0, %v911
  %v913 = vpop.f32.mrf.mxu0
  %v914 = vadd.f32 0.0, %v913
  %915 = vmatmul.bf16.gmra.mxu0 %v900
  %v916 = vpop.f32.mrf.mxu0
  %v917 = vadd.f32 0.0, %v916
  %v918 = vpop.f32.mrf.mxu0
  %v919 = vadd.f32 0.0, %v918
  %920 = vdwg.mxu0
  %v921 = vadd.f32 %v117, %v912
  %v922 = vadd.f32 %v119, %v914
  %v923 = vadd.f32 %v122, %v917
  %v924 = vadd.f32 %v124, %v919
  %v925 = vld [vmem:[%s9] sm:$0x1]
  %v927 = vperm.slane %v925, 0
  %v929 = vadd.f32 %v921, %v927
  %v930 = vadd.f32 %v922, %v927
  %v931 = vadd.f32 %v923, %v927
  %v932 = vadd.f32 %v924, %v927
  %v933 = vld [vmem:[%s10] sm:$0x1]
  %v934 = vld [vmem:[%s11] sm:$0x1]
  %v935 = vsel %vm100, %v929, 0.0
  %936 = vadd.xlane.f32.xlu0 %v935
  %v937 = vpop.xlane.xlu0 %936
  %v938 = vsel %vm100, %v930, 0.0
  %939 = vadd.xlane.f32.xlu0 %v938
  %v940 = vpop.xlane.xlu0 %939
  %v941 = vsel %vm100, %v931, 0.0
  %942 = vadd.xlane.f32.xlu0 %v941
  %v943 = vpop.xlane.xlu0 %942
  %v944 = vsel %vm100, %v932, 0.0
  %945 = vadd.xlane.f32.xlu0 %v944
  %v946 = vpop.xlane.xlu0 %945
  %v947 = vmul.f32 %v937, %v146
  %v948 = vmul.f32 %v940, %v146
  %v949 = vmul.f32 %v943, %v146
  %v950 = vmul.f32 %v946, %v146
  %v951 = vsub.f32 %v929, %v947
  %v952 = vsub.f32 %v930, %v948
  %v953 = vsub.f32 %v931, %v949
  %v954 = vsub.f32 %v932, %v950
  %v955 = vmul.f32 %v951, %v951
  %v956 = vmul.f32 %v952, %v952
  %v957 = vmul.f32 %v953, %v953
  %v958 = vmul.f32 %v954, %v954
  %v959 = vsel %vm100, %v955, 0.0
  %960 = vadd.xlane.f32.xlu0 %v959
  %v961 = vpop.xlane.xlu0 %960
  %v962 = vsel %vm100, %v956, 0.0
  %963 = vadd.xlane.f32.xlu0 %v962
  %v964 = vpop.xlane.xlu0 %963
  %v965 = vsel %vm100, %v957, 0.0
  %966 = vadd.xlane.f32.xlu0 %v965
  %v967 = vpop.xlane.xlu0 %966
  %v968 = vsel %vm100, %v958, 0.0
  %969 = vadd.xlane.f32.xlu0 %v968
  %v970 = vpop.xlane.xlu0 %969
  %v971 = vmul.f32 %v961, %v146
  %v972 = vmul.f32 %v964, %v146
  %v973 = vmul.f32 %v967, %v146
  %v974 = vmul.f32 %v970, %v146
  %v975 = vadd.f32 %v971, 1e-05
  %v976 = vadd.f32 %v972, 1e-05
  %v977 = vadd.f32 %v973, 1e-05
  %v978 = vadd.f32 %v974, 1e-05
  %v979 = vrsqrt.pop %v975
  %v980 = vmul.f32 %v979, %v975
  %v981 = vmul.f32 %v980, %v979
  %v982 = vmul.f32 0.5, %v981
  %v983 = vsub.f32 1.5, %v982
  %v984 = vmul.f32 %v979, %v983
  %vm985 = vweird.f32 %v975
  %vm986 = vweird.f32 %v979
  %vm987 = vmor %vm985, %vm986
  %v988 = vsel %vm987, %v979, %v984
  %v989 = vrsqrt.pop %v976
  %v990 = vmul.f32 %v989, %v976
  %v991 = vmul.f32 %v990, %v989
  %v992 = vmul.f32 0.5, %v991
  %v993 = vsub.f32 1.5, %v992
  %v994 = vmul.f32 %v989, %v993
  %vm995 = vweird.f32 %v976
  %vm996 = vweird.f32 %v989
  %vm997 = vmor %vm995, %vm996
  %v998 = vsel %vm997, %v989, %v994
  %v999 = vrsqrt.pop %v977
  %v1000 = vmul.f32 %v999, %v977
  %v1001 = vmul.f32 %v1000, %v999
  %v1002 = vmul.f32 0.5, %v1001
  %v1003 = vsub.f32 1.5, %v1002
  %v1004 = vmul.f32 %v999, %v1003
  %vm1005 = vweird.f32 %v977
  %vm1006 = vweird.f32 %v999
  %vm1007 = vmor %vm1005, %vm1006
  %v1008 = vsel %vm1007, %v999, %v1004
  %v1009 = vrsqrt.pop %v978
  %v1010 = vmul.f32 %v1009, %v978
  %v1011 = vmul.f32 %v1010, %v1009
  %v1012 = vmul.f32 0.5, %v1011
  %v1013 = vsub.f32 1.5, %v1012
  %v1014 = vmul.f32 %v1009, %v1013
  %vm1015 = vweird.f32 %v978
  %vm1016 = vweird.f32 %v1009
  %vm1017 = vmor %vm1015, %vm1016
  %v1018 = vsel %vm1017, %v1009, %v1014
  %v1019 = vmul.f32 %v951, %v988
  %v1020 = vmul.f32 %v952, %v998
  %v1021 = vmul.f32 %v953, %v1008
  %v1022 = vmul.f32 %v954, %v1018
  %v1024 = vperm.slane %v933, 0
  %v1026 = vmul.f32 %v1019, %v1024
  %v1027 = vmul.f32 %v1020, %v1024
  %v1028 = vmul.f32 %v1021, %v1024
  %v1029 = vmul.f32 %v1022, %v1024
  %v1031 = vperm.slane %v934, 0
  %v1033 = vadd.f32 %v1026, %v1031
  %v1034 = vadd.f32 %v1027, %v1031
  %v1035 = vadd.f32 %v1028, %v1031
  %v1036 = vadd.f32 %v1029, %v1031
  %v1037 = vld [vmem:[%s12] sm:$0xf]
  %v1038 = vld [vmem:[%s12 + $0x4] sm:$0xf]
  %v1039 = vld [vmem:[%s12 + $0x8] sm:$0xf]
  %v1040 = vld [vmem:[%s12 + $0xc] sm:$0xf]
  %v1041 = vld [vmem:[%s12 + $0x10] sm:$0xf]
  %v1042 = vld [vmem:[%s12 + $0x14] sm:$0xf]
  %v1043 = vld [vmem:[%s12 + $0x18] sm:$0xf]
  %v1044 = vld [vmem:[%s12 + $0x1c] sm:$0xf]
  %v1045 = vpack.c.bf16 %v1034, %v1033
  %v1046 = vpack.c.bf16 %v1036, %v1035
  %v1047 = vld [vmem:[%s13] sm:$0x1]
  %v1049 = vperm.slane %v1047, 0
  %v1059 = vunpack.c.l.b16 %v1037
  %v1060 = vunpack.c.l.b16 %v1038
  %v1061 = vunpack.c.l.b16 %v1039
  %v1062 = vunpack.c.l.b16 %v1040
  %v1063 = vunpack.c.l.b16 %v1041
  %v1064 = vunpack.c.l.b16 %v1042
  %v1065 = vunpack.c.l.b16 %v1043
  %v1066 = vunpack.c.l.b16 %v1044
  %v1067 = vpack.c.b16 %v1060, %v1059
  %v1068 = vpack.c.b16 %v1062, %v1061
  %v1069 = vpack.c.b16 %v1064, %v1063
  %v1070 = vpack.c.b16 %v1066, %v1065
  %v1076 = vsel %vm100, %v1045, 0
  %v1079 = vsel %vm100, %v1046, 0
  %1081 = vmatpush.bf16.msra.mxu0 0
  %1082 = vmatpush.bf16.msra.mxu0 0
  %1083 = vmatpush.bf16.msra.mxu0 0
  %1084 = vmatpush.bf16.msra.mxu0 0
  %1085 = vmatpush.bf16.msra.mxu0 %v1070
  %1086 = vmatpush.bf16.msra.mxu0 %v1069
  %1087 = vmatpush.bf16.msra.mxu0 %v1068
  %1088 = vmatpush.bf16.msra.mxu0 %v1067
  %1089 = vmatmul.bf16.gmra.mxu0 %v1076
  %v1090 = vpop.f32.mrf.mxu0
  %v1091 = vadd.f32 %v1049, %v1090
  %v1092 = vpop.f32.mrf.mxu0
  %v1093 = vadd.f32 %v1049, %v1092
  %1094 = vmatmul.bf16.gmra.mxu0 %v1079
  %v1095 = vpop.f32.mrf.mxu0
  %v1096 = vadd.f32 %v1049, %v1095
  %v1097 = vpop.f32.mrf.mxu0
  %v1098 = vadd.f32 %v1049, %v1097
  %1099 = vdwg.mxu0
  %v1100 = vmul.f32 %v1091, 0.5
  %v1101 = vmul.f32 %v1093, 0.5
  %v1102 = vmul.f32 %v1096, 0.5
  %v1103 = vmul.f32 %v1098, 0.5
  %v1104 = vmul.f32 %v1091, 0.044715
  %v1105 = vmul.f32 %v1093, 0.044715
  %v1106 = vmul.f32 %v1096, 0.044715
  %v1107 = vmul.f32 %v1098, 0.044715
  %v1108 = vmul.f32 %v1104, %v1091
  %v1109 = vmul.f32 %v1105, %v1093
  %v1110 = vmul.f32 %v1106, %v1096
  %v1111 = vmul.f32 %v1107, %v1098
  %v1112 = vmul.f32 %v1108, %v1091
  %v1113 = vmul.f32 %v1109, %v1093
  %v1114 = vmul.f32 %v1110, %v1096
  %v1115 = vmul.f32 %v1111, %v1098
  %v1116 = vadd.f32 %v1091, %v1112
  %v1117 = vadd.f32 %v1093, %v1113
  %v1118 = vadd.f32 %v1096, %v1114
  %v1119 = vadd.f32 %v1098, %v1115
  %v1120 = vmul.f32 %v1116, 0.7978846
  %v1121 = vmul.f32 %v1117, 0.7978846
  %v1122 = vmul.f32 %v1118, 0.7978846
  %v1123 = vmul.f32 %v1119, 0.7978846
  %v1124 = vtanh.pop %v1120
  %v1125 = vtanh.pop %v1121
  %v1126 = vtanh.pop %v1122
  %v1127 = vtanh.pop %v1123
  %v1128 = vadd.f32 %v1124, 1.0
  %v1129 = vadd.f32 %v1125, 1.0
  %v1130 = vadd.f32 %v1126, 1.0
  %v1131 = vadd.f32 %v1127, 1.0
  %v1132 = vmul.f32 %v1100, %v1128
  %v1133 = vmul.f32 %v1101, %v1129
  %v1134 = vmul.f32 %v1102, %v1130
  %v1135 = vmul.f32 %v1103, %v1131
  %v1136 = vld [vmem:[%s14] sm:$0xf]
  %v1137 = vld [vmem:[%s14 + $0x4] sm:$0xf]
  %v1138 = vld [vmem:[%s14 + $0x8] sm:$0xf]
  %v1139 = vld [vmem:[%s14 + $0xc] sm:$0xf]
  %v1140 = vld [vmem:[%s14 + $0x10] sm:$0xf]
  %v1141 = vld [vmem:[%s14 + $0x14] sm:$0xf]
  %v1142 = vld [vmem:[%s14 + $0x18] sm:$0xf]
  %v1143 = vld [vmem:[%s14 + $0x1c] sm:$0xf]
  %v1144 = vld [vmem:[%s14 + $0x20] sm:$0xf]
  %v1145 = vld [vmem:[%s14 + $0x24] sm:$0xf]
  %v1146 = vld [vmem:[%s14 + $0x28] sm:$0xf]
  %v1147 = vld [vmem:[%s14 + $0x2c] sm:$0xf]
  %v1148 = vld [vmem:[%s14 + $0x30] sm:$0xf]
  %v1149 = vld [vmem:[%s14 + $0x34] sm:$0xf]
  %v1150 = vld [vmem:[%s14 + $0x38] sm:$0xf]
  %v1151 = vld [vmem:[%s14 + $0x3c] sm:$0xf]
  %v1152 = vpack.c.bf16 %v1133, %v1132
  %v1153 = vpack.c.bf16 %v1135, %v1134
  %v1154 = vld [vmem:[%s15] sm:$0x1]
  %v1156 = vperm.slane %v1154, 0
  %v1174 = vunpack.c.l.b16 %v1136
  %v1175 = vunpack.c.l.b16 %v1137
  %v1176 = vunpack.c.l.b16 %v1138
  %v1177 = vunpack.c.l.b16 %v1139
  %v1178 = vunpack.c.l.b16 %v1140
  %v1179 = vunpack.c.l.b16 %v1141
  %v1180 = vunpack.c.l.b16 %v1142
  %v1181 = vunpack.c.l.b16 %v1143
  %v1182 = vunpack.c.l.b16 %v1144
  %v1183 = vunpack.c.l.b16 %v1145
  %v1184 = vunpack.c.l.b16 %v1146
  %v1185 = vunpack.c.l.b16 %v1147
  %v1186 = vunpack.c.l.b16 %v1148
  %v1187 = vunpack.c.l.b16 %v1149
  %v1188 = vunpack.c.l.b16 %v1150
  %v1189 = vunpack.c.l.b16 %v1151
  %v1190 = vpack.c.b16 %v1175, %v1174
  %v1191 = vpack.c.b16 %v1177, %v1176
  %v1192 = vpack.c.b16 %v1179, %v1178
  %v1193 = vpack.c.b16 %v1181, %v1180
  %v1194 = vpack.c.b16 %v1183, %v1182
  %v1195 = vpack.c.b16 %v1185, %v1184
  %v1196 = vpack.c.b16 %v1187, %v1186
  %v1197 = vpack.c.b16 %v1189, %v1188
  %1206 = vmatpush.bf16.msra.mxu0 %v1197
  %1207 = vmatpush.bf16.msra.mxu0 %v1196
  %1208 = vmatpush.bf16.msra.mxu0 %v1195
  %1209 = vmatpush.bf16.msra.mxu0 %v1194
  %1210 = vmatpush.bf16.msra.mxu0 %v1193
  %1211 = vmatpush.bf16.msra.mxu0 %v1192
  %1212 = vmatpush.bf16.msra.mxu0 %v1191
  %1213 = vmatpush.bf16.msra.mxu0 %v1190
  %1214 = vmatmul.bf16.gmra.mxu0 %v1152
  %v1215 = vpop.f32.mrf.mxu0
  %v1216 = vadd.f32 %v1156, %v1215
  %v1217 = vpop.f32.mrf.mxu0
  %v1218 = vadd.f32 %v1156, %v1217
  %1219 = vmatmul.bf16.gmra.mxu0 %v1153
  %v1220 = vpop.f32.mrf.mxu0
  %v1221 = vadd.f32 %v1156, %v1220
  %v1222 = vpop.f32.mrf.mxu0
  %v1223 = vadd.f32 %v1156, %v1222
  %1224 = vdwg.mxu0
  %v1225 = vadd.f32 %v929, %v1216
  %v1226 = vadd.f32 %v930, %v1218
  %v1227 = vadd.f32 %v931, %v1221
  %v1228 = vadd.f32 %v932, %v1223
  %s1229 = scalar_lea.vmem %s4, 1
  %v1230 = vld [vmem:[%s1229] sm:$0x1]
  %s1231 = scalar_lea.vmem %s5, 1
  %v1232 = vld [vmem:[%s1231] sm:$0x1]
  %v1233 = vsel %vm100, %v1225, 0.0
  %1234 = vadd.xlane.f32.xlu0 %v1233
  %v1235 = vpop.xlane.xlu0 %1234
  %v1236 = vsel %vm100, %v1226, 0.0
  %1237 = vadd.xlane.f32.xlu0 %v1236
  %v1238 = vpop.xlane.xlu0 %1237
  %v1239 = vsel %vm100, %v1227, 0.0
  %1240 = vadd.xlane.f32.xlu0 %v1239
  %v1241 = vpop.xlane.xlu0 %1240
  %v1242 = vsel %vm100, %v1228, 0.0
  %1243 = vadd.xlane.f32.xlu0 %v1242
  %v1244 = vpop.xlane.xlu0 %1243
  %v1245 = vmul.f32 %v1235, %v146
  %v1246 = vmul.f32 %v1238, %v146
  %v1247 = vmul.f32 %v1241, %v146
  %v1248 = vmul.f32 %v1244, %v146
  %v1249 = vsub.f32 %v1225, %v1245
  %v1250 = vsub.f32 %v1226, %v1246
  %v1251 = vsub.f32 %v1227, %v1247
  %v1252 = vsub.f32 %v1228, %v1248
  %v1253 = vmul.f32 %v1249, %v1249
  %v1254 = vmul.f32 %v1250, %v1250
  %v1255 = vmul.f32 %v1251, %v1251
  %v1256 = vmul.f32 %v1252, %v1252
  %v1257 = vsel %vm100, %v1253, 0.0
  %1258 = vadd.xlane.f32.xlu0 %v1257
  %v1259 = vpop.xlane.xlu0 %1258
  %v1260 = vsel %vm100, %v1254, 0.0
  %1261 = vadd.xlane.f32.xlu0 %v1260
  %v1262 = vpop.xlane.xlu0 %1261
  %v1263 = vsel %vm100, %v1255, 0.0
  %1264 = vadd.xlane.f32.xlu0 %v1263
  %v1265 = vpop.xlane.xlu0 %1264
  %v1266 = vsel %vm100, %v1256, 0.0
  %1267 = vadd.xlane.f32.xlu0 %v1266
  %v1268 = vpop.xlane.xlu0 %1267
  %v1269 = vmul.f32 %v1259, %v146
  %v1270 = vmul.f32 %v1262, %v146
  %v1271 = vmul.f32 %v1265, %v146
  %v1272 = vmul.f32 %v1268, %v146
  %v1273 = vadd.f32 %v1269, 1e-05
  %v1274 = vadd.f32 %v1270, 1e-05
  %v1275 = vadd.f32 %v1271, 1e-05
  %v1276 = vadd.f32 %v1272, 1e-05
  %v1277 = vrsqrt.pop %v1273
  %v1278 = vmul.f32 %v1277, %v1273
  %v1279 = vmul.f32 %v1278, %v1277
  %v1280 = vmul.f32 0.5, %v1279
  %v1281 = vsub.f32 1.5, %v1280
  %v1282 = vmul.f32 %v1277, %v1281
  %vm1283 = vweird.f32 %v1273
  %vm1284 = vweird.f32 %v1277
  %vm1285 = vmor %vm1283, %vm1284
  %v1286 = vsel %vm1285, %v1277, %v1282
  %v1287 = vrsqrt.pop %v1274
  %v1288 = vmul.f32 %v1287, %v1274
  %v1289 = vmul.f32 %v1288, %v1287
  %v1290 = vmul.f32 0.5, %v1289
  %v1291 = vsub.f32 1.5, %v1290
  %v1292 = vmul.f32 %v1287, %v1291
  %vm1293 = vweird.f32 %v1274
  %vm1294 = vweird.f32 %v1287
  %vm1295 = vmor %vm1293, %vm1294
  %v1296 = vsel %vm1295, %v1287, %v1292
  %v1297 = vrsqrt.pop %v1275
  %v1298 = vmul.f32 %v1297, %v1275
  %v1299 = vmul.f32 %v1298, %v1297
  %v1300 = vmul.f32 0.5, %v1299
  %v1301 = vsub.f32 1.5, %v1300
  %v1302 = vmul.f32 %v1297, %v1301
  %vm1303 = vweird.f32 %v1275
  %vm1304 = vweird.f32 %v1297
  %vm1305 = vmor %vm1303, %vm1304
  %v1306 = vsel %vm1305, %v1297, %v1302
  %v1307 = vrsqrt.pop %v1276
  %v1308 = vmul.f32 %v1307, %v1276
  %v1309 = vmul.f32 %v1308, %v1307
  %v1310 = vmul.f32 0.5, %v1309
  %v1311 = vsub.f32 1.5, %v1310
  %v1312 = vmul.f32 %v1307, %v1311
  %vm1313 = vweird.f32 %v1276
  %vm1314 = vweird.f32 %v1307
  %vm1315 = vmor %vm1313, %vm1314
  %v1316 = vsel %vm1315, %v1307, %v1312
  %v1317 = vmul.f32 %v1249, %v1286
  %v1318 = vmul.f32 %v1250, %v1296
  %v1319 = vmul.f32 %v1251, %v1306
  %v1320 = vmul.f32 %v1252, %v1316
  %v1322 = vperm.slane %v1230, 0
  %v1324 = vmul.f32 %v1317, %v1322
  %v1325 = vmul.f32 %v1318, %v1322
  %v1326 = vmul.f32 %v1319, %v1322
  %v1327 = vmul.f32 %v1320, %v1322
  %v1329 = vperm.slane %v1232, 0
  %v1331 = vadd.f32 %v1324, %v1329
  %v1332 = vadd.f32 %v1325, %v1329
  %v1333 = vadd.f32 %v1326, %v1329
  %v1334 = vadd.f32 %v1327, %v1329
  %s1335 = scalar_lea.vmem %s6, 64
  %v1336 = vld [vmem:[%s1335] sm:$0xff]
  %v1337 = vld [vmem:[%s1335 + $0x8] sm:$0xff]
  %v1338 = vld [vmem:[%s1335 + $0x10] sm:$0xff]
  %v1339 = vld [vmem:[%s1335 + $0x18] sm:$0xff]
  %v1340 = vld [vmem:[%s1335 + $0x20] sm:$0xff]
  %v1341 = vld [vmem:[%s1335 + $0x28] sm:$0xff]
  %v1342 = vld [vmem:[%s1335 + $0x30] sm:$0xff]
  %v1343 = vld [vmem:[%s1335 + $0x38] sm:$0xff]
  %v1344 = vpack.c.bf16 %v1332, %v1331
  %v1345 = vpack.c.bf16 %v1334, %v1333
  %s1346 = scalar_lea.vmem %s7, 2
  %v1347 = vld [vmem:[%s1346] sm:$0x3]
  %v1349 = vperm.slane %v1347, 0
  %v1350 = vperm.slane %v1347, 1
  %v1361 = vunpack.c.l.b16 %v1336
  %v1362 = vunpack.c.h.b16 %v1336
  %v1363 = vunpack.c.l.b16 %v1337
  %v1364 = vunpack.c.h.b16 %v1337
  %v1365 = vunpack.c.l.b16 %v1338
  %v1366 = vunpack.c.h.b16 %v1338
  %v1367 = vunpack.c.l.b16 %v1339
  %v1368 = vunpack.c.h.b16 %v1339
  %v1369 = vunpack.c.l.b16 %v1340
  %v1370 = vunpack.c.h.b16 %v1340
  %v1371 = vunpack.c.l.b16 %v1341
  %v1372 = vunpack.c.h.b16 %v1341
  %v1373 = vunpack.c.l.b16 %v1342
  %v1374 = vunpack.c.h.b16 %v1342
  %v1375 = vunpack.c.l.b16 %v1343
  %v1376 = vunpack.c.h.b16 %v1343
  %v1377 = vpack.c.b16 %v1363, %v1361
  %v1378 = vpack.c.b16 %v1364, %v1362
  %v1379 = vpack.c.b16 %v1367, %v1365
  %v1380 = vpack.c.b16 %v1368, %v1366
  %v1381 = vpack.c.b16 %v1371, %v1369
  %v1382 = vpack.c.b16 %v1372, %v1370
  %v1383 = vpack.c.b16 %v1375, %v1373
  %v1384 = vpack.c.b16 %v1376, %v1374
  %v1394 = vsel %vm100, %v1344, 0
  %v1397 = vsel %vm100, %v1345, 0
  %1399 = vmatpush.bf16.msra.mxu0 0
  %1400 = vmatpush.bf16.msra.mxu0 0
  %1401 = vmatpush.bf16.msra.mxu0 0
  %1402 = vmatpush.bf16.msra.mxu0 0
  %1403 = vmatpush.bf16.msra.mxu0 %v1383
  %1404 = vmatpush.bf16.msra.mxu0 %v1381
  %1405 = vmatpush.bf16.msra.mxu0 %v1379
  %1406 = vmatpush.bf16.msra.mxu0 %v1377
  %1407 = vmatmul.bf16.gmra.mxu0 %v1394
  %v1408 = vpop.f32.mrf.mxu0
  %v1409 = vadd.f32 %v1349, %v1408
  %v1410 = vpop.f32.mrf.mxu0
  %v1411 = vadd.f32 %v1349, %v1410
  %1412 = vmatmul.bf16.gmra.mxu0 %v1397
  %v1413 = vpop.f32.mrf.mxu0
  %v1414 = vadd.f32 %v1349, %v1413
  %v1415 = vpop.f32.mrf.mxu0
  %v1416 = vadd.f32 %v1349, %v1415
  %1417 = vdwg.mxu0
  %1418 = vmatpush.bf16.msra.mxu0 0
  %1419 = vmatpush.bf16.msra.mxu0 0
  %1420 = vmatpush.bf16.msra.mxu0 0
  %1421 = vmatpush.bf16.msra.mxu0 0
  %1422 = vmatpush.bf16.msra.mxu0 %v1384
  %1423 = vmatpush.bf16.msra.mxu0 %v1382
  %1424 = vmatpush.bf16.msra.mxu0 %v1380
  %1425 = vmatpush.bf16.msra.mxu0 %v1378
  %1426 = vmatmul.bf16.gmra.mxu0 %v1394
  %v1427 = vpop.f32.mrf.mxu0
  %v1428 = vadd.f32 %v1350, %v1427
  %v1429 = vpop.f32.mrf.mxu0
  %v1430 = vadd.f32 %v1350, %v1429
  %1431 = vmatmul.bf16.gmra.mxu0 %v1397
  %v1432 = vpop.f32.mrf.mxu0
  %v1433 = vadd.f32 %v1350, %v1432
  %v1434 = vpop.f32.mrf.mxu0
  %v1435 = vadd.f32 %v1350, %v1434
  %1436 = vdwg.mxu0
  %v1437 = vpack.c.bf16 %v1411, %v1409
  %v1438 = vpack.c.bf16 %v1416, %v1414
  %v1439 = vpack.c.bf16 %v1430, %v1428
  %v1440 = vpack.c.bf16 %v1435, %v1433
  %1443 = vrot.lane.b32.xlu0 %v1437, 64
  %v1444 = vpop.permute.xlu0 %1443
  %1445 = vrot.lane.b32.xlu0 %v1438, 64
  %v1446 = vpop.permute.xlu0 %1445
  %v1448 = vsel %vm347, %v1437, 0
  %v1451 = vsel %vm347, %v1438, 0
  %v1454 = vsel %vm347, %v1444, 0
  %v1457 = vsel %vm347, %v1446, 0
  %1459 = vmatpush.bf16.xpose.msra.mxu0 0
  %1460 = vmatpush.bf16.xpose.msra.mxu0 0
  %1461 = vmatpush.bf16.xpose.msra.mxu0 0
  %1462 = vmatpush.bf16.xpose.msra.mxu0 0
  %1463 = vmatpush.bf16.xpose.msra.mxu0 0
  %1464 = vmatpush.bf16.xpose.msra.mxu0 0
  %1465 = vmatpush.bf16.xpose.msra.mxu0 %v1457
  %1466 = vmatpush.bf16.xpose.msra.mxu0 %v1454
  %1467 = vmatmul.bf16.gmra.mxu0 %v1448
  %v1468 = vpop.f32.mrf.mxu0
  %v1469 = vadd.f32 %v58, %v1468
  %v1470 = vpop.f32.mrf.mxu0
  %v1471 = vadd.f32 %v59, %v1470
  %1472 = vmatmul.bf16.gmra.mxu0 %v1451
  %v1473 = vpop.f32.mrf.mxu0
  %v1474 = vadd.f32 %v60, %v1473
  %v1475 = vpop.f32.mrf.mxu0
  %v1476 = vadd.f32 %v61, %v1475
  %1477 = vdwg.mxu0
  %v1478 = vsel %vm379, %v1469, -inf
  %1479 = vmax.xlane.f32.xlu0 %v1478
  %v1480 = vpop.xlane.xlu0 %1479
  %v1481 = vsel %vm379, %v1471, -inf
  %1482 = vmax.xlane.f32.xlu0 %v1481
  %v1483 = vpop.xlane.xlu0 %1482
  %v1484 = vsel %vm379, %v1474, -inf
  %1485 = vmax.xlane.f32.xlu0 %v1484
  %v1486 = vpop.xlane.xlu0 %1485
  %v1487 = vsel %vm379, %v1476, -inf
  %1488 = vmax.xlane.f32.xlu0 %v1487
  %v1489 = vpop.xlane.xlu0 %1488
  %v1490 = vsub.f32 %v1469, %v1480
  %v1491 = vsub.f32 %v1471, %v1483
  %v1492 = vsub.f32 %v1474, %v1486
  %v1493 = vsub.f32 %v1476, %v1489
  %v1494 = vmul.f32 %v1490, 1.442695
  %v1495 = vpow.pop %v1494
  %v1496 = vmul.f32 %v1491, 1.442695
  %v1497 = vpow.pop %v1496
  %v1498 = vmul.f32 %v1492, 1.442695
  %v1499 = vpow.pop %v1498
  %v1500 = vmul.f32 %v1493, 1.442695
  %v1501 = vpow.pop %v1500
  %v1502 = vsel %vm379, %v1495, 0.0
  %1503 = vadd.xlane.f32.xlu0 %v1502
  %v1504 = vpop.xlane.xlu0 %1503
  %v1505 = vsel %vm379, %v1497, 0.0
  %1506 = vadd.xlane.f32.xlu0 %v1505
  %v1507 = vpop.xlane.xlu0 %1506
  %v1508 = vsel %vm379, %v1499, 0.0
  %1509 = vadd.xlane.f32.xlu0 %v1508
  %v1510 = vpop.xlane.xlu0 %1509
  %v1511 = vsel %vm379, %v1501, 0.0
  %1512 = vadd.xlane.f32.xlu0 %v1511
  %v1513 = vpop.xlane.xlu0 %1512
  %v1514 = vrcp.pop %v1504
  %v1515 = vrcp.pop %v1507
  %v1516 = vrcp.pop %v1510
  %v1517 = vrcp.pop %v1513
  %v1518 = vmul.f32 %v1495, %v1514
  %v1519 = vmul.f32 %v1497, %v1515
  %v1520 = vmul.f32 %v1499, %v1516
  %v1521 = vmul.f32 %v1501, %v1517
  %v1522 = vpack.c.bf16 %v1519, %v1518
  %v1523 = vpack.c.bf16 %v1521, %v1520
  %v1525 = vsel %vm379, %v1522, 0
  %v1528 = vsel %vm379, %v1523, 0
  %1530 = vmatpush.bf16.msra.mxu0 0
  %1531 = vmatpush.bf16.msra.mxu0 0
  %1532 = vmatpush.bf16.msra.mxu0 0
  %1533 = vmatpush.bf16.msra.mxu0 0
  %1534 = vmatpush.bf16.msra.mxu0 0
  %1535 = vmatpush.bf16.msra.mxu0 0
  %1536 = vmatpush.bf16.msra.mxu0 %v1440
  %1537 = vmatpush.bf16.msra.mxu0 %v1439
  %1538 = vmatmul.bf16.gmra.mxu0 %v1525
  %v1539 = vpop.f32.mrf.mxu0
  %v1540 = vadd.f32 0.0, %v1539
  %v1541 = vpop.f32.mrf.mxu0
  %v1542 = vadd.f32 0.0, %v1541
  %1543 = vmatmul.bf16.gmra.mxu0 %v1528
  %v1544 = vpop.f32.mrf.mxu0
  %v1545 = vadd.f32 0.0, %v1544
  %v1546 = vpop.f32.mrf.mxu0
  %v1547 = vadd.f32 0.0, %v1546
  %1548 = vdwg.mxu0
  %1549 = vrot.lane.b32.xlu0 %v1437, 112
  %v1550 = vpop.permute.xlu0 %1549
  %1551 = vrot.lane.b32.xlu0 %v1438, 112
  %v1552 = vpop.permute.xlu0 %1551
  %1553 = vrot.lane.b32.xlu0 %v1437, 48
  %v1554 = vpop.permute.xlu0 %1553
  %1555 = vrot.lane.b32.xlu0 %v1438, 48
  %v1556 = vpop.permute.xlu0 %1555
  %v1558 = vsel %vm347, %v1550, 0
  %v1561 = vsel %vm347, %v1552, 0
  %v1564 = vsel %vm347, %v1554, 0
  %v1567 = vsel %vm347, %v1556, 0
  %1569 = vmatpush.bf16.xpose.msra.mxu0 0
  %1570 = vmatpush.bf16.xpose.msra.mxu0 0
  %1571 = vmatpush.bf16.xpose.msra.mxu0 0
  %1572 = vmatpush.bf16.xpose.msra.mxu0 0
  %1573 = vmatpush.bf16.xpose.msra.mxu0 0
  %1574 = vmatpush.bf16.xpose.msra.mxu0 0
  %1575 = vmatpush.bf16.xpose.msra.mxu0 %v1567
  %1576 = vmatpush.bf16.xpose.msra.mxu0 %v1564
  %1577 = vmatmul.bf16.gmra.mxu0 %v1558
  %v1578 = vpop.f32.mrf.mxu0
  %v1579 = vadd.f32 %v58, %v1578
  %v1580 = vpop.f32.mrf.mxu0
  %v1581 = vadd.f32 %v59, %v1580
  %1582 = vmatmul.bf16.gmra.mxu0 %v1561
  %v1583 = vpop.f32.mrf.mxu0
  %v1584 = vadd.f32 %v60, %v1583
  %v1585 = vpop.f32.mrf.mxu0
  %v1586 = vadd.f32 %v61, %v1585
  %1587 = vdwg.mxu0
  %v1588 = vsel %vm379, %v1579, -inf
  %1589 = vmax.xlane.f32.xlu0 %v1588
  %v1590 = vpop.xlane.xlu0 %1589
  %v1591 = vsel %vm379, %v1581, -inf
  %1592 = vmax.xlane.f32.xlu0 %v1591
  %v1593 = vpop.xlane.xlu0 %1592
  %v1594 = vsel %vm379, %v1584, -inf
  %1595 = vmax.xlane.f32.xlu0 %v1594
  %v1596 = vpop.xlane.xlu0 %1595
  %v1597 = vsel %vm379, %v1586, -inf
  %1598 = vmax.xlane.f32.xlu0 %v1597
  %v1599 = vpop.xlane.xlu0 %1598
  %v1600 = vsub.f32 %v1579, %v1590
  %v1601 = vsub.f32 %v1581, %v1593
  %v1602 = vsub.f32 %v1584, %v1596
  %v1603 = vsub.f32 %v1586, %v1599
  %v1604 = vmul.f32 %v1600, 1.442695
  %v1605 = vpow.pop %v1604
  %v1606 = vmul.f32 %v1601, 1.442695
  %v1607 = vpow.pop %v1606
  %v1608 = vmul.f32 %v1602, 1.442695
  %v1609 = vpow.pop %v1608
  %v1610 = vmul.f32 %v1603, 1.442695
  %v1611 = vpow.pop %v1610
  %v1612 = vsel %vm379, %v1605, 0.0
  %1613 = vadd.xlane.f32.xlu0 %v1612
  %v1614 = vpop.xlane.xlu0 %1613
  %v1615 = vsel %vm379, %v1607, 0.0
  %1616 = vadd.xlane.f32.xlu0 %v1615
  %v1617 = vpop.xlane.xlu0 %1616
  %v1618 = vsel %vm379, %v1609, 0.0
  %1619 = vadd.xlane.f32.xlu0 %v1618
  %v1620 = vpop.xlane.xlu0 %1619
  %v1621 = vsel %vm379, %v1611, 0.0
  %1622 = vadd.xlane.f32.xlu0 %v1621
  %v1623 = vpop.xlane.xlu0 %1622
  %v1624 = vrcp.pop %v1614
  %v1625 = vrcp.pop %v1617
  %v1626 = vrcp.pop %v1620
  %v1627 = vrcp.pop %v1623
  %v1628 = vmul.f32 %v1605, %v1624
  %v1629 = vmul.f32 %v1607, %v1625
  %v1630 = vmul.f32 %v1609, %v1626
  %v1631 = vmul.f32 %v1611, %v1627
  %v1632 = vpack.c.bf16 %v1629, %v1628
  %v1633 = vpack.c.bf16 %v1631, %v1630
  %1636 = vrot.lane.b32.xlu0 %v1439, 112
  %v1637 = vpop.permute.xlu0 %1636
  %1638 = vrot.lane.b32.xlu0 %v1440, 112
  %v1639 = vpop.permute.xlu0 %1638
  %v1643 = vsel %vm379, %v1632, 0
  %v1646 = vsel %vm379, %v1633, 0
  %1648 = vmatpush.bf16.msra.mxu0 0
  %1649 = vmatpush.bf16.msra.mxu0 0
  %1650 = vmatpush.bf16.msra.mxu0 0
  %1651 = vmatpush.bf16.msra.mxu0 0
  %1652 = vmatpush.bf16.msra.mxu0 0
  %1653 = vmatpush.bf16.msra.mxu0 0
  %1654 = vmatpush.bf16.msra.mxu0 %v1639
  %1655 = vmatpush.bf16.msra.mxu0 %v1637
  %1656 = vmatmul.bf16.gmra.mxu0 %v1643
  %v1657 = vpop.f32.mrf.mxu0
  %v1658 = vadd.f32 0.0, %v1657
  %v1659 = vpop.f32.mrf.mxu0
  %v1660 = vadd.f32 0.0, %v1659
  %1661 = vmatmul.bf16.gmra.mxu0 %v1646
  %v1662 = vpop.f32.mrf.mxu0
  %v1663 = vadd.f32 0.0, %v1662
  %v1664 = vpop.f32.mrf.mxu0
  %v1665 = vadd.f32 0.0, %v1664
  %1666 = vdwg.mxu0
  %1667 = vrot.lane.b32.xlu0 %v1437, 96
  %v1668 = vpop.permute.xlu0 %1667
  %1669 = vrot.lane.b32.xlu0 %v1438, 96
  %v1670 = vpop.permute.xlu0 %1669
  %1671 = vrot.lane.b32.xlu0 %v1437, 32
  %v1672 = vpop.permute.xlu0 %1671
  %1673 = vrot.lane.b32.xlu0 %v1438, 32
  %v1674 = vpop.permute.xlu0 %1673
  %v1676 = vsel %vm347, %v1668, 0
  %v1679 = vsel %vm347, %v1670, 0
  %v1682 = vsel %vm347, %v1672, 0
  %v1685 = vsel %vm347, %v1674, 0
  %1687 = vmatpush.bf16.xpose.msra.mxu0 0
  %1688 = vmatpush.bf16.xpose.msra.mxu0 0
  %1689 = vmatpush.bf16.xpose.msra.mxu0 0
  %1690 = vmatpush.bf16.xpose.msra.mxu0 0
  %1691 = vmatpush.bf16.xpose.msra.mxu0 0
  %1692 = vmatpush.bf16.xpose.msra.mxu0 0
  %1693 = vmatpush.bf16.xpose.msra.mxu0 %v1685
  %1694 = vmatpush.bf16.xpose.msra.mxu0 %v1682
  %1695 = vmatmul.bf16.gmra.mxu0 %v1676
  %v1696 = vpop.f32.mrf.mxu0
  %v1697 = vadd.f32 %v58, %v1696
  %v1698 = vpop.f32.mrf.mxu0
  %v1699 = vadd.f32 %v59, %v1698
  %1700 = vmatmul.bf16.gmra.mxu0 %v1679
  %v1701 = vpop.f32.mrf.mxu0
  %v1702 = vadd.f32 %v60, %v1701
  %v1703 = vpop.f32.mrf.mxu0
  %v1704 = vadd.f32 %v61, %v1703
  %1705 = vdwg.mxu0
  %v1706 = vsel %vm379, %v1697, -inf
  %1707 = vmax.xlane.f32.xlu0 %v1706
  %v1708 = vpop.xlane.xlu0 %1707
  %v1709 = vsel %vm379, %v1699, -inf
  %1710 = vmax.xlane.f32.xlu0 %v1709
  %v1711 = vpop.xlane.xlu0 %1710
  %v1712 = vsel %vm379, %v1702, -inf
  %1713 = vmax.xlane.f32.xlu0 %v1712
  %v1714 = vpop.xlane.xlu0 %1713
  %v1715 = vsel %vm379, %v1704, -inf
  %1716 = vmax.xlane.f32.xlu0 %v1715
  %v1717 = vpop.xlane.xlu0 %1716
  %v1718 = vsub.f32 %v1697, %v1708
  %v1719 = vsub.f32 %v1699, %v1711
  %v1720 = vsub.f32 %v1702, %v1714
  %v1721 = vsub.f32 %v1704, %v1717
  %v1722 = vmul.f32 %v1718, 1.442695
  %v1723 = vpow.pop %v1722
  %v1724 = vmul.f32 %v1719, 1.442695
  %v1725 = vpow.pop %v1724
  %v1726 = vmul.f32 %v1720, 1.442695
  %v1727 = vpow.pop %v1726
  %v1728 = vmul.f32 %v1721, 1.442695
  %v1729 = vpow.pop %v1728
  %v1730 = vsel %vm379, %v1723, 0.0
  %1731 = vadd.xlane.f32.xlu0 %v1730
  %v1732 = vpop.xlane.xlu0 %1731
  %v1733 = vsel %vm379, %v1725, 0.0
  %1734 = vadd.xlane.f32.xlu0 %v1733
  %v1735 = vpop.xlane.xlu0 %1734
  %v1736 = vsel %vm379, %v1727, 0.0
  %1737 = vadd.xlane.f32.xlu0 %v1736
  %v1738 = vpop.xlane.xlu0 %1737
  %v1739 = vsel %vm379, %v1729, 0.0
  %1740 = vadd.xlane.f32.xlu0 %v1739
  %v1741 = vpop.xlane.xlu0 %1740
  %v1742 = vrcp.pop %v1732
  %v1743 = vrcp.pop %v1735
  %v1744 = vrcp.pop %v1738
  %v1745 = vrcp.pop %v1741
  %v1746 = vmul.f32 %v1723, %v1742
  %v1747 = vmul.f32 %v1725, %v1743
  %v1748 = vmul.f32 %v1727, %v1744
  %v1749 = vmul.f32 %v1729, %v1745
  %v1750 = vpack.c.bf16 %v1747, %v1746
  %v1751 = vpack.c.bf16 %v1749, %v1748
  %1752 = vrot.lane.b32.xlu0 %v1439, 96
  %v1753 = vpop.permute.xlu0 %1752
  %1754 = vrot.lane.b32.xlu0 %v1440, 96
  %v1755 = vpop.permute.xlu0 %1754
  %v1759 = vsel %vm379, %v1750, 0
  %v1762 = vsel %vm379, %v1751, 0
  %1764 = vmatpush.bf16.msra.mxu0 0
  %1765 = vmatpush.bf16.msra.mxu0 0
  %1766 = vmatpush.bf16.msra.mxu0 0
  %1767 = vmatpush.bf16.msra.mxu0 0
  %1768 = vmatpush.bf16.msra.mxu0 0
  %1769 = vmatpush.bf16.msra.mxu0 0
  %1770 = vmatpush.bf16.msra.mxu0 %v1755
  %1771 = vmatpush.bf16.msra.mxu0 %v1753
  %1772 = vmatmul.bf16.gmra.mxu0 %v1759
  %v1773 = vpop.f32.mrf.mxu0
  %v1774 = vadd.f32 0.0, %v1773
  %v1775 = vpop.f32.mrf.mxu0
  %v1776 = vadd.f32 0.0, %v1775
  %1777 = vmatmul.bf16.gmra.mxu0 %v1762
  %v1778 = vpop.f32.mrf.mxu0
  %v1779 = vadd.f32 0.0, %v1778
  %v1780 = vpop.f32.mrf.mxu0
  %v1781 = vadd.f32 0.0, %v1780
  %1782 = vdwg.mxu0
  %1783 = vrot.lane.b32.xlu0 %v1437, 80
  %v1784 = vpop.permute.xlu0 %1783
  %1785 = vrot.lane.b32.xlu0 %v1438, 80
  %v1786 = vpop.permute.xlu0 %1785
  %1787 = vrot.lane.b32.xlu0 %v1437, 16
  %v1788 = vpop.permute.xlu0 %1787
  %1789 = vrot.lane.b32.xlu0 %v1438, 16
  %v1790 = vpop.permute.xlu0 %1789
  %v1792 = vsel %vm347, %v1784, 0
  %v1795 = vsel %vm347, %v1786, 0
  %v1798 = vsel %vm347, %v1788, 0
  %v1801 = vsel %vm347, %v1790, 0
  %1803 = vmatpush.bf16.xpose.msra.mxu0 0
  %1804 = vmatpush.bf16.xpose.msra.mxu0 0
  %1805 = vmatpush.bf16.xpose.msra.mxu0 0
  %1806 = vmatpush.bf16.xpose.msra.mxu0 0
  %1807 = vmatpush.bf16.xpose.msra.mxu0 0
  %1808 = vmatpush.bf16.xpose.msra.mxu0 0
  %1809 = vmatpush.bf16.xpose.msra.mxu0 %v1801
  %1810 = vmatpush.bf16.xpose.msra.mxu0 %v1798
  %1811 = vmatmul.bf16.gmra.mxu0 %v1792
  %v1812 = vpop.f32.mrf.mxu0
  %v1813 = vadd.f32 %v58, %v1812
  %v1814 = vpop.f32.mrf.mxu0
  %v1815 = vadd.f32 %v59, %v1814
  %1816 = vmatmul.bf16.gmra.mxu0 %v1795
  %v1817 = vpop.f32.mrf.mxu0
  %v1818 = vadd.f32 %v60, %v1817
  %v1819 = vpop.f32.mrf.mxu0
  %v1820 = vadd.f32 %v61, %v1819
  %1821 = vdwg.mxu0
  %v1822 = vsel %vm379, %v1813, -inf
  %1823 = vmax.xlane.f32.xlu0 %v1822
  %v1824 = vpop.xlane.xlu0 %1823
  %v1825 = vsel %vm379, %v1815, -inf
  %1826 = vmax.xlane.f32.xlu0 %v1825
  %v1827 = vpop.xlane.xlu0 %1826
  %v1828 = vsel %vm379, %v1818, -inf
  %1829 = vmax.xlane.f32.xlu0 %v1828
  %v1830 = vpop.xlane.xlu0 %1829
  %v1831 = vsel %vm379, %v1820, -inf
  %1832 = vmax.xlane.f32.xlu0 %v1831
  %v1833 = vpop.xlane.xlu0 %1832
  %v1834 = vsub.f32 %v1813, %v1824
  %v1835 = vsub.f32 %v1815, %v1827
  %v1836 = vsub.f32 %v1818, %v1830
  %v1837 = vsub.f32 %v1820, %v1833
  %v1838 = vmul.f32 %v1834, 1.442695
  %v1839 = vpow.pop %v1838
  %v1840 = vmul.f32 %v1835, 1.442695
  %v1841 = vpow.pop %v1840
  %v1842 = vmul.f32 %v1836, 1.442695
  %v1843 = vpow.pop %v1842
  %v1844 = vmul.f32 %v1837, 1.442695
  %v1845 = vpow.pop %v1844
  %v1846 = vsel %vm379, %v1839, 0.0
  %1847 = vadd.xlane.f32.xlu0 %v1846
  %v1848 = vpop.xlane.xlu0 %1847
  %v1849 = vsel %vm379, %v1841, 0.0
  %1850 = vadd.xlane.f32.xlu0 %v1849
  %v1851 = vpop.xlane.xlu0 %1850
  %v1852 = vsel %vm379, %v1843, 0.0
  %1853 = vadd.xlane.f32.xlu0 %v1852
  %v1854 = vpop.xlane.xlu0 %1853
  %v1855 = vsel %vm379, %v1845, 0.0
  %1856 = vadd.xlane.f32.xlu0 %v1855
  %v1857 = vpop.xlane.xlu0 %1856
  %v1858 = vrcp.pop %v1848
  %v1859 = vrcp.pop %v1851
  %v1860 = vrcp.pop %v1854
  %v1861 = vrcp.pop %v1857
  %v1862 = vmul.f32 %v1839, %v1858
  %v1863 = vmul.f32 %v1841, %v1859
  %v1864 = vmul.f32 %v1843, %v1860
  %v1865 = vmul.f32 %v1845, %v1861
  %v1866 = vpack.c.bf16 %v1863, %v1862
  %v1867 = vpack.c.bf16 %v1865, %v1864
  %1868 = vrot.lane.b32.xlu0 %v1439, 80
  %v1869 = vpop.permute.xlu0 %1868
  %1870 = vrot.lane.b32.xlu0 %v1440, 80
  %v1871 = vpop.permute.xlu0 %1870
  %v1875 = vsel %vm379, %v1866, 0
  %v1878 = vsel %vm379, %v1867, 0
  %1880 = vmatpush.bf16.msra.mxu0 0
  %1881 = vmatpush.bf16.msra.mxu0 0
  %1882 = vmatpush.bf16.msra.mxu0 0
  %1883 = vmatpush.bf16.msra.mxu0 0
  %1884 = vmatpush.bf16.msra.mxu0 0
  %1885 = vmatpush.bf16.msra.mxu0 0
  %1886 = vmatpush.bf16.msra.mxu0 %v1871
  %1887 = vmatpush.bf16.msra.mxu0 %v1869
  %1888 = vmatmul.bf16.gmra.mxu0 %v1875
  %v1889 = vpop.f32.mrf.mxu0
  %v1890 = vadd.f32 0.0, %v1889
  %v1891 = vpop.f32.mrf.mxu0
  %v1892 = vadd.f32 0.0, %v1891
  %1893 = vmatmul.bf16.gmra.mxu0 %v1878
  %v1894 = vpop.f32.mrf.mxu0
  %v1895 = vadd.f32 0.0, %v1894
  %v1896 = vpop.f32.mrf.mxu0
  %v1897 = vadd.f32 0.0, %v1896
  %1898 = vdwg.mxu0
  %1903 = vrot.lane.b32.xlu0 %v1658, 16
  %v1904 = vpop.permute.xlu0 %1903
  %1905 = vrot.lane.b32.xlu0 %v1660, 16
  %v1906 = vpop.permute.xlu0 %1905
  %1907 = vrot.lane.b32.xlu0 %v1663, 16
  %v1908 = vpop.permute.xlu0 %1907
  %1909 = vrot.lane.b32.xlu0 %v1665, 16
  %v1910 = vpop.permute.xlu0 %1909
  %1919 = vrot.lane.b32.xlu0 %v1774, 32
  %v1920 = vpop.permute.xlu0 %1919
  %1921 = vrot.lane.b32.xlu0 %v1776, 32
  %v1922 = vpop.permute.xlu0 %1921
  %1923 = vrot.lane.b32.xlu0 %v1779, 32
  %v1924 = vpop.permute.xlu0 %1923
  %1925 = vrot.lane.b32.xlu0 %v1781, 32
  %v1926 = vpop.permute.xlu0 %1925
  %1935 = vrot.lane.b32.xlu0 %v1890, 48
  %v1936 = vpop.permute.xlu0 %1935
  %1937 = vrot.lane.b32.xlu0 %v1892, 48
  %v1938 = vpop.permute.xlu0 %1937
  %1939 = vrot.lane.b32.xlu0 %v1895, 48
  %v1940 = vpop.permute.xlu0 %1939
  %1941 = vrot.lane.b32.xlu0 %v1897, 48
  %v1942 = vpop.permute.xlu0 %1941
  %v1947 = vsel %vm347, %v1540, %v1904
  %v1948 = vsel %vm347, %v1542, %v1906
  %v1949 = vsel %vm347, %v1545, %v1908
  %v1950 = vsel %vm347, %v1547, %v1910
  %v1951 = vsel %vm379, %v1947, %v1920
  %v1952 = vsel %vm379, %v1948, %v1922
  %v1953 = vsel %vm379, %v1949, %v1924
  %v1954 = vsel %vm379, %v1950, %v1926
  %v1955 = vsel %vm857, %v1951, %v1936
  %v1956 = vsel %vm857, %v1952, %v1938
  %v1957 = vsel %vm857, %v1953, %v1940
  %v1958 = vsel %vm857, %v1954, %v1942
  %s1959 = scalar_lea.vmem %s8, 32
  %v1960 = vld [vmem:[%s1959] sm:$0xf]
  %v1961 = vld [vmem:[%s1959 + $0x4] sm:$0xf]
  %v1962 = vld [vmem:[%s1959 + $0x8] sm:$0xf]
  %v1963 = vld [vmem:[%s1959 + $0xc] sm:$0xf]
  %v1964 = vld [vmem:[%s1959 + $0x10] sm:$0xf]
  %v1965 = vld [vmem:[%s1959 + $0x14] sm:$0xf]
  %v1966 = vld [vmem:[%s1959 + $0x18] sm:$0xf]
  %v1967 = vld [vmem:[%s1959 + $0x1c] sm:$0xf]
  %v1968 = vpack.c.bf16 %v1956, %v1955
  %v1969 = vpack.c.bf16 %v1958, %v1957
  %v1978 = vunpack.c.l.b16 %v1960
  %v1979 = vunpack.c.l.b16 %v1961
  %v1980 = vunpack.c.l.b16 %v1962
  %v1981 = vunpack.c.l.b16 %v1963
  %v1982 = vunpack.c.l.b16 %v1964
  %v1983 = vunpack.c.l.b16 %v1965
  %v1984 = vunpack.c.l.b16 %v1966
  %v1985 = vunpack.c.l.b16 %v1967
  %v1986 = vpack.c.b16 %v1979, %v1978
  %v1987 = vpack.c.b16 %v1981, %v1980
  %v1988 = vpack.c.b16 %v1983, %v1982
  %v1989 = vpack.c.b16 %v1985, %v1984
  %v1995 = vsel %vm100, %v1968, 0
  %v1998 = vsel %vm100, %v1969, 0
  %2000 = vmatpush.bf16.msra.mxu0 0
  %2001 = vmatpush.bf16.msra.mxu0 0
  %2002 = vmatpush.bf16.msra.mxu0 0
  %2003 = vmatpush.bf16.msra.mxu0 0
  %2004 = vmatpush.bf16.msra.mxu0 %v1989
  %2005 = vmatpush.bf16.msra.mxu0 %v1988
  %2006 = vmatpush.bf16.msra.mxu0 %v1987
  %2007 = vmatpush.bf16.msra.mxu0 %v1986
  %2008 = vmatmul.bf16.gmra.mxu0 %v1995
  %v2009 = vpop.f32.mrf.mxu0
  %v2010 = vadd.f32 0.0, %v2009
  %v2011 = vpop.f32.mrf.mxu0
  %v2012 = vadd.f32 0.0, %v2011
  %2013 = vmatmul.bf16.gmra.mxu0 %v1998
  %v2014 = vpop.f32.mrf.mxu0
  %v2015 = vadd.f32 0.0, %v2014
  %v2016 = vpop.f32.mrf.mxu0
  %v2017 = vadd.f32 0.0, %v2016
  %2018 = vdwg.mxu0
  %v2019 = vadd.f32 %v1225, %v2010
  %v2020 = vadd.f32 %v1226, %v2012
  %v2021 = vadd.f32 %v1227, %v2015
  %v2022 = vadd.f32 %v1228, %v2017
  %s2023 = scalar_lea.vmem %s9, 1
  %v2024 = vld [vmem:[%s2023] sm:$0x1]
  %v2026 = vperm.slane %v2024, 0
  %v2028 = vadd.f32 %v2019, %v2026
  %v2029 = vadd.f32 %v2020, %v2026
  %v2030 = vadd.f32 %v2021, %v2026
  %v2031 = vadd.f32 %v2022, %v2026
  %s2032 = scalar_lea.vmem %s10, 1
  %v2033 = vld [vmem:[%s2032] sm:$0x1]
  %s2034 = scalar_lea.vmem %s11, 1
  %v2035 = vld [vmem:[%s2034] sm:$0x1]
  %v2036 = vsel %vm100, %v2028, 0.0
  %2037 = vadd.xlane.f32.xlu0 %v2036
  %v2038 = vpop.xlane.xlu0 %2037
  %v2039 = vsel %vm100, %v2029, 0.0
  %2040 = vadd.xlane.f32.xlu0 %v2039
  %v2041 = vpop.xlane.xlu0 %2040
  %v2042 = vsel %vm100, %v2030, 0.0
  %2043 = vadd.xlane.f32.xlu0 %v2042
  %v2044 = vpop.xlane.xlu0 %2043
  %v2045 = vsel %vm100, %v2031, 0.0
  %2046 = vadd.xlane.f32.xlu0 %v2045
  %v2047 = vpop.xlane.xlu0 %2046
  %v2048 = vmul.f32 %v2038, %v146
  %v2049 = vmul.f32 %v2041, %v146
  %v2050 = vmul.f32 %v2044, %v146
  %v2051 = vmul.f32 %v2047, %v146
  %v2052 = vsub.f32 %v2028, %v2048
  %v2053 = vsub.f32 %v2029, %v2049
  %v2054 = vsub.f32 %v2030, %v2050
  %v2055 = vsub.f32 %v2031, %v2051
  %v2056 = vmul.f32 %v2052, %v2052
  %v2057 = vmul.f32 %v2053, %v2053
  %v2058 = vmul.f32 %v2054, %v2054
  %v2059 = vmul.f32 %v2055, %v2055
  %v2060 = vsel %vm100, %v2056, 0.0
  %2061 = vadd.xlane.f32.xlu0 %v2060
  %v2062 = vpop.xlane.xlu0 %2061
  %v2063 = vsel %vm100, %v2057, 0.0
  %2064 = vadd.xlane.f32.xlu0 %v2063
  %v2065 = vpop.xlane.xlu0 %2064
  %v2066 = vsel %vm100, %v2058, 0.0
  %2067 = vadd.xlane.f32.xlu0 %v2066
  %v2068 = vpop.xlane.xlu0 %2067
  %v2069 = vsel %vm100, %v2059, 0.0
  %2070 = vadd.xlane.f32.xlu0 %v2069
  %v2071 = vpop.xlane.xlu0 %2070
  %v2072 = vmul.f32 %v2062, %v146
  %v2073 = vmul.f32 %v2065, %v146
  %v2074 = vmul.f32 %v2068, %v146
  %v2075 = vmul.f32 %v2071, %v146
  %v2076 = vadd.f32 %v2072, 1e-05
  %v2077 = vadd.f32 %v2073, 1e-05
  %v2078 = vadd.f32 %v2074, 1e-05
  %v2079 = vadd.f32 %v2075, 1e-05
  %v2080 = vrsqrt.pop %v2076
  %v2081 = vmul.f32 %v2080, %v2076
  %v2082 = vmul.f32 %v2081, %v2080
  %v2083 = vmul.f32 0.5, %v2082
  %v2084 = vsub.f32 1.5, %v2083
  %v2085 = vmul.f32 %v2080, %v2084
  %vm2086 = vweird.f32 %v2076
  %vm2087 = vweird.f32 %v2080
  %vm2088 = vmor %vm2086, %vm2087
  %v2089 = vsel %vm2088, %v2080, %v2085
  %v2090 = vrsqrt.pop %v2077
  %v2091 = vmul.f32 %v2090, %v2077
  %v2092 = vmul.f32 %v2091, %v2090
  %v2093 = vmul.f32 0.5, %v2092
  %v2094 = vsub.f32 1.5, %v2093
  %v2095 = vmul.f32 %v2090, %v2094
  %vm2096 = vweird.f32 %v2077
  %vm2097 = vweird.f32 %v2090
  %vm2098 = vmor %vm2096, %vm2097
  %v2099 = vsel %vm2098, %v2090, %v2095
  %v2100 = vrsqrt.pop %v2078
  %v2101 = vmul.f32 %v2100, %v2078
  %v2102 = vmul.f32 %v2101, %v2100
  %v2103 = vmul.f32 0.5, %v2102
  %v2104 = vsub.f32 1.5, %v2103
  %v2105 = vmul.f32 %v2100, %v2104
  %vm2106 = vweird.f32 %v2078
  %vm2107 = vweird.f32 %v2100
  %vm2108 = vmor %vm2106, %vm2107
  %v2109 = vsel %vm2108, %v2100, %v2105
  %v2110 = vrsqrt.pop %v2079
  %v2111 = vmul.f32 %v2110, %v2079
  %v2112 = vmul.f32 %v2111, %v2110
  %v2113 = vmul.f32 0.5, %v2112
  %v2114 = vsub.f32 1.5, %v2113
  %v2115 = vmul.f32 %v2110, %v2114
  %vm2116 = vweird.f32 %v2079
  %vm2117 = vweird.f32 %v2110
  %vm2118 = vmor %vm2116, %vm2117
  %v2119 = vsel %vm2118, %v2110, %v2115
  %v2120 = vmul.f32 %v2052, %v2089
  %v2121 = vmul.f32 %v2053, %v2099
  %v2122 = vmul.f32 %v2054, %v2109
  %v2123 = vmul.f32 %v2055, %v2119
  %v2125 = vperm.slane %v2033, 0
  %v2127 = vmul.f32 %v2120, %v2125
  %v2128 = vmul.f32 %v2121, %v2125
  %v2129 = vmul.f32 %v2122, %v2125
  %v2130 = vmul.f32 %v2123, %v2125
  %v2132 = vperm.slane %v2035, 0
  %v2134 = vadd.f32 %v2127, %v2132
  %v2135 = vadd.f32 %v2128, %v2132
  %v2136 = vadd.f32 %v2129, %v2132
  %v2137 = vadd.f32 %v2130, %v2132
  %s2138 = scalar_lea.vmem %s12, 32
  %v2139 = vld [vmem:[%s2138] sm:$0xf]
  %v2140 = vld [vmem:[%s2138 + $0x4] sm:$0xf]
  %v2141 = vld [vmem:[%s2138 + $0x8] sm:$0xf]
  %v2142 = vld [vmem:[%s2138 + $0xc] sm:$0xf]
  %v2143 = vld [vmem:[%s2138 + $0x10] sm:$0xf]
  %v2144 = vld [vmem:[%s2138 + $0x14] sm:$0xf]
  %v2145 = vld [vmem:[%s2138 + $0x18] sm:$0xf]
  %v2146 = vld [vmem:[%s2138 + $0x1c] sm:$0xf]
  %v2147 = vpack.c.bf16 %v2135, %v2134
  %v2148 = vpack.c.bf16 %v2137, %v2136
  %s2149 = scalar_lea.vmem %s13, 1
  %v2150 = vld [vmem:[%s2149] sm:$0x1]
  %v2152 = vperm.slane %v2150, 0
  %v2162 = vunpack.c.l.b16 %v2139
  %v2163 = vunpack.c.l.b16 %v2140
  %v2164 = vunpack.c.l.b16 %v2141
  %v2165 = vunpack.c.l.b16 %v2142
  %v2166 = vunpack.c.l.b16 %v2143
  %v2167 = vunpack.c.l.b16 %v2144
  %v2168 = vunpack.c.l.b16 %v2145
  %v2169 = vunpack.c.l.b16 %v2146
  %v2170 = vpack.c.b16 %v2163, %v2162
  %v2171 = vpack.c.b16 %v2165, %v2164
  %v2172 = vpack.c.b16 %v2167, %v2166
  %v2173 = vpack.c.b16 %v2169, %v2168
  %v2179 = vsel %vm100, %v2147, 0
  %v2182 = vsel %vm100, %v2148, 0
  %2184 = vmatpush.bf16.msra.mxu0 0
  %2185 = vmatpush.bf16.msra.mxu0 0
  %2186 = vmatpush.bf16.msra.mxu0 0
  %2187 = vmatpush.bf16.msra.mxu0 0
  %2188 = vmatpush.bf16.msra.mxu0 %v2173
  %2189 = vmatpush.bf16.msra.mxu0 %v2172
  %2190 = vmatpush.bf16.msra.mxu0 %v2171
  %2191 = vmatpush.bf16.msra.mxu0 %v2170
  %2192 = vmatmul.bf16.gmra.mxu0 %v2179
  %v2193 = vpop.f32.mrf.mxu0
  %v2194 = vadd.f32 %v2152, %v2193
  %v2195 = vpop.f32.mrf.mxu0
  %v2196 = vadd.f32 %v2152, %v2195
  %2197 = vmatmul.bf16.gmra.mxu0 %v2182
  %v2198 = vpop.f32.mrf.mxu0
  %v2199 = vadd.f32 %v2152, %v2198
  %v2200 = vpop.f32.mrf.mxu0
  %v2201 = vadd.f32 %v2152, %v2200
  %2202 = vdwg.mxu0
  %v2203 = vmul.f32 %v2194, 0.5
  %v2204 = vmul.f32 %v2196, 0.5
  %v2205 = vmul.f32 %v2199, 0.5
  %v2206 = vmul.f32 %v2201, 0.5
  %v2207 = vmul.f32 %v2194, 0.044715
  %v2208 = vmul.f32 %v2196, 0.044715
  %v2209 = vmul.f32 %v2199, 0.044715
  %v2210 = vmul.f32 %v2201, 0.044715
  %v2211 = vmul.f32 %v2207, %v2194
  %v2212 = vmul.f32 %v2208, %v2196
  %v2213 = vmul.f32 %v2209, %v2199
  %v2214 = vmul.f32 %v2210, %v2201
  %v2215 = vmul.f32 %v2211, %v2194
  %v2216 = vmul.f32 %v2212, %v2196
  %v2217 = vmul.f32 %v2213, %v2199
  %v2218 = vmul.f32 %v2214, %v2201
  %v2219 = vadd.f32 %v2194, %v2215
  %v2220 = vadd.f32 %v2196, %v2216
  %v2221 = vadd.f32 %v2199, %v2217
  %v2222 = vadd.f32 %v2201, %v2218
  %v2223 = vmul.f32 %v2219, 0.7978846
  %v2224 = vmul.f32 %v2220, 0.7978846
  %v2225 = vmul.f32 %v2221, 0.7978846
  %v2226 = vmul.f32 %v2222, 0.7978846
  %v2227 = vtanh.pop %v2223
  %v2228 = vtanh.pop %v2224
  %v2229 = vtanh.pop %v2225
  %v2230 = vtanh.pop %v2226
  %v2231 = vadd.f32 %v2227, 1.0
  %v2232 = vadd.f32 %v2228, 1.0
  %v2233 = vadd.f32 %v2229, 1.0
  %v2234 = vadd.f32 %v2230, 1.0
  %v2235 = vmul.f32 %v2203, %v2231
  %v2236 = vmul.f32 %v2204, %v2232
  %v2237 = vmul.f32 %v2205, %v2233
  %v2238 = vmul.f32 %v2206, %v2234
  %s2239 = scalar_lea.vmem %s14, 64
  %v2240 = vld [vmem:[%s2239] sm:$0xf]
  %v2241 = vld [vmem:[%s2239 + $0x4] sm:$0xf]
  %v2242 = vld [vmem:[%s2239 + $0x8] sm:$0xf]
  %v2243 = vld [vmem:[%s2239 + $0xc] sm:$0xf]
  %v2244 = vld [vmem:[%s2239 + $0x10] sm:$0xf]
  %v2245 = vld [vmem:[%s2239 + $0x14] sm:$0xf]
  %v2246 = vld [vmem:[%s2239 + $0x18] sm:$0xf]
  %v2247 = vld [vmem:[%s2239 + $0x1c] sm:$0xf]
  %v2248 = vld [vmem:[%s2239 + $0x20] sm:$0xf]
  %v2249 = vld [vmem:[%s2239 + $0x24] sm:$0xf]
  %v2250 = vld [vmem:[%s2239 + $0x28] sm:$0xf]
  %v2251 = vld [vmem:[%s2239 + $0x2c] sm:$0xf]
  %v2252 = vld [vmem:[%s2239 + $0x30] sm:$0xf]
  %v2253 = vld [vmem:[%s2239 + $0x34] sm:$0xf]
  %v2254 = vld [vmem:[%s2239 + $0x38] sm:$0xf]
  %v2255 = vld [vmem:[%s2239 + $0x3c] sm:$0xf]
  %v2256 = vpack.c.bf16 %v2236, %v2235
  %v2257 = vpack.c.bf16 %v2238, %v2237
  %s2258 = scalar_lea.vmem %s15, 1
  %v2259 = vld [vmem:[%s2258] sm:$0x1]
  %v2261 = vperm.slane %v2259, 0
  %v2279 = vunpack.c.l.b16 %v2240
  %v2280 = vunpack.c.l.b16 %v2241
  %v2281 = vunpack.c.l.b16 %v2242
  %v2282 = vunpack.c.l.b16 %v2243
  %v2283 = vunpack.c.l.b16 %v2244
  %v2284 = vunpack.c.l.b16 %v2245
  %v2285 = vunpack.c.l.b16 %v2246
  %v2286 = vunpack.c.l.b16 %v2247
  %v2287 = vunpack.c.l.b16 %v2248
  %v2288 = vunpack.c.l.b16 %v2249
  %v2289 = vunpack.c.l.b16 %v2250
  %v2290 = vunpack.c.l.b16 %v2251
  %v2291 = vunpack.c.l.b16 %v2252
  %v2292 = vunpack.c.l.b16 %v2253
  %v2293 = vunpack.c.l.b16 %v2254
  %v2294 = vunpack.c.l.b16 %v2255
  %v2295 = vpack.c.b16 %v2280, %v2279
  %v2296 = vpack.c.b16 %v2282, %v2281
  %v2297 = vpack.c.b16 %v2284, %v2283
  %v2298 = vpack.c.b16 %v2286, %v2285
  %v2299 = vpack.c.b16 %v2288, %v2287
  %v2300 = vpack.c.b16 %v2290, %v2289
  %v2301 = vpack.c.b16 %v2292, %v2291
  %v2302 = vpack.c.b16 %v2294, %v2293
  %2311 = vmatpush.bf16.msra.mxu0 %v2302
  %2312 = vmatpush.bf16.msra.mxu0 %v2301
  %2313 = vmatpush.bf16.msra.mxu0 %v2300
  %2314 = vmatpush.bf16.msra.mxu0 %v2299
  %2315 = vmatpush.bf16.msra.mxu0 %v2298
  %2316 = vmatpush.bf16.msra.mxu0 %v2297
  %2317 = vmatpush.bf16.msra.mxu0 %v2296
  %2318 = vmatpush.bf16.msra.mxu0 %v2295
  %2319 = vmatmul.bf16.gmra.mxu0 %v2256
  %v2320 = vpop.f32.mrf.mxu0
  %v2321 = vadd.f32 %v2261, %v2320
  %v2322 = vpop.f32.mrf.mxu0
  %v2323 = vadd.f32 %v2261, %v2322
  %2324 = vmatmul.bf16.gmra.mxu0 %v2257
  %v2325 = vpop.f32.mrf.mxu0
  %v2326 = vadd.f32 %v2261, %v2325
  %v2327 = vpop.f32.mrf.mxu0
  %v2328 = vadd.f32 %v2261, %v2327
  %2329 = vdwg.mxu0
  %v2330 = vadd.f32 %v2028, %v2321
  %v2331 = vadd.f32 %v2029, %v2323
  %v2332 = vadd.f32 %v2030, %v2326
  %v2333 = vadd.f32 %v2031, %v2328
  %2334 = vst.msk [vmem:[%s16] sm:$0xff] %vm100, %v2330
  %2335 = vst.msk [vmem:[%s16 + $0x8] sm:$0xff] %vm100, %v2331
  %2336 = vst.msk [vmem:[%s16 + $0x10] sm:$0xff] %vm100, %v2332
  %2337 = vst.msk [vmem:[%s16 + $0x18] sm:$0xff] %vm100, %v2333
  // Predicated region
  $region66: #{vit_mae_forward.2} parent=0 // pred_check
    _
  $region67: #{vit_mae_forward.2} parent=0 // pred_check_branch
    %2339 = sbr.rel (0) target = $region69
  $region68: #{vit_mae_forward.2} parent=0 // pred_region
    _
  $region69: #{vit_mae_forward.2} parent=0 // pred_fallthru
    _
  // Predicated region
  $region70: #{vit_mae_forward.2} parent=0 // pred_check
    _
  $region71: #{vit_mae_forward.2} parent=0 // pred_check_branch
    %2341 = sbr.rel (0) target = $region73
  $region72: #{vit_mae_forward.2} parent=0 // pred_region
    _
  $region73: #{vit_mae_forward.2} parent=0 // pred_fallthru
    _

// kernel: vit_mae_forward.3
$region0: #{vit_mae_forward.3}
  #allocation0 [shape = 'u32[]', space=smem, size = 0x4, offset = 0x4, fixed_abs, tag = 'smem constant byte address 0x4 - core index']
  #allocation1 [shape = 'u32[72,128]{1,0:T(1,128)}', space=vmem, size = 0x9000, scoped, tag = 'internal scratch']
  %s0 = inlined_call_operand.vmem [shape: f32[48,64], index: 0, kind: input, shape index: {}, may-alias: {0,16}]
  %s1 = inlined_call_operand.vmem [shape: f32[48,48], index: 1, kind: input, shape index: {}]
  %s2 = inlined_call_operand.vmem [shape: bf16[64,64], index: 2, kind: input, shape index: {}]
  %s3 = inlined_call_operand.vmem [shape: f32[1,64], index: 3, kind: input, shape index: {}]
  %s4 = inlined_call_operand.vmem [shape: f32[2,1,64], index: 4, kind: input, shape index: {}]
  %s5 = inlined_call_operand.vmem [shape: f32[2,1,64], index: 5, kind: input, shape index: {}]
  %s6 = inlined_call_operand.vmem [shape: bf16[2,64,192], index: 6, kind: input, shape index: {}]
  %s7 = inlined_call_operand.vmem [shape: f32[2,1,192], index: 7, kind: input, shape index: {}]
  %s8 = inlined_call_operand.vmem [shape: bf16[2,64,64], index: 8, kind: input, shape index: {}]
  %s9 = inlined_call_operand.vmem [shape: f32[2,1,64], index: 9, kind: input, shape index: {}]
  %s10 = inlined_call_operand.vmem [shape: f32[2,1,64], index: 10, kind: input, shape index: {}]
  %s11 = inlined_call_operand.vmem [shape: f32[2,1,64], index: 11, kind: input, shape index: {}]
  %s12 = inlined_call_operand.vmem [shape: bf16[2,64,128], index: 12, kind: input, shape index: {}]
  %s13 = inlined_call_operand.vmem [shape: f32[2,1,128], index: 13, kind: input, shape index: {}]
  %s14 = inlined_call_operand.vmem [shape: bf16[2,128,64], index: 14, kind: input, shape index: {}]
  %s15 = inlined_call_operand.vmem [shape: f32[2,1,64], index: 15, kind: input, shape index: {}]
  %s16 = inlined_call_operand.vmem [shape: f32[48,64], index: 16, kind: output, shape index: {}, may-alias: {0,16}]
  %s17 = sld [smem:[#allocation0]]
  $region74: #{vit_mae_forward.3} parent=0
    _
  %s19 = ssub.s32 1, %s17
  %s20 = scalar_select 0, %s19, %s17
  // Predicated region
  $region2: #{vit_mae_forward.3} parent=0 // pred_check
    _
  $region3: #{vit_mae_forward.3} parent=0 // pred_check_branch
    %22 = sbr.rel (0) target = $region5
  $region4: #{vit_mae_forward.3} parent=0 // pred_region
    _
  $region5: #{vit_mae_forward.3} parent=0 // pred_fallthru
    _
  // Predicated region
  $region6: #{vit_mae_forward.3} parent=0 // pred_check
    _
  $region7: #{vit_mae_forward.3} parent=0 // pred_check_branch
    %24 = sbr.rel (0) target = $region9
  $region8: #{vit_mae_forward.3} parent=0 // pred_region
    _
  $region9: #{vit_mae_forward.3} parent=0 // pred_fallthru
    _
  // Predicated region
  $region10: #{vit_mae_forward.3} parent=0 // pred_check
    _
  $region11: #{vit_mae_forward.3} parent=0 // pred_check_branch
    %26 = sbr.rel (0) target = $region13
  $region12: #{vit_mae_forward.3} parent=0 // pred_region
    _
  $region13: #{vit_mae_forward.3} parent=0 // pred_fallthru
    _
  // Predicated region
  $region14: #{vit_mae_forward.3} parent=0 // pred_check
    _
  $region15: #{vit_mae_forward.3} parent=0 // pred_check_branch
    %28 = sbr.rel (0) target = $region17
  $region16: #{vit_mae_forward.3} parent=0 // pred_region
    _
  $region17: #{vit_mae_forward.3} parent=0 // pred_fallthru
    _
  // Predicated region
  $region18: #{vit_mae_forward.3} parent=0 // pred_check
    _
  $region19: #{vit_mae_forward.3} parent=0 // pred_check_branch
    %30 = sbr.rel (0) target = $region21
  $region20: #{vit_mae_forward.3} parent=0 // pred_region
    _
  $region21: #{vit_mae_forward.3} parent=0 // pred_fallthru
    _
  // Predicated region
  $region22: #{vit_mae_forward.3} parent=0 // pred_check
    _
  $region23: #{vit_mae_forward.3} parent=0 // pred_check_branch
    %32 = sbr.rel (0) target = $region25
  $region24: #{vit_mae_forward.3} parent=0 // pred_region
    _
  $region25: #{vit_mae_forward.3} parent=0 // pred_fallthru
    _
  // Predicated region
  $region26: #{vit_mae_forward.3} parent=0 // pred_check
    _
  $region27: #{vit_mae_forward.3} parent=0 // pred_check_branch
    %34 = sbr.rel (0) target = $region29
  $region28: #{vit_mae_forward.3} parent=0 // pred_region
    _
  $region29: #{vit_mae_forward.3} parent=0 // pred_fallthru
    _
  // Predicated region
  $region30: #{vit_mae_forward.3} parent=0 // pred_check
    _
  $region31: #{vit_mae_forward.3} parent=0 // pred_check_branch
    %36 = sbr.rel (0) target = $region33
  $region32: #{vit_mae_forward.3} parent=0 // pred_region
    _
  $region33: #{vit_mae_forward.3} parent=0 // pred_fallthru
    _
  // Predicated region
  $region34: #{vit_mae_forward.3} parent=0 // pred_check
    _
  $region35: #{vit_mae_forward.3} parent=0 // pred_check_branch
    %38 = sbr.rel (0) target = $region37
  $region36: #{vit_mae_forward.3} parent=0 // pred_region
    _
  $region37: #{vit_mae_forward.3} parent=0 // pred_fallthru
    _
  // Predicated region
  $region38: #{vit_mae_forward.3} parent=0 // pred_check
    _
  $region39: #{vit_mae_forward.3} parent=0 // pred_check_branch
    %40 = sbr.rel (0) target = $region41
  $region40: #{vit_mae_forward.3} parent=0 // pred_region
    _
  $region41: #{vit_mae_forward.3} parent=0 // pred_fallthru
    _
  // Predicated region
  $region42: #{vit_mae_forward.3} parent=0 // pred_check
    _
  $region43: #{vit_mae_forward.3} parent=0 // pred_check_branch
    %42 = sbr.rel (0) target = $region45
  $region44: #{vit_mae_forward.3} parent=0 // pred_region
    _
  $region45: #{vit_mae_forward.3} parent=0 // pred_fallthru
    _
  // Predicated region
  $region46: #{vit_mae_forward.3} parent=0 // pred_check
    _
  $region47: #{vit_mae_forward.3} parent=0 // pred_check_branch
    %44 = sbr.rel (0) target = $region49
  $region48: #{vit_mae_forward.3} parent=0 // pred_region
    _
  $region49: #{vit_mae_forward.3} parent=0 // pred_fallthru
    _
  // Predicated region
  $region50: #{vit_mae_forward.3} parent=0 // pred_check
    _
  $region51: #{vit_mae_forward.3} parent=0 // pred_check_branch
    %46 = sbr.rel (0) target = $region53
  $region52: #{vit_mae_forward.3} parent=0 // pred_region
    _
  $region53: #{vit_mae_forward.3} parent=0 // pred_fallthru
    _
  // Predicated region
  $region54: #{vit_mae_forward.3} parent=0 // pred_check
    _
  $region55: #{vit_mae_forward.3} parent=0 // pred_check_branch
    %48 = sbr.rel (0) target = $region57
  $region56: #{vit_mae_forward.3} parent=0 // pred_region
    _
  $region57: #{vit_mae_forward.3} parent=0 // pred_fallthru
    _
  // Predicated region
  $region58: #{vit_mae_forward.3} parent=0 // pred_check
    _
  $region59: #{vit_mae_forward.3} parent=0 // pred_check_branch
    %50 = sbr.rel (0) target = $region61
  $region60: #{vit_mae_forward.3} parent=0 // pred_region
    _
  $region61: #{vit_mae_forward.3} parent=0 // pred_fallthru
    _
  // Predicated region
  $region62: #{vit_mae_forward.3} parent=0 // pred_check
    _
  $region63: #{vit_mae_forward.3} parent=0 // pred_check_branch
    %52 = sbr.rel (0) target = $region65
  $region64: #{vit_mae_forward.3} parent=0 // pred_region
    _
  $region65: #{vit_mae_forward.3} parent=0 // pred_fallthru
    _
  %v54 = vld [vmem:[%s0] sm:$0xff]
  %v55 = vld [vmem:[%s0 + $0x8] sm:$0xff]
  %v56 = vld [vmem:[%s0 + $0x10] sm:$0xff]
  %v57 = vld [vmem:[%s0 + $0x18] sm:$0xff]
  %v58 = vld [vmem:[%s0 + $0x20] sm:$0xff]
  %v59 = vld [vmem:[%s0 + $0x28] sm:$0xff]
  %v60 = vld [vmem:[%s1] sm:$0xff]
  %v61 = vld [vmem:[%s1 + $0x8] sm:$0xff]
  %v62 = vld [vmem:[%s1 + $0x10] sm:$0xff]
  %v63 = vld [vmem:[%s1 + $0x18] sm:$0xff]
  %v64 = vld [vmem:[%s1 + $0x20] sm:$0xff]
  %v65 = vld [vmem:[%s1 + $0x28] sm:$0xff]
  %v66 = vld [vmem:[%s4] sm:$0x1]
  %v67 = vld [vmem:[%s5] sm:$0x1]
  %vm68 = vcmask 523264
  %v69 = vsel %vm68, %v54, 0.0
  %70 = vadd.xlane.f32.xlu0 %v69
  %v71 = vpop.xlane.xlu0 %70
  %v72 = vsel %vm68, %v55, 0.0
  %73 = vadd.xlane.f32.xlu0 %v72
  %v74 = vpop.xlane.xlu0 %73
  %v75 = vsel %vm68, %v56, 0.0
  %76 = vadd.xlane.f32.xlu0 %v75
  %v77 = vpop.xlane.xlu0 %76
  %v78 = vsel %vm68, %v57, 0.0
  %79 = vadd.xlane.f32.xlu0 %v78
  %v80 = vpop.xlane.xlu0 %79
  %v81 = vsel %vm68, %v58, 0.0
  %82 = vadd.xlane.f32.xlu0 %v81
  %v83 = vpop.xlane.xlu0 %82
  %v84 = vsel %vm68, %v59, 0.0
  %85 = vadd.xlane.f32.xlu0 %v84
  %v86 = vpop.xlane.xlu0 %85
  %v87 = vrcp.pop 64.0
  %v88 = vmul.f32 64.0, %v87
  %v89 = vsub.f32 1.0, %v88
  %v90 = vmul.f32 %v87, %v89
  %v91 = vadd.f32 %v87, %v90
  %vm92 = vweird.f32 %v87
  %v93 = vsel %vm92, %v87, %v91
  %v94 = vmul.f32 %v71, %v93
  %v95 = vmul.f32 %v74, %v93
  %v96 = vmul.f32 %v77, %v93
  %v97 = vmul.f32 %v80, %v93
  %v98 = vmul.f32 %v83, %v93
  %v99 = vmul.f32 %v86, %v93
  %v100 = vsub.f32 %v54, %v94
  %v101 = vsub.f32 %v55, %v95
  %v102 = vsub.f32 %v56, %v96
  %v103 = vsub.f32 %v57, %v97
  %v104 = vsub.f32 %v58, %v98
  %v105 = vsub.f32 %v59, %v99
  %v106 = vmul.f32 %v100, %v100
  %v107 = vmul.f32 %v101, %v101
  %v108 = vmul.f32 %v102, %v102
  %v109 = vmul.f32 %v103, %v103
  %v110 = vmul.f32 %v104, %v104
  %v111 = vmul.f32 %v105, %v105
  %v112 = vsel %vm68, %v106, 0.0
  %113 = vadd.xlane.f32.xlu0 %v112
  %v114 = vpop.xlane.xlu0 %113
  %v115 = vsel %vm68, %v107, 0.0
  %116 = vadd.xlane.f32.xlu0 %v115
  %v117 = vpop.xlane.xlu0 %116
  %v118 = vsel %vm68, %v108, 0.0
  %119 = vadd.xlane.f32.xlu0 %v118
  %v120 = vpop.xlane.xlu0 %119
  %v121 = vsel %vm68, %v109, 0.0
  %122 = vadd.xlane.f32.xlu0 %v121
  %v123 = vpop.xlane.xlu0 %122
  %v124 = vsel %vm68, %v110, 0.0
  %125 = vadd.xlane.f32.xlu0 %v124
  %v126 = vpop.xlane.xlu0 %125
  %v127 = vsel %vm68, %v111, 0.0
  %128 = vadd.xlane.f32.xlu0 %v127
  %v129 = vpop.xlane.xlu0 %128
  %v130 = vmul.f32 %v114, %v93
  %v131 = vmul.f32 %v117, %v93
  %v132 = vmul.f32 %v120, %v93
  %v133 = vmul.f32 %v123, %v93
  %v134 = vmul.f32 %v126, %v93
  %v135 = vmul.f32 %v129, %v93
  %v136 = vadd.f32 %v130, 1e-05
  %v137 = vadd.f32 %v131, 1e-05
  %v138 = vadd.f32 %v132, 1e-05
  %v139 = vadd.f32 %v133, 1e-05
  %v140 = vadd.f32 %v134, 1e-05
  %v141 = vadd.f32 %v135, 1e-05
  %v142 = vrsqrt.pop %v136
  %v143 = vmul.f32 %v142, %v136
  %v144 = vmul.f32 %v143, %v142
  %v145 = vmul.f32 0.5, %v144
  %v146 = vsub.f32 1.5, %v145
  %v147 = vmul.f32 %v142, %v146
  %vm148 = vweird.f32 %v136
  %vm149 = vweird.f32 %v142
  %vm150 = vmor %vm148, %vm149
  %v151 = vsel %vm150, %v142, %v147
  %v152 = vrsqrt.pop %v137
  %v153 = vmul.f32 %v152, %v137
  %v154 = vmul.f32 %v153, %v152
  %v155 = vmul.f32 0.5, %v154
  %v156 = vsub.f32 1.5, %v155
  %v157 = vmul.f32 %v152, %v156
  %vm158 = vweird.f32 %v137
  %vm159 = vweird.f32 %v152
  %vm160 = vmor %vm158, %vm159
  %v161 = vsel %vm160, %v152, %v157
  %v162 = vrsqrt.pop %v138
  %v163 = vmul.f32 %v162, %v138
  %v164 = vmul.f32 %v163, %v162
  %v165 = vmul.f32 0.5, %v164
  %v166 = vsub.f32 1.5, %v165
  %v167 = vmul.f32 %v162, %v166
  %vm168 = vweird.f32 %v138
  %vm169 = vweird.f32 %v162
  %vm170 = vmor %vm168, %vm169
  %v171 = vsel %vm170, %v162, %v167
  %v172 = vrsqrt.pop %v139
  %v173 = vmul.f32 %v172, %v139
  %v174 = vmul.f32 %v173, %v172
  %v175 = vmul.f32 0.5, %v174
  %v176 = vsub.f32 1.5, %v175
  %v177 = vmul.f32 %v172, %v176
  %vm178 = vweird.f32 %v139
  %vm179 = vweird.f32 %v172
  %vm180 = vmor %vm178, %vm179
  %v181 = vsel %vm180, %v172, %v177
  %v182 = vrsqrt.pop %v140
  %v183 = vmul.f32 %v182, %v140
  %v184 = vmul.f32 %v183, %v182
  %v185 = vmul.f32 0.5, %v184
  %v186 = vsub.f32 1.5, %v185
  %v187 = vmul.f32 %v182, %v186
  %vm188 = vweird.f32 %v140
  %vm189 = vweird.f32 %v182
  %vm190 = vmor %vm188, %vm189
  %v191 = vsel %vm190, %v182, %v187
  %v192 = vrsqrt.pop %v141
  %v193 = vmul.f32 %v192, %v141
  %v194 = vmul.f32 %v193, %v192
  %v195 = vmul.f32 0.5, %v194
  %v196 = vsub.f32 1.5, %v195
  %v197 = vmul.f32 %v192, %v196
  %vm198 = vweird.f32 %v141
  %vm199 = vweird.f32 %v192
  %vm200 = vmor %vm198, %vm199
  %v201 = vsel %vm200, %v192, %v197
  %v202 = vmul.f32 %v100, %v151
  %v203 = vmul.f32 %v101, %v161
  %v204 = vmul.f32 %v102, %v171
  %v205 = vmul.f32 %v103, %v181
  %v206 = vmul.f32 %v104, %v191
  %v207 = vmul.f32 %v105, %v201
  %v209 = vperm.slane %v66, 0
  %v211 = vmul.f32 %v202, %v209
  %v212 = vmul.f32 %v203, %v209
  %v213 = vmul.f32 %v204, %v209
  %v214 = vmul.f32 %v205, %v209
  %v215 = vmul.f32 %v206, %v209
  %v216 = vmul.f32 %v207, %v209
  %v218 = vperm.slane %v67, 0
  %v220 = vadd.f32 %v211, %v218
  %v221 = vadd.f32 %v212, %v218
  %v222 = vadd.f32 %v213, %v218
  %v223 = vadd.f32 %v214, %v218
  %v224 = vadd.f32 %v215, %v218
  %v225 = vadd.f32 %v216, %v218
  %v226 = vld [vmem:[%s6] sm:$0xff]
  %v227 = vld [vmem:[%s6 + $0x8] sm:$0xff]
  %v228 = vld [vmem:[%s6 + $0x10] sm:$0xff]
  %v229 = vld [vmem:[%s6 + $0x18] sm:$0xff]
  %v230 = vld [vmem:[%s6 + $0x20] sm:$0xff]
  %v231 = vld [vmem:[%s6 + $0x28] sm:$0xff]
  %v232 = vld [vmem:[%s6 + $0x30] sm:$0xff]
  %v233 = vld [vmem:[%s6 + $0x38] sm:$0xff]
  %v234 = vpack.c.bf16 %v221, %v220
  %v235 = vpack.c.bf16 %v223, %v222
  %v236 = vpack.c.bf16 %v225, %v224
  %v237 = vld [vmem:[%s7] sm:$0x3]
  %v239 = vperm.slane %v237, 0
  %v240 = vperm.slane %v237, 1
  %v251 = vunpack.c.l.b16 %v226
  %v252 = vunpack.c.h.b16 %v226
  %v253 = vunpack.c.l.b16 %v227
  %v254 = vunpack.c.h.b16 %v227
  %v255 = vunpack.c.l.b16 %v228
  %v256 = vunpack.c.h.b16 %v228
  %v257 = vunpack.c.l.b16 %v229
  %v258 = vunpack.c.h.b16 %v229
  %v259 = vunpack.c.l.b16 %v230
  %v260 = vunpack.c.h.b16 %v230
  %v261 = vunpack.c.l.b16 %v231
  %v262 = vunpack.c.h.b16 %v231
  %v263 = vunpack.c.l.b16 %v232
  %v264 = vunpack.c.h.b16 %v232
  %v265 = vunpack.c.l.b16 %v233
  %v266 = vunpack.c.h.b16 %v233
  %v267 = vpack.c.b16 %v253, %v251
  %v268 = vpack.c.b16 %v254, %v252
  %v269 = vpack.c.b16 %v257, %v255
  %v270 = vpack.c.b16 %v258, %v256
  %v271 = vpack.c.b16 %v261, %v259
  %v272 = vpack.c.b16 %v262, %v260
  %v273 = vpack.c.b16 %v265, %v263
  %v274 = vpack.c.b16 %v266, %v264
  %v284 = vsel %vm68, %v234, 0
  %v287 = vsel %vm68, %v235, 0
  %v290 = vsel %vm68, %v236, 0
  %292 = vmatpush.bf16.msra.mxu0 0
  %293 = vmatpush.bf16.msra.mxu0 0
  %294 = vmatpush.bf16.msra.mxu0 0
  %295 = vmatpush.bf16.msra.mxu0 0
  %296 = vmatpush.bf16.msra.mxu0 %v273
  %297 = vmatpush.bf16.msra.mxu0 %v271
  %298 = vmatpush.bf16.msra.mxu0 %v269
  %299 = vmatpush.bf16.msra.mxu0 %v267
  %300 = vmatmul.bf16.gmra.mxu0 %v284
  %v301 = vpop.f32.mrf.mxu0
  %v302 = vadd.f32 %v239, %v301
  %v303 = vpop.f32.mrf.mxu0
  %v304 = vadd.f32 %v239, %v303
  %305 = vmatmul.bf16.gmra.mxu0 %v287
  %v306 = vpop.f32.mrf.mxu0
  %v307 = vadd.f32 %v239, %v306
  %v308 = vpop.f32.mrf.mxu0
  %v309 = vadd.f32 %v239, %v308
  %310 = vmatmul.bf16.gmra.mxu0 %v290
  %v311 = vpop.f32.mrf.mxu0
  %v312 = vadd.f32 %v239, %v311
  %v313 = vpop.f32.mrf.mxu0
  %v314 = vadd.f32 %v239, %v313
  %315 = vdwg.mxu0
  %316 = vmatpush.bf16.msra.mxu0 0
  %317 = vmatpush.bf16.msra.mxu0 0
  %318 = vmatpush.bf16.msra.mxu0 0
  %319 = vmatpush.bf16.msra.mxu0 0
  %320 = vmatpush.bf16.msra.mxu0 %v274
  %321 = vmatpush.bf16.msra.mxu0 %v272
  %322 = vmatpush.bf16.msra.mxu0 %v270
  %323 = vmatpush.bf16.msra.mxu0 %v268
  %324 = vmatmul.bf16.gmra.mxu0 %v284
  %v325 = vpop.f32.mrf.mxu0
  %v326 = vadd.f32 %v240, %v325
  %v327 = vpop.f32.mrf.mxu0
  %v328 = vadd.f32 %v240, %v327
  %329 = vmatmul.bf16.gmra.mxu0 %v287
  %v330 = vpop.f32.mrf.mxu0
  %v331 = vadd.f32 %v240, %v330
  %v332 = vpop.f32.mrf.mxu0
  %v333 = vadd.f32 %v240, %v332
  %334 = vmatmul.bf16.gmra.mxu0 %v290
  %v335 = vpop.f32.mrf.mxu0
  %v336 = vadd.f32 %v240, %v335
  %v337 = vpop.f32.mrf.mxu0
  %v338 = vadd.f32 %v240, %v337
  %339 = vdwg.mxu0
  %v340 = vpack.c.bf16 %v304, %v302
  %v341 = vpack.c.bf16 %v309, %v307
  %v342 = vpack.c.bf16 %v314, %v312
  %v343 = vpack.c.bf16 %v328, %v326
  %v344 = vpack.c.bf16 %v333, %v331
  %v345 = vpack.c.bf16 %v338, %v336
  %349 = vrot.lane.b32.xlu0 %v340, 64
  %v350 = vpop.permute.xlu0 %349
  %351 = vrot.lane.b32.xlu0 %v341, 64
  %v352 = vpop.permute.xlu0 %351
  %353 = vrot.lane.b32.xlu0 %v342, 64
  %v354 = vpop.permute.xlu0 %353
  %vm355 = vcmask 130048
  %v357 = vsel %vm355, %v340, 0
  %v360 = vsel %vm355, %v341, 0
  %v363 = vsel %vm355, %v342, 0
  %v366 = vsel %vm355, %v350, 0
  %v369 = vsel %vm355, %v352, 0
  %v372 = vsel %vm355, %v354, 0
  %374 = vmatpush.bf16.xpose.msra.mxu0 0
  %375 = vmatpush.bf16.xpose.msra.mxu0 0
  %376 = vmatpush.bf16.xpose.msra.mxu0 0
  %377 = vmatpush.bf16.xpose.msra.mxu0 0
  %378 = vmatpush.bf16.xpose.msra.mxu0 0
  %379 = vmatpush.bf16.xpose.msra.mxu0 %v372
  %380 = vmatpush.bf16.xpose.msra.mxu0 %v369
  %381 = vmatpush.bf16.xpose.msra.mxu0 %v366
  %382 = vmatmul.bf16.gmra.mxu0 %v357
  %v383 = vpop.f32.mrf.mxu0
  %v384 = vadd.f32 %v60, %v383
  %v385 = vpop.f32.mrf.mxu0
  %v386 = vadd.f32 %v61, %v385
  %387 = vmatmul.bf16.gmra.mxu0 %v360
  %v388 = vpop.f32.mrf.mxu0
  %v389 = vadd.f32 %v62, %v388
  %v390 = vpop.f32.mrf.mxu0
  %v391 = vadd.f32 %v63, %v390
  %392 = vmatmul.bf16.gmra.mxu0 %v363
  %v393 = vpop.f32.mrf.mxu0
  %v394 = vadd.f32 %v64, %v393
  %v395 = vpop.f32.mrf.mxu0
  %v396 = vadd.f32 %v65, %v395
  %397 = vdwg.mxu0
  %vm398 = vcmask 392192
  %v399 = vsel %vm398, %v384, -inf
  %400 = vmax.xlane.f32.xlu0 %v399
  %v401 = vpop.xlane.xlu0 %400
  %v402 = vsel %vm398, %v386, -inf
  %403 = vmax.xlane.f32.xlu0 %v402
  %v404 = vpop.xlane.xlu0 %403
  %v405 = vsel %vm398, %v389, -inf
  %406 = vmax.xlane.f32.xlu0 %v405
  %v407 = vpop.xlane.xlu0 %406
  %v408 = vsel %vm398, %v391, -inf
  %409 = vmax.xlane.f32.xlu0 %v408
  %v410 = vpop.xlane.xlu0 %409
  %v411 = vsel %vm398, %v394, -inf
  %412 = vmax.xlane.f32.xlu0 %v411
  %v413 = vpop.xlane.xlu0 %412
  %v414 = vsel %vm398, %v396, -inf
  %415 = vmax.xlane.f32.xlu0 %v414
  %v416 = vpop.xlane.xlu0 %415
  %v417 = vsub.f32 %v384, %v401
  %v418 = vsub.f32 %v386, %v404
  %v419 = vsub.f32 %v389, %v407
  %v420 = vsub.f32 %v391, %v410
  %v421 = vsub.f32 %v394, %v413
  %v422 = vsub.f32 %v396, %v416
  %v423 = vmul.f32 %v417, 1.442695
  %v424 = vpow.pop %v423
  %v425 = vmul.f32 %v418, 1.442695
  %v426 = vpow.pop %v425
  %v427 = vmul.f32 %v419, 1.442695
  %v428 = vpow.pop %v427
  %v429 = vmul.f32 %v420, 1.442695
  %v430 = vpow.pop %v429
  %v431 = vmul.f32 %v421, 1.442695
  %v432 = vpow.pop %v431
  %v433 = vmul.f32 %v422, 1.442695
  %v434 = vpow.pop %v433
  %v435 = vsel %vm398, %v424, 0.0
  %436 = vadd.xlane.f32.xlu0 %v435
  %v437 = vpop.xlane.xlu0 %436
  %v438 = vsel %vm398, %v426, 0.0
  %439 = vadd.xlane.f32.xlu0 %v438
  %v440 = vpop.xlane.xlu0 %439
  %v441 = vsel %vm398, %v428, 0.0
  %442 = vadd.xlane.f32.xlu0 %v441
  %v443 = vpop.xlane.xlu0 %442
  %v444 = vsel %vm398, %v430, 0.0
  %445 = vadd.xlane.f32.xlu0 %v444
  %v446 = vpop.xlane.xlu0 %445
  %v447 = vsel %vm398, %v432, 0.0
  %448 = vadd.xlane.f32.xlu0 %v447
  %v449 = vpop.xlane.xlu0 %448
  %v450 = vsel %vm398, %v434, 0.0
  %451 = vadd.xlane.f32.xlu0 %v450
  %v452 = vpop.xlane.xlu0 %451
  %v453 = vrcp.pop %v437
  %v454 = vrcp.pop %v440
  %v455 = vrcp.pop %v443
  %v456 = vrcp.pop %v446
  %v457 = vrcp.pop %v449
  %v458 = vrcp.pop %v452
  %v459 = vmul.f32 %v424, %v453
  %v460 = vmul.f32 %v426, %v454
  %v461 = vmul.f32 %v428, %v455
  %v462 = vmul.f32 %v430, %v456
  %v463 = vmul.f32 %v432, %v457
  %v464 = vmul.f32 %v434, %v458
  %v465 = vpack.c.bf16 %v460, %v459
  %v466 = vpack.c.bf16 %v462, %v461
  %v467 = vpack.c.bf16 %v464, %v463
  %v469 = vsel %vm398, %v465, 0
  %v472 = vsel %vm398, %v466, 0
  %v475 = vsel %vm398, %v467, 0
  %477 = vmatpush.bf16.msra.mxu0 0
  %478 = vmatpush.bf16.msra.mxu0 0
  %479 = vmatpush.bf16.msra.mxu0 0
  %480 = vmatpush.bf16.msra.mxu0 0
  %481 = vmatpush.bf16.msra.mxu0 0
  %482 = vmatpush.bf16.msra.mxu0 %v345
  %483 = vmatpush.bf16.msra.mxu0 %v344
  %484 = vmatpush.bf16.msra.mxu0 %v343
  %485 = vmatmul.bf16.gmra.mxu0 %v469
  %v486 = vpop.f32.mrf.mxu0
  %v487 = vadd.f32 0.0, %v486
  %v488 = vpop.f32.mrf.mxu0
  %v489 = vadd.f32 0.0, %v488
  %490 = vmatmul.bf16.gmra.mxu0 %v472
  %v491 = vpop.f32.mrf.mxu0
  %v492 = vadd.f32 0.0, %v491
  %v493 = vpop.f32.mrf.mxu0
  %v494 = vadd.f32 0.0, %v493
  %495 = vmatmul.bf16.gmra.mxu0 %v475
  %v496 = vpop.f32.mrf.mxu0
  %v497 = vadd.f32 0.0, %v496
  %v498 = vpop.f32.mrf.mxu0
  %v499 = vadd.f32 0.0, %v498
  %500 = vdwg.mxu0
  %501 = vrot.lane.b32.xlu0 %v340, 112
  %v502 = vpop.permute.xlu0 %501
  %503 = vrot.lane.b32.xlu0 %v341, 112
  %v504 = vpop.permute.xlu0 %503
  %505 = vrot.lane.b32.xlu0 %v342, 112
  %v506 = vpop.permute.xlu0 %505
  %507 = vrot.lane.b32.xlu0 %v340, 48
  %v508 = vpop.permute.xlu0 %507
  %509 = vrot.lane.b32.xlu0 %v341, 48
  %v510 = vpop.permute.xlu0 %509
  %511 = vrot.lane.b32.xlu0 %v342, 48
  %v512 = vpop.permute.xlu0 %511
  %v514 = vsel %vm355, %v502, 0
  %v517 = vsel %vm355, %v504, 0
  %v520 = vsel %vm355, %v506, 0
  %v523 = vsel %vm355, %v508, 0
  %v526 = vsel %vm355, %v510, 0
  %v529 = vsel %vm355, %v512, 0
  %531 = vmatpush.bf16.xpose.msra.mxu0 0
  %532 = vmatpush.bf16.xpose.msra.mxu0 0
  %533 = vmatpush.bf16.xpose.msra.mxu0 0
  %534 = vmatpush.bf16.xpose.msra.mxu0 0
  %535 = vmatpush.bf16.xpose.msra.mxu0 0
  %536 = vmatpush.bf16.xpose.msra.mxu0 %v529
  %537 = vmatpush.bf16.xpose.msra.mxu0 %v526
  %538 = vmatpush.bf16.xpose.msra.mxu0 %v523
  %539 = vmatmul.bf16.gmra.mxu0 %v514
  %v540 = vpop.f32.mrf.mxu0
  %v541 = vadd.f32 %v60, %v540
  %v542 = vpop.f32.mrf.mxu0
  %v543 = vadd.f32 %v61, %v542
  %544 = vmatmul.bf16.gmra.mxu0 %v517
  %v545 = vpop.f32.mrf.mxu0
  %v546 = vadd.f32 %v62, %v545
  %v547 = vpop.f32.mrf.mxu0
  %v548 = vadd.f32 %v63, %v547
  %549 = vmatmul.bf16.gmra.mxu0 %v520
  %v550 = vpop.f32.mrf.mxu0
  %v551 = vadd.f32 %v64, %v550
  %v552 = vpop.f32.mrf.mxu0
  %v553 = vadd.f32 %v65, %v552
  %554 = vdwg.mxu0
  %v555 = vsel %vm398, %v541, -inf
  %556 = vmax.xlane.f32.xlu0 %v555
  %v557 = vpop.xlane.xlu0 %556
  %v558 = vsel %vm398, %v543, -inf
  %559 = vmax.xlane.f32.xlu0 %v558
  %v560 = vpop.xlane.xlu0 %559
  %v561 = vsel %vm398, %v546, -inf
  %562 = vmax.xlane.f32.xlu0 %v561
  %v563 = vpop.xlane.xlu0 %562
  %v564 = vsel %vm398, %v548, -inf
  %565 = vmax.xlane.f32.xlu0 %v564
  %v566 = vpop.xlane.xlu0 %565
  %v567 = vsel %vm398, %v551, -inf
  %568 = vmax.xlane.f32.xlu0 %v567
  %v569 = vpop.xlane.xlu0 %568
  %v570 = vsel %vm398, %v553, -inf
  %571 = vmax.xlane.f32.xlu0 %v570
  %v572 = vpop.xlane.xlu0 %571
  %v573 = vsub.f32 %v541, %v557
  %v574 = vsub.f32 %v543, %v560
  %v575 = vsub.f32 %v546, %v563
  %v576 = vsub.f32 %v548, %v566
  %v577 = vsub.f32 %v551, %v569
  %v578 = vsub.f32 %v553, %v572
  %v579 = vmul.f32 %v573, 1.442695
  %v580 = vpow.pop %v579
  %v581 = vmul.f32 %v574, 1.442695
  %v582 = vpow.pop %v581
  %v583 = vmul.f32 %v575, 1.442695
  %v584 = vpow.pop %v583
  %v585 = vmul.f32 %v576, 1.442695
  %v586 = vpow.pop %v585
  %v587 = vmul.f32 %v577, 1.442695
  %v588 = vpow.pop %v587
  %v589 = vmul.f32 %v578, 1.442695
  %v590 = vpow.pop %v589
  %v591 = vsel %vm398, %v580, 0.0
  %592 = vadd.xlane.f32.xlu0 %v591
  %v593 = vpop.xlane.xlu0 %592
  %v594 = vsel %vm398, %v582, 0.0
  %595 = vadd.xlane.f32.xlu0 %v594
  %v596 = vpop.xlane.xlu0 %595
  %v597 = vsel %vm398, %v584, 0.0
  %598 = vadd.xlane.f32.xlu0 %v597
  %v599 = vpop.xlane.xlu0 %598
  %v600 = vsel %vm398, %v586, 0.0
  %601 = vadd.xlane.f32.xlu0 %v600
  %v602 = vpop.xlane.xlu0 %601
  %v603 = vsel %vm398, %v588, 0.0
  %604 = vadd.xlane.f32.xlu0 %v603
  %v605 = vpop.xlane.xlu0 %604
  %v606 = vsel %vm398, %v590, 0.0
  %607 = vadd.xlane.f32.xlu0 %v606
  %v608 = vpop.xlane.xlu0 %607
  %v609 = vrcp.pop %v593
  %v610 = vrcp.pop %v596
  %v611 = vrcp.pop %v599
  %v612 = vrcp.pop %v602
  %v613 = vrcp.pop %v605
  %v614 = vrcp.pop %v608
  %v615 = vmul.f32 %v580, %v609
  %v616 = vmul.f32 %v582, %v610
  %v617 = vmul.f32 %v584, %v611
  %v618 = vmul.f32 %v586, %v612
  %v619 = vmul.f32 %v588, %v613
  %v620 = vmul.f32 %v590, %v614
  %v621 = vpack.c.bf16 %v616, %v615
  %v622 = vpack.c.bf16 %v618, %v617
  %v623 = vpack.c.bf16 %v620, %v619
  %627 = vrot.lane.b32.xlu0 %v343, 112
  %v628 = vpop.permute.xlu0 %627
  %629 = vrot.lane.b32.xlu0 %v344, 112
  %v630 = vpop.permute.xlu0 %629
  %631 = vrot.lane.b32.xlu0 %v345, 112
  %v632 = vpop.permute.xlu0 %631
  %v637 = vsel %vm398, %v621, 0
  %v640 = vsel %vm398, %v622, 0
  %v643 = vsel %vm398, %v623, 0
  %645 = vmatpush.bf16.msra.mxu0 0
  %646 = vmatpush.bf16.msra.mxu0 0
  %647 = vmatpush.bf16.msra.mxu0 0
  %648 = vmatpush.bf16.msra.mxu0 0
  %649 = vmatpush.bf16.msra.mxu0 0
  %650 = vmatpush.bf16.msra.mxu0 %v632
  %651 = vmatpush.bf16.msra.mxu0 %v630
  %652 = vmatpush.bf16.msra.mxu0 %v628
  %653 = vmatmul.bf16.gmra.mxu0 %v637
  %v654 = vpop.f32.mrf.mxu0
  %v655 = vadd.f32 0.0, %v654
  %v656 = vpop.f32.mrf.mxu0
  %v657 = vadd.f32 0.0, %v656
  %658 = vmatmul.bf16.gmra.mxu0 %v640
  %v659 = vpop.f32.mrf.mxu0
  %v660 = vadd.f32 0.0, %v659
  %v661 = vpop.f32.mrf.mxu0
  %v662 = vadd.f32 0.0, %v661
  %663 = vmatmul.bf16.gmra.mxu0 %v643
  %v664 = vpop.f32.mrf.mxu0
  %v665 = vadd.f32 0.0, %v664
  %v666 = vpop.f32.mrf.mxu0
  %v667 = vadd.f32 0.0, %v666
  %668 = vdwg.mxu0
  %669 = vrot.lane.b32.xlu0 %v340, 96
  %v670 = vpop.permute.xlu0 %669
  %671 = vrot.lane.b32.xlu0 %v341, 96
  %v672 = vpop.permute.xlu0 %671
  %673 = vrot.lane.b32.xlu0 %v342, 96
  %v674 = vpop.permute.xlu0 %673
  %675 = vrot.lane.b32.xlu0 %v340, 32
  %v676 = vpop.permute.xlu0 %675
  %677 = vrot.lane.b32.xlu0 %v341, 32
  %v678 = vpop.permute.xlu0 %677
  %679 = vrot.lane.b32.xlu0 %v342, 32
  %v680 = vpop.permute.xlu0 %679
  %v682 = vsel %vm355, %v670, 0
  %v685 = vsel %vm355, %v672, 0
  %v688 = vsel %vm355, %v674, 0
  %v691 = vsel %vm355, %v676, 0
  %v694 = vsel %vm355, %v678, 0
  %v697 = vsel %vm355, %v680, 0
  %699 = vmatpush.bf16.xpose.msra.mxu0 0
  %700 = vmatpush.bf16.xpose.msra.mxu0 0
  %701 = vmatpush.bf16.xpose.msra.mxu0 0
  %702 = vmatpush.bf16.xpose.msra.mxu0 0
  %703 = vmatpush.bf16.xpose.msra.mxu0 0
  %704 = vmatpush.bf16.xpose.msra.mxu0 %v697
  %705 = vmatpush.bf16.xpose.msra.mxu0 %v694
  %706 = vmatpush.bf16.xpose.msra.mxu0 %v691
  %707 = vmatmul.bf16.gmra.mxu0 %v682
  %v708 = vpop.f32.mrf.mxu0
  %v709 = vadd.f32 %v60, %v708
  %v710 = vpop.f32.mrf.mxu0
  %v711 = vadd.f32 %v61, %v710
  %712 = vmatmul.bf16.gmra.mxu0 %v685
  %v713 = vpop.f32.mrf.mxu0
  %v714 = vadd.f32 %v62, %v713
  %v715 = vpop.f32.mrf.mxu0
  %v716 = vadd.f32 %v63, %v715
  %717 = vmatmul.bf16.gmra.mxu0 %v688
  %v718 = vpop.f32.mrf.mxu0
  %v719 = vadd.f32 %v64, %v718
  %v720 = vpop.f32.mrf.mxu0
  %v721 = vadd.f32 %v65, %v720
  %722 = vdwg.mxu0
  %v723 = vsel %vm398, %v709, -inf
  %724 = vmax.xlane.f32.xlu0 %v723
  %v725 = vpop.xlane.xlu0 %724
  %v726 = vsel %vm398, %v711, -inf
  %727 = vmax.xlane.f32.xlu0 %v726
  %v728 = vpop.xlane.xlu0 %727
  %v729 = vsel %vm398, %v714, -inf
  %730 = vmax.xlane.f32.xlu0 %v729
  %v731 = vpop.xlane.xlu0 %730
  %v732 = vsel %vm398, %v716, -inf
  %733 = vmax.xlane.f32.xlu0 %v732
  %v734 = vpop.xlane.xlu0 %733
  %v735 = vsel %vm398, %v719, -inf
  %736 = vmax.xlane.f32.xlu0 %v735
  %v737 = vpop.xlane.xlu0 %736
  %v738 = vsel %vm398, %v721, -inf
  %739 = vmax.xlane.f32.xlu0 %v738
  %v740 = vpop.xlane.xlu0 %739
  %v741 = vsub.f32 %v709, %v725
  %v742 = vsub.f32 %v711, %v728
  %v743 = vsub.f32 %v714, %v731
  %v744 = vsub.f32 %v716, %v734
  %v745 = vsub.f32 %v719, %v737
  %v746 = vsub.f32 %v721, %v740
  %v747 = vmul.f32 %v741, 1.442695
  %v748 = vpow.pop %v747
  %v749 = vmul.f32 %v742, 1.442695
  %v750 = vpow.pop %v749
  %v751 = vmul.f32 %v743, 1.442695
  %v752 = vpow.pop %v751
  %v753 = vmul.f32 %v744, 1.442695
  %v754 = vpow.pop %v753
  %v755 = vmul.f32 %v745, 1.442695
  %v756 = vpow.pop %v755
  %v757 = vmul.f32 %v746, 1.442695
  %v758 = vpow.pop %v757
  %v759 = vsel %vm398, %v748, 0.0
  %760 = vadd.xlane.f32.xlu0 %v759
  %v761 = vpop.xlane.xlu0 %760
  %v762 = vsel %vm398, %v750, 0.0
  %763 = vadd.xlane.f32.xlu0 %v762
  %v764 = vpop.xlane.xlu0 %763
  %v765 = vsel %vm398, %v752, 0.0
  %766 = vadd.xlane.f32.xlu0 %v765
  %v767 = vpop.xlane.xlu0 %766
  %v768 = vsel %vm398, %v754, 0.0
  %769 = vadd.xlane.f32.xlu0 %v768
  %v770 = vpop.xlane.xlu0 %769
  %v771 = vsel %vm398, %v756, 0.0
  %772 = vadd.xlane.f32.xlu0 %v771
  %v773 = vpop.xlane.xlu0 %772
  %v774 = vsel %vm398, %v758, 0.0
  %775 = vadd.xlane.f32.xlu0 %v774
  %v776 = vpop.xlane.xlu0 %775
  %v777 = vrcp.pop %v761
  %v778 = vrcp.pop %v764
  %v779 = vrcp.pop %v767
  %v780 = vrcp.pop %v770
  %v781 = vrcp.pop %v773
  %v782 = vrcp.pop %v776
  %v783 = vmul.f32 %v748, %v777
  %v784 = vmul.f32 %v750, %v778
  %v785 = vmul.f32 %v752, %v779
  %v786 = vmul.f32 %v754, %v780
  %v787 = vmul.f32 %v756, %v781
  %v788 = vmul.f32 %v758, %v782
  %v789 = vpack.c.bf16 %v784, %v783
  %v790 = vpack.c.bf16 %v786, %v785
  %v791 = vpack.c.bf16 %v788, %v787
  %792 = vrot.lane.b32.xlu0 %v343, 96
  %v793 = vpop.permute.xlu0 %792
  %794 = vrot.lane.b32.xlu0 %v344, 96
  %v795 = vpop.permute.xlu0 %794
  %796 = vrot.lane.b32.xlu0 %v345, 96
  %v797 = vpop.permute.xlu0 %796
  %v802 = vsel %vm398, %v789, 0
  %v805 = vsel %vm398, %v790, 0
  %v808 = vsel %vm398, %v791, 0
  %810 = vmatpush.bf16.msra.mxu0 0
  %811 = vmatpush.bf16.msra.mxu0 0
  %812 = vmatpush.bf16.msra.mxu0 0
  %813 = vmatpush.bf16.msra.mxu0 0
  %814 = vmatpush.bf16.msra.mxu0 0
  %815 = vmatpush.bf16.msra.mxu0 %v797
  %816 = vmatpush.bf16.msra.mxu0 %v795
  %817 = vmatpush.bf16.msra.mxu0 %v793
  %818 = vmatmul.bf16.gmra.mxu0 %v802
  %v819 = vpop.f32.mrf.mxu0
  %v820 = vadd.f32 0.0, %v819
  %v821 = vpop.f32.mrf.mxu0
  %v822 = vadd.f32 0.0, %v821
  %823 = vmatmul.bf16.gmra.mxu0 %v805
  %v824 = vpop.f32.mrf.mxu0
  %v825 = vadd.f32 0.0, %v824
  %v826 = vpop.f32.mrf.mxu0
  %v827 = vadd.f32 0.0, %v826
  %828 = vmatmul.bf16.gmra.mxu0 %v808
  %v829 = vpop.f32.mrf.mxu0
  %v830 = vadd.f32 0.0, %v829
  %v831 = vpop.f32.mrf.mxu0
  %v832 = vadd.f32 0.0, %v831
  %833 = vdwg.mxu0
  %834 = vrot.lane.b32.xlu0 %v340, 80
  %v835 = vpop.permute.xlu0 %834
  %836 = vrot.lane.b32.xlu0 %v341, 80
  %v837 = vpop.permute.xlu0 %836
  %838 = vrot.lane.b32.xlu0 %v342, 80
  %v839 = vpop.permute.xlu0 %838
  %840 = vrot.lane.b32.xlu0 %v340, 16
  %v841 = vpop.permute.xlu0 %840
  %842 = vrot.lane.b32.xlu0 %v341, 16
  %v843 = vpop.permute.xlu0 %842
  %844 = vrot.lane.b32.xlu0 %v342, 16
  %v845 = vpop.permute.xlu0 %844
  %v847 = vsel %vm355, %v835, 0
  %v850 = vsel %vm355, %v837, 0
  %v853 = vsel %vm355, %v839, 0
  %v856 = vsel %vm355, %v841, 0
  %v859 = vsel %vm355, %v843, 0
  %v862 = vsel %vm355, %v845, 0
  %864 = vmatpush.bf16.xpose.msra.mxu0 0
  %865 = vmatpush.bf16.xpose.msra.mxu0 0
  %866 = vmatpush.bf16.xpose.msra.mxu0 0
  %867 = vmatpush.bf16.xpose.msra.mxu0 0
  %868 = vmatpush.bf16.xpose.msra.mxu0 0
  %869 = vmatpush.bf16.xpose.msra.mxu0 %v862
  %870 = vmatpush.bf16.xpose.msra.mxu0 %v859
  %871 = vmatpush.bf16.xpose.msra.mxu0 %v856
  %872 = vmatmul.bf16.gmra.mxu0 %v847
  %v873 = vpop.f32.mrf.mxu0
  %v874 = vadd.f32 %v60, %v873
  %v875 = vpop.f32.mrf.mxu0
  %v876 = vadd.f32 %v61, %v875
  %877 = vmatmul.bf16.gmra.mxu0 %v850
  %v878 = vpop.f32.mrf.mxu0
  %v879 = vadd.f32 %v62, %v878
  %v880 = vpop.f32.mrf.mxu0
  %v881 = vadd.f32 %v63, %v880
  %882 = vmatmul.bf16.gmra.mxu0 %v853
  %v883 = vpop.f32.mrf.mxu0
  %v884 = vadd.f32 %v64, %v883
  %v885 = vpop.f32.mrf.mxu0
  %v886 = vadd.f32 %v65, %v885
  %887 = vdwg.mxu0
  %v888 = vsel %vm398, %v874, -inf
  %889 = vmax.xlane.f32.xlu0 %v888
  %v890 = vpop.xlane.xlu0 %889
  %v891 = vsel %vm398, %v876, -inf
  %892 = vmax.xlane.f32.xlu0 %v891
  %v893 = vpop.xlane.xlu0 %892
  %v894 = vsel %vm398, %v879, -inf
  %895 = vmax.xlane.f32.xlu0 %v894
  %v896 = vpop.xlane.xlu0 %895
  %v897 = vsel %vm398, %v881, -inf
  %898 = vmax.xlane.f32.xlu0 %v897
  %v899 = vpop.xlane.xlu0 %898
  %v900 = vsel %vm398, %v884, -inf
  %901 = vmax.xlane.f32.xlu0 %v900
  %v902 = vpop.xlane.xlu0 %901
  %v903 = vsel %vm398, %v886, -inf
  %904 = vmax.xlane.f32.xlu0 %v903
  %v905 = vpop.xlane.xlu0 %904
  %v906 = vsub.f32 %v874, %v890
  %v907 = vsub.f32 %v876, %v893
  %v908 = vsub.f32 %v879, %v896
  %v909 = vsub.f32 %v881, %v899
  %v910 = vsub.f32 %v884, %v902
  %v911 = vsub.f32 %v886, %v905
  %v912 = vmul.f32 %v906, 1.442695
  %v913 = vpow.pop %v912
  %v914 = vmul.f32 %v907, 1.442695
  %v915 = vpow.pop %v914
  %v916 = vmul.f32 %v908, 1.442695
  %v917 = vpow.pop %v916
  %v918 = vmul.f32 %v909, 1.442695
  %v919 = vpow.pop %v918
  %v920 = vmul.f32 %v910, 1.442695
  %v921 = vpow.pop %v920
  %v922 = vmul.f32 %v911, 1.442695
  %v923 = vpow.pop %v922
  %v924 = vsel %vm398, %v913, 0.0
  %925 = vadd.xlane.f32.xlu0 %v924
  %v926 = vpop.xlane.xlu0 %925
  %v927 = vsel %vm398, %v915, 0.0
  %928 = vadd.xlane.f32.xlu0 %v927
  %v929 = vpop.xlane.xlu0 %928
  %v930 = vsel %vm398, %v917, 0.0
  %931 = vadd.xlane.f32.xlu0 %v930
  %v932 = vpop.xlane.xlu0 %931
  %v933 = vsel %vm398, %v919, 0.0
  %934 = vadd.xlane.f32.xlu0 %v933
  %v935 = vpop.xlane.xlu0 %934
  %v936 = vsel %vm398, %v921, 0.0
  %937 = vadd.xlane.f32.xlu0 %v936
  %v938 = vpop.xlane.xlu0 %937
  %v939 = vsel %vm398, %v923, 0.0
  %940 = vadd.xlane.f32.xlu0 %v939
  %v941 = vpop.xlane.xlu0 %940
  %v942 = vrcp.pop %v926
  %v943 = vrcp.pop %v929
  %v944 = vrcp.pop %v932
  %v945 = vrcp.pop %v935
  %v946 = vrcp.pop %v938
  %v947 = vrcp.pop %v941
  %v948 = vmul.f32 %v913, %v942
  %v949 = vmul.f32 %v915, %v943
  %v950 = vmul.f32 %v917, %v944
  %v951 = vmul.f32 %v919, %v945
  %v952 = vmul.f32 %v921, %v946
  %v953 = vmul.f32 %v923, %v947
  %v954 = vpack.c.bf16 %v949, %v948
  %v955 = vpack.c.bf16 %v951, %v950
  %v956 = vpack.c.bf16 %v953, %v952
  %957 = vrot.lane.b32.xlu0 %v343, 80
  %v958 = vpop.permute.xlu0 %957
  %959 = vrot.lane.b32.xlu0 %v344, 80
  %v960 = vpop.permute.xlu0 %959
  %961 = vrot.lane.b32.xlu0 %v345, 80
  %v962 = vpop.permute.xlu0 %961
  %v967 = vsel %vm398, %v954, 0
  %v970 = vsel %vm398, %v955, 0
  %v973 = vsel %vm398, %v956, 0
  %975 = vmatpush.bf16.msra.mxu0 0
  %976 = vmatpush.bf16.msra.mxu0 0
  %977 = vmatpush.bf16.msra.mxu0 0
  %978 = vmatpush.bf16.msra.mxu0 0
  %979 = vmatpush.bf16.msra.mxu0 0
  %980 = vmatpush.bf16.msra.mxu0 %v962
  %981 = vmatpush.bf16.msra.mxu0 %v960
  %982 = vmatpush.bf16.msra.mxu0 %v958
  %983 = vmatmul.bf16.gmra.mxu0 %v967
  %v984 = vpop.f32.mrf.mxu0
  %v985 = vadd.f32 0.0, %v984
  %v986 = vpop.f32.mrf.mxu0
  %v987 = vadd.f32 0.0, %v986
  %988 = vmatmul.bf16.gmra.mxu0 %v970
  %v989 = vpop.f32.mrf.mxu0
  %v990 = vadd.f32 0.0, %v989
  %v991 = vpop.f32.mrf.mxu0
  %v992 = vadd.f32 0.0, %v991
  %993 = vmatmul.bf16.gmra.mxu0 %v973
  %v994 = vpop.f32.mrf.mxu0
  %v995 = vadd.f32 0.0, %v994
  %v996 = vpop.f32.mrf.mxu0
  %v997 = vadd.f32 0.0, %v996
  %998 = vdwg.mxu0
  %1005 = vrot.lane.b32.xlu0 %v655, 16
  %v1006 = vpop.permute.xlu0 %1005
  %1007 = vrot.lane.b32.xlu0 %v657, 16
  %v1008 = vpop.permute.xlu0 %1007
  %1009 = vrot.lane.b32.xlu0 %v660, 16
  %v1010 = vpop.permute.xlu0 %1009
  %1011 = vrot.lane.b32.xlu0 %v662, 16
  %v1012 = vpop.permute.xlu0 %1011
  %1013 = vrot.lane.b32.xlu0 %v665, 16
  %v1014 = vpop.permute.xlu0 %1013
  %1015 = vrot.lane.b32.xlu0 %v667, 16
  %v1016 = vpop.permute.xlu0 %1015
  %1029 = vrot.lane.b32.xlu0 %v820, 32
  %v1030 = vpop.permute.xlu0 %1029
  %1031 = vrot.lane.b32.xlu0 %v822, 32
  %v1032 = vpop.permute.xlu0 %1031
  %1033 = vrot.lane.b32.xlu0 %v825, 32
  %v1034 = vpop.permute.xlu0 %1033
  %1035 = vrot.lane.b32.xlu0 %v827, 32
  %v1036 = vpop.permute.xlu0 %1035
  %1037 = vrot.lane.b32.xlu0 %v830, 32
  %v1038 = vpop.permute.xlu0 %1037
  %1039 = vrot.lane.b32.xlu0 %v832, 32
  %v1040 = vpop.permute.xlu0 %1039
  %1053 = vrot.lane.b32.xlu0 %v985, 48
  %v1054 = vpop.permute.xlu0 %1053
  %1055 = vrot.lane.b32.xlu0 %v987, 48
  %v1056 = vpop.permute.xlu0 %1055
  %1057 = vrot.lane.b32.xlu0 %v990, 48
  %v1058 = vpop.permute.xlu0 %1057
  %1059 = vrot.lane.b32.xlu0 %v992, 48
  %v1060 = vpop.permute.xlu0 %1059
  %1061 = vrot.lane.b32.xlu0 %v995, 48
  %v1062 = vpop.permute.xlu0 %1061
  %1063 = vrot.lane.b32.xlu0 %v997, 48
  %v1064 = vpop.permute.xlu0 %1063
  %v1071 = vsel %vm355, %v487, %v1006
  %v1072 = vsel %vm355, %v489, %v1008
  %v1073 = vsel %vm355, %v492, %v1010
  %v1074 = vsel %vm355, %v494, %v1012
  %v1075 = vsel %vm355, %v497, %v1014
  %v1076 = vsel %vm355, %v499, %v1016
  %vm1077 = vcmask 261120
  %v1078 = vsel %vm1077, %v1071, %v1030
  %v1079 = vsel %vm1077, %v1072, %v1032
  %v1080 = vsel %vm1077, %v1073, %v1034
  %v1081 = vsel %vm1077, %v1074, %v1036
  %v1082 = vsel %vm1077, %v1075, %v1038
  %v1083 = vsel %vm1077, %v1076, %v1040
  %v1084 = vsel %vm398, %v1078, %v1054
  %v1085 = vsel %vm398, %v1079, %v1056
  %v1086 = vsel %vm398, %v1080, %v1058
  %v1087 = vsel %vm398, %v1081, %v1060
  %v1088 = vsel %vm398, %v1082, %v1062
  %v1089 = vsel %vm398, %v1083, %v1064
  %v1090 = vld [vmem:[%s8] sm:$0xf]
  %v1091 = vld [vmem:[%s8 + $0x4] sm:$0xf]
  %v1092 = vld [vmem:[%s8 + $0x8] sm:$0xf]
  %v1093 = vld [vmem:[%s8 + $0xc] sm:$0xf]
  %v1094 = vld [vmem:[%s8 + $0x10] sm:$0xf]
  %v1095 = vld [vmem:[%s8 + $0x14] sm:$0xf]
  %v1096 = vld [vmem:[%s8 + $0x18] sm:$0xf]
  %v1097 = vld [vmem:[%s8 + $0x1c] sm:$0xf]
  %v1098 = vpack.c.bf16 %v1085, %v1084
  %v1099 = vpack.c.bf16 %v1087, %v1086
  %v1100 = vpack.c.bf16 %v1089, %v1088
  %v1109 = vunpack.c.l.b16 %v1090
  %v1110 = vunpack.c.l.b16 %v1091
  %v1111 = vunpack.c.l.b16 %v1092
  %v1112 = vunpack.c.l.b16 %v1093
  %v1113 = vunpack.c.l.b16 %v1094
  %v1114 = vunpack.c.l.b16 %v1095
  %v1115 = vunpack.c.l.b16 %v1096
  %v1116 = vunpack.c.l.b16 %v1097
  %v1117 = vpack.c.b16 %v1110, %v1109
  %v1118 = vpack.c.b16 %v1112, %v1111
  %v1119 = vpack.c.b16 %v1114, %v1113
  %v1120 = vpack.c.b16 %v1116, %v1115
  %v1126 = vsel %vm68, %v1098, 0
  %v1129 = vsel %vm68, %v1099, 0
  %v1132 = vsel %vm68, %v1100, 0
  %1134 = vmatpush.bf16.msra.mxu0 0
  %1135 = vmatpush.bf16.msra.mxu0 0
  %1136 = vmatpush.bf16.msra.mxu0 0
  %1137 = vmatpush.bf16.msra.mxu0 0
  %1138 = vmatpush.bf16.msra.mxu0 %v1120
  %1139 = vmatpush.bf16.msra.mxu0 %v1119
  %1140 = vmatpush.bf16.msra.mxu0 %v1118
  %1141 = vmatpush.bf16.msra.mxu0 %v1117
  %1142 = vmatmul.bf16.gmra.mxu0 %v1126
  %v1143 = vpop.f32.mrf.mxu0
  %v1144 = vadd.f32 0.0, %v1143
  %v1145 = vpop.f32.mrf.mxu0
  %v1146 = vadd.f32 0.0, %v1145
  %1147 = vmatmul.bf16.gmra.mxu0 %v1129
  %v1148 = vpop.f32.mrf.mxu0
  %v1149 = vadd.f32 0.0, %v1148
  %v1150 = vpop.f32.mrf.mxu0
  %v1151 = vadd.f32 0.0, %v1150
  %1152 = vmatmul.bf16.gmra.mxu0 %v1132
  %v1153 = vpop.f32.mrf.mxu0
  %v1154 = vadd.f32 0.0, %v1153
  %v1155 = vpop.f32.mrf.mxu0
  %v1156 = vadd.f32 0.0, %v1155
  %1157 = vdwg.mxu0
  %v1158 = vadd.f32 %v54, %v1144
  %v1159 = vadd.f32 %v55, %v1146
  %v1160 = vadd.f32 %v56, %v1149
  %v1161 = vadd.f32 %v57, %v1151
  %v1162 = vadd.f32 %v58, %v1154
  %v1163 = vadd.f32 %v59, %v1156
  %v1164 = vld [vmem:[%s9] sm:$0x1]
  %v1166 = vperm.slane %v1164, 0
  %v1168 = vadd.f32 %v1158, %v1166
  %v1169 = vadd.f32 %v1159, %v1166
  %v1170 = vadd.f32 %v1160, %v1166
  %v1171 = vadd.f32 %v1161, %v1166
  %v1172 = vadd.f32 %v1162, %v1166
  %v1173 = vadd.f32 %v1163, %v1166
  %v1174 = vld [vmem:[%s10] sm:$0x1]
  %v1175 = vld [vmem:[%s11] sm:$0x1]
  %v1176 = vsel %vm68, %v1168, 0.0
  %1177 = vadd.xlane.f32.xlu0 %v1176
  %v1178 = vpop.xlane.xlu0 %1177
  %v1179 = vsel %vm68, %v1169, 0.0
  %1180 = vadd.xlane.f32.xlu0 %v1179
  %v1181 = vpop.xlane.xlu0 %1180
  %v1182 = vsel %vm68, %v1170, 0.0
  %1183 = vadd.xlane.f32.xlu0 %v1182
  %v1184 = vpop.xlane.xlu0 %1183
  %v1185 = vsel %vm68, %v1171, 0.0
  %1186 = vadd.xlane.f32.xlu0 %v1185
  %v1187 = vpop.xlane.xlu0 %1186
  %v1188 = vsel %vm68, %v1172, 0.0
  %1189 = vadd.xlane.f32.xlu0 %v1188
  %v1190 = vpop.xlane.xlu0 %1189
  %v1191 = vsel %vm68, %v1173, 0.0
  %1192 = vadd.xlane.f32.xlu0 %v1191
  %v1193 = vpop.xlane.xlu0 %1192
  %v1194 = vmul.f32 %v1178, %v93
  %v1195 = vmul.f32 %v1181, %v93
  %v1196 = vmul.f32 %v1184, %v93
  %v1197 = vmul.f32 %v1187, %v93
  %v1198 = vmul.f32 %v1190, %v93
  %v1199 = vmul.f32 %v1193, %v93
  %v1200 = vsub.f32 %v1168, %v1194
  %v1201 = vsub.f32 %v1169, %v1195
  %v1202 = vsub.f32 %v1170, %v1196
  %v1203 = vsub.f32 %v1171, %v1197
  %v1204 = vsub.f32 %v1172, %v1198
  %v1205 = vsub.f32 %v1173, %v1199
  %v1206 = vmul.f32 %v1200, %v1200
  %v1207 = vmul.f32 %v1201, %v1201
  %v1208 = vmul.f32 %v1202, %v1202
  %v1209 = vmul.f32 %v1203, %v1203
  %v1210 = vmul.f32 %v1204, %v1204
  %v1211 = vmul.f32 %v1205, %v1205
  %v1212 = vsel %vm68, %v1206, 0.0
  %1213 = vadd.xlane.f32.xlu0 %v1212
  %v1214 = vpop.xlane.xlu0 %1213
  %v1215 = vsel %vm68, %v1207, 0.0
  %1216 = vadd.xlane.f32.xlu0 %v1215
  %v1217 = vpop.xlane.xlu0 %1216
  %v1218 = vsel %vm68, %v1208, 0.0
  %1219 = vadd.xlane.f32.xlu0 %v1218
  %v1220 = vpop.xlane.xlu0 %1219
  %v1221 = vsel %vm68, %v1209, 0.0
  %1222 = vadd.xlane.f32.xlu0 %v1221
  %v1223 = vpop.xlane.xlu0 %1222
  %v1224 = vsel %vm68, %v1210, 0.0
  %1225 = vadd.xlane.f32.xlu0 %v1224
  %v1226 = vpop.xlane.xlu0 %1225
  %v1227 = vsel %vm68, %v1211, 0.0
  %1228 = vadd.xlane.f32.xlu0 %v1227
  %v1229 = vpop.xlane.xlu0 %1228
  %v1230 = vmul.f32 %v1214, %v93
  %v1231 = vmul.f32 %v1217, %v93
  %v1232 = vmul.f32 %v1220, %v93
  %v1233 = vmul.f32 %v1223, %v93
  %v1234 = vmul.f32 %v1226, %v93
  %v1235 = vmul.f32 %v1229, %v93
  %v1236 = vadd.f32 %v1230, 1e-05
  %v1237 = vadd.f32 %v1231, 1e-05
  %v1238 = vadd.f32 %v1232, 1e-05
  %v1239 = vadd.f32 %v1233, 1e-05
  %v1240 = vadd.f32 %v1234, 1e-05
  %v1241 = vadd.f32 %v1235, 1e-05
  %v1242 = vrsqrt.pop %v1236
  %v1243 = vmul.f32 %v1242, %v1236
  %v1244 = vmul.f32 %v1243, %v1242
  %v1245 = vmul.f32 0.5, %v1244
  %v1246 = vsub.f32 1.5, %v1245
  %v1247 = vmul.f32 %v1242, %v1246
  %vm1248 = vweird.f32 %v1236
  %vm1249 = vweird.f32 %v1242
  %vm1250 = vmor %vm1248, %vm1249
  %v1251 = vsel %vm1250, %v1242, %v1247
  %v1252 = vrsqrt.pop %v1237
  %v1253 = vmul.f32 %v1252, %v1237
  %v1254 = vmul.f32 %v1253, %v1252
  %v1255 = vmul.f32 0.5, %v1254
  %v1256 = vsub.f32 1.5, %v1255
  %v1257 = vmul.f32 %v1252, %v1256
  %vm1258 = vweird.f32 %v1237
  %vm1259 = vweird.f32 %v1252
  %vm1260 = vmor %vm1258, %vm1259
  %v1261 = vsel %vm1260, %v1252, %v1257
  %v1262 = vrsqrt.pop %v1238
  %v1263 = vmul.f32 %v1262, %v1238
  %v1264 = vmul.f32 %v1263, %v1262
  %v1265 = vmul.f32 0.5, %v1264
  %v1266 = vsub.f32 1.5, %v1265
  %v1267 = vmul.f32 %v1262, %v1266
  %vm1268 = vweird.f32 %v1238
  %vm1269 = vweird.f32 %v1262
  %vm1270 = vmor %vm1268, %vm1269
  %v1271 = vsel %vm1270, %v1262, %v1267
  %v1272 = vrsqrt.pop %v1239
  %v1273 = vmul.f32 %v1272, %v1239
  %v1274 = vmul.f32 %v1273, %v1272
  %v1275 = vmul.f32 0.5, %v1274
  %v1276 = vsub.f32 1.5, %v1275
  %v1277 = vmul.f32 %v1272, %v1276
  %vm1278 = vweird.f32 %v1239
  %vm1279 = vweird.f32 %v1272
  %vm1280 = vmor %vm1278, %vm1279
  %v1281 = vsel %vm1280, %v1272, %v1277
  %v1282 = vrsqrt.pop %v1240
  %v1283 = vmul.f32 %v1282, %v1240
  %v1284 = vmul.f32 %v1283, %v1282
  %v1285 = vmul.f32 0.5, %v1284
  %v1286 = vsub.f32 1.5, %v1285
  %v1287 = vmul.f32 %v1282, %v1286
  %vm1288 = vweird.f32 %v1240
  %vm1289 = vweird.f32 %v1282
  %vm1290 = vmor %vm1288, %vm1289
  %v1291 = vsel %vm1290, %v1282, %v1287
  %v1292 = vrsqrt.pop %v1241
  %v1293 = vmul.f32 %v1292, %v1241
  %v1294 = vmul.f32 %v1293, %v1292
  %v1295 = vmul.f32 0.5, %v1294
  %v1296 = vsub.f32 1.5, %v1295
  %v1297 = vmul.f32 %v1292, %v1296
  %vm1298 = vweird.f32 %v1241
  %vm1299 = vweird.f32 %v1292
  %vm1300 = vmor %vm1298, %vm1299
  %v1301 = vsel %vm1300, %v1292, %v1297
  %v1302 = vmul.f32 %v1200, %v1251
  %v1303 = vmul.f32 %v1201, %v1261
  %v1304 = vmul.f32 %v1202, %v1271
  %v1305 = vmul.f32 %v1203, %v1281
  %v1306 = vmul.f32 %v1204, %v1291
  %v1307 = vmul.f32 %v1205, %v1301
  %v1309 = vperm.slane %v1174, 0
  %v1311 = vmul.f32 %v1302, %v1309
  %v1312 = vmul.f32 %v1303, %v1309
  %v1313 = vmul.f32 %v1304, %v1309
  %v1314 = vmul.f32 %v1305, %v1309
  %v1315 = vmul.f32 %v1306, %v1309
  %v1316 = vmul.f32 %v1307, %v1309
  %v1318 = vperm.slane %v1175, 0
  %v1320 = vadd.f32 %v1311, %v1318
  %v1321 = vadd.f32 %v1312, %v1318
  %v1322 = vadd.f32 %v1313, %v1318
  %v1323 = vadd.f32 %v1314, %v1318
  %v1324 = vadd.f32 %v1315, %v1318
  %v1325 = vadd.f32 %v1316, %v1318
  %v1326 = vld [vmem:[%s12] sm:$0xf]
  %v1327 = vld [vmem:[%s12 + $0x4] sm:$0xf]
  %v1328 = vld [vmem:[%s12 + $0x8] sm:$0xf]
  %v1329 = vld [vmem:[%s12 + $0xc] sm:$0xf]
  %v1330 = vld [vmem:[%s12 + $0x10] sm:$0xf]
  %v1331 = vld [vmem:[%s12 + $0x14] sm:$0xf]
  %v1332 = vld [vmem:[%s12 + $0x18] sm:$0xf]
  %v1333 = vld [vmem:[%s12 + $0x1c] sm:$0xf]
  %v1334 = vpack.c.bf16 %v1321, %v1320
  %v1335 = vpack.c.bf16 %v1323, %v1322
  %v1336 = vpack.c.bf16 %v1325, %v1324
  %v1337 = vld [vmem:[%s13] sm:$0x1]
  %v1339 = vperm.slane %v1337, 0
  %v1349 = vunpack.c.l.b16 %v1326
  %v1350 = vunpack.c.l.b16 %v1327
  %v1351 = vunpack.c.l.b16 %v1328
  %v1352 = vunpack.c.l.b16 %v1329
  %v1353 = vunpack.c.l.b16 %v1330
  %v1354 = vunpack.c.l.b16 %v1331
  %v1355 = vunpack.c.l.b16 %v1332
  %v1356 = vunpack.c.l.b16 %v1333
  %v1357 = vpack.c.b16 %v1350, %v1349
  %v1358 = vpack.c.b16 %v1352, %v1351
  %v1359 = vpack.c.b16 %v1354, %v1353
  %v1360 = vpack.c.b16 %v1356, %v1355
  %v1366 = vsel %vm68, %v1334, 0
  %v1369 = vsel %vm68, %v1335, 0
  %v1372 = vsel %vm68, %v1336, 0
  %1374 = vmatpush.bf16.msra.mxu0 0
  %1375 = vmatpush.bf16.msra.mxu0 0
  %1376 = vmatpush.bf16.msra.mxu0 0
  %1377 = vmatpush.bf16.msra.mxu0 0
  %1378 = vmatpush.bf16.msra.mxu0 %v1360
  %1379 = vmatpush.bf16.msra.mxu0 %v1359
  %1380 = vmatpush.bf16.msra.mxu0 %v1358
  %1381 = vmatpush.bf16.msra.mxu0 %v1357
  %1382 = vmatmul.bf16.gmra.mxu0 %v1366
  %v1383 = vpop.f32.mrf.mxu0
  %v1384 = vadd.f32 %v1339, %v1383
  %v1385 = vpop.f32.mrf.mxu0
  %v1386 = vadd.f32 %v1339, %v1385
  %1387 = vmatmul.bf16.gmra.mxu0 %v1369
  %v1388 = vpop.f32.mrf.mxu0
  %v1389 = vadd.f32 %v1339, %v1388
  %v1390 = vpop.f32.mrf.mxu0
  %v1391 = vadd.f32 %v1339, %v1390
  %1392 = vmatmul.bf16.gmra.mxu0 %v1372
  %v1393 = vpop.f32.mrf.mxu0
  %v1394 = vadd.f32 %v1339, %v1393
  %v1395 = vpop.f32.mrf.mxu0
  %v1396 = vadd.f32 %v1339, %v1395
  %1397 = vdwg.mxu0
  %v1398 = vmul.f32 %v1384, 0.5
  %v1399 = vmul.f32 %v1386, 0.5
  %v1400 = vmul.f32 %v1389, 0.5
  %v1401 = vmul.f32 %v1391, 0.5
  %v1402 = vmul.f32 %v1394, 0.5
  %v1403 = vmul.f32 %v1396, 0.5
  %v1404 = vmul.f32 %v1384, 0.044715
  %v1405 = vmul.f32 %v1386, 0.044715
  %v1406 = vmul.f32 %v1389, 0.044715
  %v1407 = vmul.f32 %v1391, 0.044715
  %v1408 = vmul.f32 %v1394, 0.044715
  %v1409 = vmul.f32 %v1396, 0.044715
  %v1410 = vmul.f32 %v1404, %v1384
  %v1411 = vmul.f32 %v1405, %v1386
  %v1412 = vmul.f32 %v1406, %v1389
  %v1413 = vmul.f32 %v1407, %v1391
  %v1414 = vmul.f32 %v1408, %v1394
  %v1415 = vmul.f32 %v1409, %v1396
  %v1416 = vmul.f32 %v1410, %v1384
  %v1417 = vmul.f32 %v1411, %v1386
  %v1418 = vmul.f32 %v1412, %v1389
  %v1419 = vmul.f32 %v1413, %v1391
  %v1420 = vmul.f32 %v1414, %v1394
  %v1421 = vmul.f32 %v1415, %v1396
  %v1422 = vadd.f32 %v1384, %v1416
  %v1423 = vadd.f32 %v1386, %v1417
  %v1424 = vadd.f32 %v1389, %v1418
  %v1425 = vadd.f32 %v1391, %v1419
  %v1426 = vadd.f32 %v1394, %v1420
  %v1427 = vadd.f32 %v1396, %v1421
  %v1428 = vmul.f32 %v1422, 0.7978846
  %v1429 = vmul.f32 %v1423, 0.7978846
  %v1430 = vmul.f32 %v1424, 0.7978846
  %v1431 = vmul.f32 %v1425, 0.7978846
  %v1432 = vmul.f32 %v1426, 0.7978846
  %v1433 = vmul.f32 %v1427, 0.7978846
  %v1434 = vtanh.pop %v1428
  %v1435 = vtanh.pop %v1429
  %v1436 = vtanh.pop %v1430
  %v1437 = vtanh.pop %v1431
  %v1438 = vtanh.pop %v1432
  %v1439 = vtanh.pop %v1433
  %v1440 = vadd.f32 %v1434, 1.0
  %v1441 = vadd.f32 %v1435, 1.0
  %v1442 = vadd.f32 %v1436, 1.0
  %v1443 = vadd.f32 %v1437, 1.0
  %v1444 = vadd.f32 %v1438, 1.0
  %v1445 = vadd.f32 %v1439, 1.0
  %v1446 = vmul.f32 %v1398, %v1440
  %v1447 = vmul.f32 %v1399, %v1441
  %v1448 = vmul.f32 %v1400, %v1442
  %v1449 = vmul.f32 %v1401, %v1443
  %v1450 = vmul.f32 %v1402, %v1444
  %v1451 = vmul.f32 %v1403, %v1445
  %v1452 = vld [vmem:[%s14] sm:$0xf]
  %v1453 = vld [vmem:[%s14 + $0x4] sm:$0xf]
  %v1454 = vld [vmem:[%s14 + $0x8] sm:$0xf]
  %v1455 = vld [vmem:[%s14 + $0xc] sm:$0xf]
  %v1456 = vld [vmem:[%s14 + $0x10] sm:$0xf]
  %v1457 = vld [vmem:[%s14 + $0x14] sm:$0xf]
  %v1458 = vld [vmem:[%s14 + $0x18] sm:$0xf]
  %v1459 = vld [vmem:[%s14 + $0x1c] sm:$0xf]
  %v1460 = vld [vmem:[%s14 + $0x20] sm:$0xf]
  %v1461 = vld [vmem:[%s14 + $0x24] sm:$0xf]
  %v1462 = vld [vmem:[%s14 + $0x28] sm:$0xf]
  %v1463 = vld [vmem:[%s14 + $0x2c] sm:$0xf]
  %v1464 = vld [vmem:[%s14 + $0x30] sm:$0xf]
  %v1465 = vld [vmem:[%s14 + $0x34] sm:$0xf]
  %v1466 = vld [vmem:[%s14 + $0x38] sm:$0xf]
  %v1467 = vld [vmem:[%s14 + $0x3c] sm:$0xf]
  %v1468 = vpack.c.bf16 %v1447, %v1446
  %v1469 = vpack.c.bf16 %v1449, %v1448
  %v1470 = vpack.c.bf16 %v1451, %v1450
  %v1471 = vld [vmem:[%s15] sm:$0x1]
  %v1473 = vperm.slane %v1471, 0
  %v1491 = vunpack.c.l.b16 %v1452
  %v1492 = vunpack.c.l.b16 %v1453
  %v1493 = vunpack.c.l.b16 %v1454
  %v1494 = vunpack.c.l.b16 %v1455
  %v1495 = vunpack.c.l.b16 %v1456
  %v1496 = vunpack.c.l.b16 %v1457
  %v1497 = vunpack.c.l.b16 %v1458
  %v1498 = vunpack.c.l.b16 %v1459
  %v1499 = vunpack.c.l.b16 %v1460
  %v1500 = vunpack.c.l.b16 %v1461
  %v1501 = vunpack.c.l.b16 %v1462
  %v1502 = vunpack.c.l.b16 %v1463
  %v1503 = vunpack.c.l.b16 %v1464
  %v1504 = vunpack.c.l.b16 %v1465
  %v1505 = vunpack.c.l.b16 %v1466
  %v1506 = vunpack.c.l.b16 %v1467
  %v1507 = vpack.c.b16 %v1492, %v1491
  %v1508 = vpack.c.b16 %v1494, %v1493
  %v1509 = vpack.c.b16 %v1496, %v1495
  %v1510 = vpack.c.b16 %v1498, %v1497
  %v1511 = vpack.c.b16 %v1500, %v1499
  %v1512 = vpack.c.b16 %v1502, %v1501
  %v1513 = vpack.c.b16 %v1504, %v1503
  %v1514 = vpack.c.b16 %v1506, %v1505
  %1523 = vmatpush.bf16.msra.mxu0 %v1514
  %1524 = vmatpush.bf16.msra.mxu0 %v1513
  %1525 = vmatpush.bf16.msra.mxu0 %v1512
  %1526 = vmatpush.bf16.msra.mxu0 %v1511
  %1527 = vmatpush.bf16.msra.mxu0 %v1510
  %1528 = vmatpush.bf16.msra.mxu0 %v1509
  %1529 = vmatpush.bf16.msra.mxu0 %v1508
  %1530 = vmatpush.bf16.msra.mxu0 %v1507
  %1531 = vmatmul.bf16.gmra.mxu0 %v1468
  %v1532 = vpop.f32.mrf.mxu0
  %v1533 = vadd.f32 %v1473, %v1532
  %v1534 = vpop.f32.mrf.mxu0
  %v1535 = vadd.f32 %v1473, %v1534
  %1536 = vmatmul.bf16.gmra.mxu0 %v1469
  %v1537 = vpop.f32.mrf.mxu0
  %v1538 = vadd.f32 %v1473, %v1537
  %v1539 = vpop.f32.mrf.mxu0
  %v1540 = vadd.f32 %v1473, %v1539
  %1541 = vmatmul.bf16.gmra.mxu0 %v1470
  %v1542 = vpop.f32.mrf.mxu0
  %v1543 = vadd.f32 %v1473, %v1542
  %v1544 = vpop.f32.mrf.mxu0
  %v1545 = vadd.f32 %v1473, %v1544
  %1546 = vdwg.mxu0
  %v1547 = vadd.f32 %v1168, %v1533
  %v1548 = vadd.f32 %v1169, %v1535
  %v1549 = vadd.f32 %v1170, %v1538
  %v1550 = vadd.f32 %v1171, %v1540
  %v1551 = vadd.f32 %v1172, %v1543
  %v1552 = vadd.f32 %v1173, %v1545
  %s1553 = scalar_lea.vmem %s4, 1
  %v1554 = vld [vmem:[%s1553] sm:$0x1]
  %s1555 = scalar_lea.vmem %s5, 1
  %v1556 = vld [vmem:[%s1555] sm:$0x1]
  %v1557 = vsel %vm68, %v1547, 0.0
  %1558 = vadd.xlane.f32.xlu0 %v1557
  %v1559 = vpop.xlane.xlu0 %1558
  %v1560 = vsel %vm68, %v1548, 0.0
  %1561 = vadd.xlane.f32.xlu0 %v1560
  %v1562 = vpop.xlane.xlu0 %1561
  %v1563 = vsel %vm68, %v1549, 0.0
  %1564 = vadd.xlane.f32.xlu0 %v1563
  %v1565 = vpop.xlane.xlu0 %1564
  %v1566 = vsel %vm68, %v1550, 0.0
  %1567 = vadd.xlane.f32.xlu0 %v1566
  %v1568 = vpop.xlane.xlu0 %1567
  %v1569 = vsel %vm68, %v1551, 0.0
  %1570 = vadd.xlane.f32.xlu0 %v1569
  %v1571 = vpop.xlane.xlu0 %1570
  %v1572 = vsel %vm68, %v1552, 0.0
  %1573 = vadd.xlane.f32.xlu0 %v1572
  %v1574 = vpop.xlane.xlu0 %1573
  %v1575 = vmul.f32 %v1559, %v93
  %v1576 = vmul.f32 %v1562, %v93
  %v1577 = vmul.f32 %v1565, %v93
  %v1578 = vmul.f32 %v1568, %v93
  %v1579 = vmul.f32 %v1571, %v93
  %v1580 = vmul.f32 %v1574, %v93
  %v1581 = vsub.f32 %v1547, %v1575
  %v1582 = vsub.f32 %v1548, %v1576
  %v1583 = vsub.f32 %v1549, %v1577
  %v1584 = vsub.f32 %v1550, %v1578
  %v1585 = vsub.f32 %v1551, %v1579
  %v1586 = vsub.f32 %v1552, %v1580
  %v1587 = vmul.f32 %v1581, %v1581
  %v1588 = vmul.f32 %v1582, %v1582
  %v1589 = vmul.f32 %v1583, %v1583
  %v1590 = vmul.f32 %v1584, %v1584
  %v1591 = vmul.f32 %v1585, %v1585
  %v1592 = vmul.f32 %v1586, %v1586
  %v1593 = vsel %vm68, %v1587, 0.0
  %1594 = vadd.xlane.f32.xlu0 %v1593
  %v1595 = vpop.xlane.xlu0 %1594
  %v1596 = vsel %vm68, %v1588, 0.0
  %1597 = vadd.xlane.f32.xlu0 %v1596
  %v1598 = vpop.xlane.xlu0 %1597
  %v1599 = vsel %vm68, %v1589, 0.0
  %1600 = vadd.xlane.f32.xlu0 %v1599
  %v1601 = vpop.xlane.xlu0 %1600
  %v1602 = vsel %vm68, %v1590, 0.0
  %1603 = vadd.xlane.f32.xlu0 %v1602
  %v1604 = vpop.xlane.xlu0 %1603
  %v1605 = vsel %vm68, %v1591, 0.0
  %1606 = vadd.xlane.f32.xlu0 %v1605
  %v1607 = vpop.xlane.xlu0 %1606
  %v1608 = vsel %vm68, %v1592, 0.0
  %1609 = vadd.xlane.f32.xlu0 %v1608
  %v1610 = vpop.xlane.xlu0 %1609
  %v1611 = vmul.f32 %v1595, %v93
  %v1612 = vmul.f32 %v1598, %v93
  %v1613 = vmul.f32 %v1601, %v93
  %v1614 = vmul.f32 %v1604, %v93
  %v1615 = vmul.f32 %v1607, %v93
  %v1616 = vmul.f32 %v1610, %v93
  %v1617 = vadd.f32 %v1611, 1e-05
  %v1618 = vadd.f32 %v1612, 1e-05
  %v1619 = vadd.f32 %v1613, 1e-05
  %v1620 = vadd.f32 %v1614, 1e-05
  %v1621 = vadd.f32 %v1615, 1e-05
  %v1622 = vadd.f32 %v1616, 1e-05
  %v1623 = vrsqrt.pop %v1617
  %v1624 = vmul.f32 %v1623, %v1617
  %v1625 = vmul.f32 %v1624, %v1623
  %v1626 = vmul.f32 0.5, %v1625
  %v1627 = vsub.f32 1.5, %v1626
  %v1628 = vmul.f32 %v1623, %v1627
  %vm1629 = vweird.f32 %v1617
  %vm1630 = vweird.f32 %v1623
  %vm1631 = vmor %vm1629, %vm1630
  %v1632 = vsel %vm1631, %v1623, %v1628
  %v1633 = vrsqrt.pop %v1618
  %v1634 = vmul.f32 %v1633, %v1618
  %v1635 = vmul.f32 %v1634, %v1633
  %v1636 = vmul.f32 0.5, %v1635
  %v1637 = vsub.f32 1.5, %v1636
  %v1638 = vmul.f32 %v1633, %v1637
  %vm1639 = vweird.f32 %v1618
  %vm1640 = vweird.f32 %v1633
  %vm1641 = vmor %vm1639, %vm1640
  %v1642 = vsel %vm1641, %v1633, %v1638
  %v1643 = vrsqrt.pop %v1619
  %v1644 = vmul.f32 %v1643, %v1619
  %v1645 = vmul.f32 %v1644, %v1643
  %v1646 = vmul.f32 0.5, %v1645
  %v1647 = vsub.f32 1.5, %v1646
  %v1648 = vmul.f32 %v1643, %v1647
  %vm1649 = vweird.f32 %v1619
  %vm1650 = vweird.f32 %v1643
  %vm1651 = vmor %vm1649, %vm1650
  %v1652 = vsel %vm1651, %v1643, %v1648
  %v1653 = vrsqrt.pop %v1620
  %v1654 = vmul.f32 %v1653, %v1620
  %v1655 = vmul.f32 %v1654, %v1653
  %v1656 = vmul.f32 0.5, %v1655
  %v1657 = vsub.f32 1.5, %v1656
  %v1658 = vmul.f32 %v1653, %v1657
  %vm1659 = vweird.f32 %v1620
  %vm1660 = vweird.f32 %v1653
  %vm1661 = vmor %vm1659, %vm1660
  %v1662 = vsel %vm1661, %v1653, %v1658
  %v1663 = vrsqrt.pop %v1621
  %v1664 = vmul.f32 %v1663, %v1621
  %v1665 = vmul.f32 %v1664, %v1663
  %v1666 = vmul.f32 0.5, %v1665
  %v1667 = vsub.f32 1.5, %v1666
  %v1668 = vmul.f32 %v1663, %v1667
  %vm1669 = vweird.f32 %v1621
  %vm1670 = vweird.f32 %v1663
  %vm1671 = vmor %vm1669, %vm1670
  %v1672 = vsel %vm1671, %v1663, %v1668
  %v1673 = vrsqrt.pop %v1622
  %v1674 = vmul.f32 %v1673, %v1622
  %v1675 = vmul.f32 %v1674, %v1673
  %v1676 = vmul.f32 0.5, %v1675
  %v1677 = vsub.f32 1.5, %v1676
  %v1678 = vmul.f32 %v1673, %v1677
  %vm1679 = vweird.f32 %v1622
  %vm1680 = vweird.f32 %v1673
  %vm1681 = vmor %vm1679, %vm1680
  %v1682 = vsel %vm1681, %v1673, %v1678
  %v1683 = vmul.f32 %v1581, %v1632
  %v1684 = vmul.f32 %v1582, %v1642
  %v1685 = vmul.f32 %v1583, %v1652
  %v1686 = vmul.f32 %v1584, %v1662
  %v1687 = vmul.f32 %v1585, %v1672
  %v1688 = vmul.f32 %v1586, %v1682
  %v1690 = vperm.slane %v1554, 0
  %v1692 = vmul.f32 %v1683, %v1690
  %v1693 = vmul.f32 %v1684, %v1690
  %v1694 = vmul.f32 %v1685, %v1690
  %v1695 = vmul.f32 %v1686, %v1690
  %v1696 = vmul.f32 %v1687, %v1690
  %v1697 = vmul.f32 %v1688, %v1690
  %v1699 = vperm.slane %v1556, 0
  %v1701 = vadd.f32 %v1692, %v1699
  %v1702 = vadd.f32 %v1693, %v1699
  %v1703 = vadd.f32 %v1694, %v1699
  %v1704 = vadd.f32 %v1695, %v1699
  %v1705 = vadd.f32 %v1696, %v1699
  %v1706 = vadd.f32 %v1697, %v1699
  %s1707 = scalar_lea.vmem %s6, 64
  %v1708 = vld [vmem:[%s1707] sm:$0xff]
  %v1709 = vld [vmem:[%s1707 + $0x8] sm:$0xff]
  %v1710 = vld [vmem:[%s1707 + $0x10] sm:$0xff]
  %v1711 = vld [vmem:[%s1707 + $0x18] sm:$0xff]
  %v1712 = vld [vmem:[%s1707 + $0x20] sm:$0xff]
  %v1713 = vld [vmem:[%s1707 + $0x28] sm:$0xff]
  %v1714 = vld [vmem:[%s1707 + $0x30] sm:$0xff]
  %v1715 = vld [vmem:[%s1707 + $0x38] sm:$0xff]
  %v1716 = vpack.c.bf16 %v1702, %v1701
  %v1717 = vpack.c.bf16 %v1704, %v1703
  %v1718 = vpack.c.bf16 %v1706, %v1705
  %s1719 = scalar_lea.vmem %s7, 2
  %v1720 = vld [vmem:[%s1719] sm:$0x3]
  %v1722 = vperm.slane %v1720, 0
  %v1723 = vperm.slane %v1720, 1
  %v1734 = vunpack.c.l.b16 %v1708
  %v1735 = vunpack.c.h.b16 %v1708
  %v1736 = vunpack.c.l.b16 %v1709
  %v1737 = vunpack.c.h.b16 %v1709
  %v1738 = vunpack.c.l.b16 %v1710
  %v1739 = vunpack.c.h.b16 %v1710
  %v1740 = vunpack.c.l.b16 %v1711
  %v1741 = vunpack.c.h.b16 %v1711
  %v1742 = vunpack.c.l.b16 %v1712
  %v1743 = vunpack.c.h.b16 %v1712
  %v1744 = vunpack.c.l.b16 %v1713
  %v1745 = vunpack.c.h.b16 %v1713
  %v1746 = vunpack.c.l.b16 %v1714
  %v1747 = vunpack.c.h.b16 %v1714
  %v1748 = vunpack.c.l.b16 %v1715
  %v1749 = vunpack.c.h.b16 %v1715
  %v1750 = vpack.c.b16 %v1736, %v1734
  %v1751 = vpack.c.b16 %v1737, %v1735
  %v1752 = vpack.c.b16 %v1740, %v1738
  %v1753 = vpack.c.b16 %v1741, %v1739
  %v1754 = vpack.c.b16 %v1744, %v1742
  %v1755 = vpack.c.b16 %v1745, %v1743
  %v1756 = vpack.c.b16 %v1748, %v1746
  %v1757 = vpack.c.b16 %v1749, %v1747
  %v1767 = vsel %vm68, %v1716, 0
  %v1770 = vsel %vm68, %v1717, 0
  %v1773 = vsel %vm68, %v1718, 0
  %1775 = vmatpush.bf16.msra.mxu0 0
  %1776 = vmatpush.bf16.msra.mxu0 0
  %1777 = vmatpush.bf16.msra.mxu0 0
  %1778 = vmatpush.bf16.msra.mxu0 0
  %1779 = vmatpush.bf16.msra.mxu0 %v1756
  %1780 = vmatpush.bf16.msra.mxu0 %v1754
  %1781 = vmatpush.bf16.msra.mxu0 %v1752
  %1782 = vmatpush.bf16.msra.mxu0 %v1750
  %1783 = vmatmul.bf16.gmra.mxu0 %v1767
  %v1784 = vpop.f32.mrf.mxu0
  %v1785 = vadd.f32 %v1722, %v1784
  %v1786 = vpop.f32.mrf.mxu0
  %v1787 = vadd.f32 %v1722, %v1786
  %1788 = vmatmul.bf16.gmra.mxu0 %v1770
  %v1789 = vpop.f32.mrf.mxu0
  %v1790 = vadd.f32 %v1722, %v1789
  %v1791 = vpop.f32.mrf.mxu0
  %v1792 = vadd.f32 %v1722, %v1791
  %1793 = vmatmul.bf16.gmra.mxu0 %v1773
  %v1794 = vpop.f32.mrf.mxu0
  %v1795 = vadd.f32 %v1722, %v1794
  %v1796 = vpop.f32.mrf.mxu0
  %v1797 = vadd.f32 %v1722, %v1796
  %1798 = vdwg.mxu0
  %1799 = vmatpush.bf16.msra.mxu0 0
  %1800 = vmatpush.bf16.msra.mxu0 0
  %1801 = vmatpush.bf16.msra.mxu0 0
  %1802 = vmatpush.bf16.msra.mxu0 0
  %1803 = vmatpush.bf16.msra.mxu0 %v1757
  %1804 = vmatpush.bf16.msra.mxu0 %v1755
  %1805 = vmatpush.bf16.msra.mxu0 %v1753
  %1806 = vmatpush.bf16.msra.mxu0 %v1751
  %1807 = vmatmul.bf16.gmra.mxu0 %v1767
  %v1808 = vpop.f32.mrf.mxu0
  %v1809 = vadd.f32 %v1723, %v1808
  %v1810 = vpop.f32.mrf.mxu0
  %v1811 = vadd.f32 %v1723, %v1810
  %1812 = vmatmul.bf16.gmra.mxu0 %v1770
  %v1813 = vpop.f32.mrf.mxu0
  %v1814 = vadd.f32 %v1723, %v1813
  %v1815 = vpop.f32.mrf.mxu0
  %v1816 = vadd.f32 %v1723, %v1815
  %1817 = vmatmul.bf16.gmra.mxu0 %v1773
  %v1818 = vpop.f32.mrf.mxu0
  %v1819 = vadd.f32 %v1723, %v1818
  %v1820 = vpop.f32.mrf.mxu0
  %v1821 = vadd.f32 %v1723, %v1820
  %1822 = vdwg.mxu0
  %v1823 = vpack.c.bf16 %v1787, %v1785
  %v1824 = vpack.c.bf16 %v1792, %v1790
  %v1825 = vpack.c.bf16 %v1797, %v1795
  %v1826 = vpack.c.bf16 %v1811, %v1809
  %v1827 = vpack.c.bf16 %v1816, %v1814
  %v1828 = vpack.c.bf16 %v1821, %v1819
  %1832 = vrot.lane.b32.xlu0 %v1823, 64
  %v1833 = vpop.permute.xlu0 %1832
  %1834 = vrot.lane.b32.xlu0 %v1824, 64
  %v1835 = vpop.permute.xlu0 %1834
  %1836 = vrot.lane.b32.xlu0 %v1825, 64
  %v1837 = vpop.permute.xlu0 %1836
  %v1839 = vsel %vm355, %v1823, 0
  %v1842 = vsel %vm355, %v1824, 0
  %v1845 = vsel %vm355, %v1825, 0
  %v1848 = vsel %vm355, %v1833, 0
  %v1851 = vsel %vm355, %v1835, 0
  %v1854 = vsel %vm355, %v1837, 0
  %1856 = vmatpush.bf16.xpose.msra.mxu0 0
  %1857 = vmatpush.bf16.xpose.msra.mxu0 0
  %1858 = vmatpush.bf16.xpose.msra.mxu0 0
  %1859 = vmatpush.bf16.xpose.msra.mxu0 0
  %1860 = vmatpush.bf16.xpose.msra.mxu0 0
  %1861 = vmatpush.bf16.xpose.msra.mxu0 %v1854
  %1862 = vmatpush.bf16.xpose.msra.mxu0 %v1851
  %1863 = vmatpush.bf16.xpose.msra.mxu0 %v1848
  %1864 = vmatmul.bf16.gmra.mxu0 %v1839
  %v1865 = vpop.f32.mrf.mxu0
  %v1866 = vadd.f32 %v60, %v1865
  %v1867 = vpop.f32.mrf.mxu0
  %v1868 = vadd.f32 %v61, %v1867
  %1869 = vmatmul.bf16.gmra.mxu0 %v1842
  %v1870 = vpop.f32.mrf.mxu0
  %v1871 = vadd.f32 %v62, %v1870
  %v1872 = vpop.f32.mrf.mxu0
  %v1873 = vadd.f32 %v63, %v1872
  %1874 = vmatmul.bf16.gmra.mxu0 %v1845
  %v1875 = vpop.f32.mrf.mxu0
  %v1876 = vadd.f32 %v64, %v1875
  %v1877 = vpop.f32.mrf.mxu0
  %v1878 = vadd.f32 %v65, %v1877
  %1879 = vdwg.mxu0
  %v1880 = vsel %vm398, %v1866, -inf
  %1881 = vmax.xlane.f32.xlu0 %v1880
  %v1882 = vpop.xlane.xlu0 %1881
  %v1883 = vsel %vm398, %v1868, -inf
  %1884 = vmax.xlane.f32.xlu0 %v1883
  %v1885 = vpop.xlane.xlu0 %1884
  %v1886 = vsel %vm398, %v1871, -inf
  %1887 = vmax.xlane.f32.xlu0 %v1886
  %v1888 = vpop.xlane.xlu0 %1887
  %v1889 = vsel %vm398, %v1873, -inf
  %1890 = vmax.xlane.f32.xlu0 %v1889
  %v1891 = vpop.xlane.xlu0 %1890
  %v1892 = vsel %vm398, %v1876, -inf
  %1893 = vmax.xlane.f32.xlu0 %v1892
  %v1894 = vpop.xlane.xlu0 %1893
  %v1895 = vsel %vm398, %v1878, -inf
  %1896 = vmax.xlane.f32.xlu0 %v1895
  %v1897 = vpop.xlane.xlu0 %1896
  %v1898 = vsub.f32 %v1866, %v1882
  %v1899 = vsub.f32 %v1868, %v1885
  %v1900 = vsub.f32 %v1871, %v1888
  %v1901 = vsub.f32 %v1873, %v1891
  %v1902 = vsub.f32 %v1876, %v1894
  %v1903 = vsub.f32 %v1878, %v1897
  %v1904 = vmul.f32 %v1898, 1.442695
  %v1905 = vpow.pop %v1904
  %v1906 = vmul.f32 %v1899, 1.442695
  %v1907 = vpow.pop %v1906
  %v1908 = vmul.f32 %v1900, 1.442695
  %v1909 = vpow.pop %v1908
  %v1910 = vmul.f32 %v1901, 1.442695
  %v1911 = vpow.pop %v1910
  %v1912 = vmul.f32 %v1902, 1.442695
  %v1913 = vpow.pop %v1912
  %v1914 = vmul.f32 %v1903, 1.442695
  %v1915 = vpow.pop %v1914
  %v1916 = vsel %vm398, %v1905, 0.0
  %1917 = vadd.xlane.f32.xlu0 %v1916
  %v1918 = vpop.xlane.xlu0 %1917
  %v1919 = vsel %vm398, %v1907, 0.0
  %1920 = vadd.xlane.f32.xlu0 %v1919
  %v1921 = vpop.xlane.xlu0 %1920
  %v1922 = vsel %vm398, %v1909, 0.0
  %1923 = vadd.xlane.f32.xlu0 %v1922
  %v1924 = vpop.xlane.xlu0 %1923
  %v1925 = vsel %vm398, %v1911, 0.0
  %1926 = vadd.xlane.f32.xlu0 %v1925
  %v1927 = vpop.xlane.xlu0 %1926
  %v1928 = vsel %vm398, %v1913, 0.0
  %1929 = vadd.xlane.f32.xlu0 %v1928
  %v1930 = vpop.xlane.xlu0 %1929
  %v1931 = vsel %vm398, %v1915, 0.0
  %1932 = vadd.xlane.f32.xlu0 %v1931
  %v1933 = vpop.xlane.xlu0 %1932
  %v1934 = vrcp.pop %v1918
  %v1935 = vrcp.pop %v1921
  %v1936 = vrcp.pop %v1924
  %v1937 = vrcp.pop %v1927
  %v1938 = vrcp.pop %v1930
  %v1939 = vrcp.pop %v1933
  %v1940 = vmul.f32 %v1905, %v1934
  %v1941 = vmul.f32 %v1907, %v1935
  %v1942 = vmul.f32 %v1909, %v1936
  %v1943 = vmul.f32 %v1911, %v1937
  %v1944 = vmul.f32 %v1913, %v1938
  %v1945 = vmul.f32 %v1915, %v1939
  %v1946 = vpack.c.bf16 %v1941, %v1940
  %v1947 = vpack.c.bf16 %v1943, %v1942
  %v1948 = vpack.c.bf16 %v1945, %v1944
  %v1950 = vsel %vm398, %v1946, 0
  %v1953 = vsel %vm398, %v1947, 0
  %v1956 = vsel %vm398, %v1948, 0
  %1958 = vmatpush.bf16.msra.mxu0 0
  %1959 = vmatpush.bf16.msra.mxu0 0
  %1960 = vmatpush.bf16.msra.mxu0 0
  %1961 = vmatpush.bf16.msra.mxu0 0
  %1962 = vmatpush.bf16.msra.mxu0 0
  %1963 = vmatpush.bf16.msra.mxu0 %v1828
  %1964 = vmatpush.bf16.msra.mxu0 %v1827
  %1965 = vmatpush.bf16.msra.mxu0 %v1826
  %1966 = vmatmul.bf16.gmra.mxu0 %v1950
  %v1967 = vpop.f32.mrf.mxu0
  %v1968 = vadd.f32 0.0, %v1967
  %v1969 = vpop.f32.mrf.mxu0
  %v1970 = vadd.f32 0.0, %v1969
  %1971 = vmatmul.bf16.gmra.mxu0 %v1953
  %v1972 = vpop.f32.mrf.mxu0
  %v1973 = vadd.f32 0.0, %v1972
  %v1974 = vpop.f32.mrf.mxu0
  %v1975 = vadd.f32 0.0, %v1974
  %1976 = vmatmul.bf16.gmra.mxu0 %v1956
  %v1977 = vpop.f32.mrf.mxu0
  %v1978 = vadd.f32 0.0, %v1977
  %v1979 = vpop.f32.mrf.mxu0
  %v1980 = vadd.f32 0.0, %v1979
  %1981 = vdwg.mxu0
  %1982 = vrot.lane.b32.xlu0 %v1823, 112
  %v1983 = vpop.permute.xlu0 %1982
  %1984 = vrot.lane.b32.xlu0 %v1824, 112
  %v1985 = vpop.permute.xlu0 %1984
  %1986 = vrot.lane.b32.xlu0 %v1825, 112
  %v1987 = vpop.permute.xlu0 %1986
  %1988 = vrot.lane.b32.xlu0 %v1823, 48
  %v1989 = vpop.permute.xlu0 %1988
  %1990 = vrot.lane.b32.xlu0 %v1824, 48
  %v1991 = vpop.permute.xlu0 %1990
  %1992 = vrot.lane.b32.xlu0 %v1825, 48
  %v1993 = vpop.permute.xlu0 %1992
  %v1995 = vsel %vm355, %v1983, 0
  %v1998 = vsel %vm355, %v1985, 0
  %v2001 = vsel %vm355, %v1987, 0
  %v2004 = vsel %vm355, %v1989, 0
  %v2007 = vsel %vm355, %v1991, 0
  %v2010 = vsel %vm355, %v1993, 0
  %2012 = vmatpush.bf16.xpose.msra.mxu0 0
  %2013 = vmatpush.bf16.xpose.msra.mxu0 0
  %2014 = vmatpush.bf16.xpose.msra.mxu0 0
  %2015 = vmatpush.bf16.xpose.msra.mxu0 0
  %2016 = vmatpush.bf16.xpose.msra.mxu0 0
  %2017 = vmatpush.bf16.xpose.msra.mxu0 %v2010
  %2018 = vmatpush.bf16.xpose.msra.mxu0 %v2007
  %2019 = vmatpush.bf16.xpose.msra.mxu0 %v2004
  %2020 = vmatmul.bf16.gmra.mxu0 %v1995
  %v2021 = vpop.f32.mrf.mxu0
  %v2022 = vadd.f32 %v60, %v2021
  %v2023 = vpop.f32.mrf.mxu0
  %v2024 = vadd.f32 %v61, %v2023
  %2025 = vmatmul.bf16.gmra.mxu0 %v1998
  %v2026 = vpop.f32.mrf.mxu0
  %v2027 = vadd.f32 %v62, %v2026
  %v2028 = vpop.f32.mrf.mxu0
  %v2029 = vadd.f32 %v63, %v2028
  %2030 = vmatmul.bf16.gmra.mxu0 %v2001
  %v2031 = vpop.f32.mrf.mxu0
  %v2032 = vadd.f32 %v64, %v2031
  %v2033 = vpop.f32.mrf.mxu0
  %v2034 = vadd.f32 %v65, %v2033
  %2035 = vdwg.mxu0
  %v2036 = vsel %vm398, %v2022, -inf
  %2037 = vmax.xlane.f32.xlu0 %v2036
  %v2038 = vpop.xlane.xlu0 %2037
  %v2039 = vsel %vm398, %v2024, -inf
  %2040 = vmax.xlane.f32.xlu0 %v2039
  %v2041 = vpop.xlane.xlu0 %2040
  %v2042 = vsel %vm398, %v2027, -inf
  %2043 = vmax.xlane.f32.xlu0 %v2042
  %v2044 = vpop.xlane.xlu0 %2043
  %v2045 = vsel %vm398, %v2029, -inf
  %2046 = vmax.xlane.f32.xlu0 %v2045
  %v2047 = vpop.xlane.xlu0 %2046
  %v2048 = vsel %vm398, %v2032, -inf
  %2049 = vmax.xlane.f32.xlu0 %v2048
  %v2050 = vpop.xlane.xlu0 %2049
  %v2051 = vsel %vm398, %v2034, -inf
  %2052 = vmax.xlane.f32.xlu0 %v2051
  %v2053 = vpop.xlane.xlu0 %2052
  %v2054 = vsub.f32 %v2022, %v2038
  %v2055 = vsub.f32 %v2024, %v2041
  %v2056 = vsub.f32 %v2027, %v2044
  %v2057 = vsub.f32 %v2029, %v2047
  %v2058 = vsub.f32 %v2032, %v2050
  %v2059 = vsub.f32 %v2034, %v2053
  %v2060 = vmul.f32 %v2054, 1.442695
  %v2061 = vpow.pop %v2060
  %v2062 = vmul.f32 %v2055, 1.442695
  %v2063 = vpow.pop %v2062
  %v2064 = vmul.f32 %v2056, 1.442695
  %v2065 = vpow.pop %v2064
  %v2066 = vmul.f32 %v2057, 1.442695
  %v2067 = vpow.pop %v2066
  %v2068 = vmul.f32 %v2058, 1.442695
  %v2069 = vpow.pop %v2068
  %v2070 = vmul.f32 %v2059, 1.442695
  %v2071 = vpow.pop %v2070
  %v2072 = vsel %vm398, %v2061, 0.0
  %2073 = vadd.xlane.f32.xlu0 %v2072
  %v2074 = vpop.xlane.xlu0 %2073
  %v2075 = vsel %vm398, %v2063, 0.0
  %2076 = vadd.xlane.f32.xlu0 %v2075
  %v2077 = vpop.xlane.xlu0 %2076
  %v2078 = vsel %vm398, %v2065, 0.0
  %2079 = vadd.xlane.f32.xlu0 %v2078
  %v2080 = vpop.xlane.xlu0 %2079
  %v2081 = vsel %vm398, %v2067, 0.0
  %2082 = vadd.xlane.f32.xlu0 %v2081
  %v2083 = vpop.xlane.xlu0 %2082
  %v2084 = vsel %vm398, %v2069, 0.0
  %2085 = vadd.xlane.f32.xlu0 %v2084
  %v2086 = vpop.xlane.xlu0 %2085
  %v2087 = vsel %vm398, %v2071, 0.0
  %2088 = vadd.xlane.f32.xlu0 %v2087
  %v2089 = vpop.xlane.xlu0 %2088
  %v2090 = vrcp.pop %v2074
  %v2091 = vrcp.pop %v2077
  %v2092 = vrcp.pop %v2080
  %v2093 = vrcp.pop %v2083
  %v2094 = vrcp.pop %v2086
  %v2095 = vrcp.pop %v2089
  %v2096 = vmul.f32 %v2061, %v2090
  %v2097 = vmul.f32 %v2063, %v2091
  %v2098 = vmul.f32 %v2065, %v2092
  %v2099 = vmul.f32 %v2067, %v2093
  %v2100 = vmul.f32 %v2069, %v2094
  %v2101 = vmul.f32 %v2071, %v2095
  %v2102 = vpack.c.bf16 %v2097, %v2096
  %v2103 = vpack.c.bf16 %v2099, %v2098
  %v2104 = vpack.c.bf16 %v2101, %v2100
  %2108 = vrot.lane.b32.xlu0 %v1826, 112
  %v2109 = vpop.permute.xlu0 %2108
  %2110 = vrot.lane.b32.xlu0 %v1827, 112
  %v2111 = vpop.permute.xlu0 %2110
  %2112 = vrot.lane.b32.xlu0 %v1828, 112
  %v2113 = vpop.permute.xlu0 %2112
  %v2118 = vsel %vm398, %v2102, 0
  %v2121 = vsel %vm398, %v2103, 0
  %v2124 = vsel %vm398, %v2104, 0
  %2126 = vmatpush.bf16.msra.mxu0 0
  %2127 = vmatpush.bf16.msra.mxu0 0
  %2128 = vmatpush.bf16.msra.mxu0 0
  %2129 = vmatpush.bf16.msra.mxu0 0
  %2130 = vmatpush.bf16.msra.mxu0 0
  %2131 = vmatpush.bf16.msra.mxu0 %v2113
  %2132 = vmatpush.bf16.msra.mxu0 %v2111
  %2133 = vmatpush.bf16.msra.mxu0 %v2109
  %2134 = vmatmul.bf16.gmra.mxu0 %v2118
  %v2135 = vpop.f32.mrf.mxu0
  %v2136 = vadd.f32 0.0, %v2135
  %v2137 = vpop.f32.mrf.mxu0
  %v2138 = vadd.f32 0.0, %v2137
  %2139 = vmatmul.bf16.gmra.mxu0 %v2121
  %v2140 = vpop.f32.mrf.mxu0
  %v2141 = vadd.f32 0.0, %v2140
  %v2142 = vpop.f32.mrf.mxu0
  %v2143 = vadd.f32 0.0, %v2142
  %2144 = vmatmul.bf16.gmra.mxu0 %v2124
  %v2145 = vpop.f32.mrf.mxu0
  %v2146 = vadd.f32 0.0, %v2145
  %v2147 = vpop.f32.mrf.mxu0
  %v2148 = vadd.f32 0.0, %v2147
  %2149 = vdwg.mxu0
  %2150 = vrot.lane.b32.xlu0 %v1823, 96
  %v2151 = vpop.permute.xlu0 %2150
  %2152 = vrot.lane.b32.xlu0 %v1824, 96
  %v2153 = vpop.permute.xlu0 %2152
  %2154 = vrot.lane.b32.xlu0 %v1825, 96
  %v2155 = vpop.permute.xlu0 %2154
  %2156 = vrot.lane.b32.xlu0 %v1823, 32
  %v2157 = vpop.permute.xlu0 %2156
  %2158 = vrot.lane.b32.xlu0 %v1824, 32
  %v2159 = vpop.permute.xlu0 %2158
  %2160 = vrot.lane.b32.xlu0 %v1825, 32
  %v2161 = vpop.permute.xlu0 %2160
  %v2163 = vsel %vm355, %v2151, 0
  %v2166 = vsel %vm355, %v2153, 0
  %v2169 = vsel %vm355, %v2155, 0
  %v2172 = vsel %vm355, %v2157, 0
  %v2175 = vsel %vm355, %v2159, 0
  %v2178 = vsel %vm355, %v2161, 0
  %2180 = vmatpush.bf16.xpose.msra.mxu0 0
  %2181 = vmatpush.bf16.xpose.msra.mxu0 0
  %2182 = vmatpush.bf16.xpose.msra.mxu0 0
  %2183 = vmatpush.bf16.xpose.msra.mxu0 0
  %2184 = vmatpush.bf16.xpose.msra.mxu0 0
  %2185 = vmatpush.bf16.xpose.msra.mxu0 %v2178
  %2186 = vmatpush.bf16.xpose.msra.mxu0 %v2175
  %2187 = vmatpush.bf16.xpose.msra.mxu0 %v2172
  %2188 = vmatmul.bf16.gmra.mxu0 %v2163
  %v2189 = vpop.f32.mrf.mxu0
  %v2190 = vadd.f32 %v60, %v2189
  %v2191 = vpop.f32.mrf.mxu0
  %v2192 = vadd.f32 %v61, %v2191
  %2193 = vmatmul.bf16.gmra.mxu0 %v2166
  %v2194 = vpop.f32.mrf.mxu0
  %v2195 = vadd.f32 %v62, %v2194
  %v2196 = vpop.f32.mrf.mxu0
  %v2197 = vadd.f32 %v63, %v2196
  %2198 = vmatmul.bf16.gmra.mxu0 %v2169
  %v2199 = vpop.f32.mrf.mxu0
  %v2200 = vadd.f32 %v64, %v2199
  %v2201 = vpop.f32.mrf.mxu0
  %v2202 = vadd.f32 %v65, %v2201
  %2203 = vdwg.mxu0
  %v2204 = vsel %vm398, %v2190, -inf
  %2205 = vmax.xlane.f32.xlu0 %v2204
  %v2206 = vpop.xlane.xlu0 %2205
  %v2207 = vsel %vm398, %v2192, -inf
  %2208 = vmax.xlane.f32.xlu0 %v2207
  %v2209 = vpop.xlane.xlu0 %2208
  %v2210 = vsel %vm398, %v2195, -inf
  %2211 = vmax.xlane.f32.xlu0 %v2210
  %v2212 = vpop.xlane.xlu0 %2211
  %v2213 = vsel %vm398, %v2197, -inf
  %2214 = vmax.xlane.f32.xlu0 %v2213
  %v2215 = vpop.xlane.xlu0 %2214
  %v2216 = vsel %vm398, %v2200, -inf
  %2217 = vmax.xlane.f32.xlu0 %v2216
  %v2218 = vpop.xlane.xlu0 %2217
  %v2219 = vsel %vm398, %v2202, -inf
  %2220 = vmax.xlane.f32.xlu0 %v2219
  %v2221 = vpop.xlane.xlu0 %2220
  %v2222 = vsub.f32 %v2190, %v2206
  %v2223 = vsub.f32 %v2192, %v2209
  %v2224 = vsub.f32 %v2195, %v2212
  %v2225 = vsub.f32 %v2197, %v2215
  %v2226 = vsub.f32 %v2200, %v2218
  %v2227 = vsub.f32 %v2202, %v2221
  %v2228 = vmul.f32 %v2222, 1.442695
  %v2229 = vpow.pop %v2228
  %v2230 = vmul.f32 %v2223, 1.442695
  %v2231 = vpow.pop %v2230
  %v2232 = vmul.f32 %v2224, 1.442695
  %v2233 = vpow.pop %v2232
  %v2234 = vmul.f32 %v2225, 1.442695
  %v2235 = vpow.pop %v2234
  %v2236 = vmul.f32 %v2226, 1.442695
  %v2237 = vpow.pop %v2236
  %v2238 = vmul.f32 %v2227, 1.442695
  %v2239 = vpow.pop %v2238
  %v2240 = vsel %vm398, %v2229, 0.0
  %2241 = vadd.xlane.f32.xlu0 %v2240
  %v2242 = vpop.xlane.xlu0 %2241
  %v2243 = vsel %vm398, %v2231, 0.0
  %2244 = vadd.xlane.f32.xlu0 %v2243
  %v2245 = vpop.xlane.xlu0 %2244
  %v2246 = vsel %vm398, %v2233, 0.0
  %2247 = vadd.xlane.f32.xlu0 %v2246
  %v2248 = vpop.xlane.xlu0 %2247
  %v2249 = vsel %vm398, %v2235, 0.0
  %2250 = vadd.xlane.f32.xlu0 %v2249
  %v2251 = vpop.xlane.xlu0 %2250
  %v2252 = vsel %vm398, %v2237, 0.0
  %2253 = vadd.xlane.f32.xlu0 %v2252
  %v2254 = vpop.xlane.xlu0 %2253
  %v2255 = vsel %vm398, %v2239, 0.0
  %2256 = vadd.xlane.f32.xlu0 %v2255
  %v2257 = vpop.xlane.xlu0 %2256
  %v2258 = vrcp.pop %v2242
  %v2259 = vrcp.pop %v2245
  %v2260 = vrcp.pop %v2248
  %v2261 = vrcp.pop %v2251
  %v2262 = vrcp.pop %v2254
  %v2263 = vrcp.pop %v2257
  %v2264 = vmul.f32 %v2229, %v2258
  %v2265 = vmul.f32 %v2231, %v2259
  %v2266 = vmul.f32 %v2233, %v2260
  %v2267 = vmul.f32 %v2235, %v2261
  %v2268 = vmul.f32 %v2237, %v2262
  %v2269 = vmul.f32 %v2239, %v2263
  %v2270 = vpack.c.bf16 %v2265, %v2264
  %v2271 = vpack.c.bf16 %v2267, %v2266
  %v2272 = vpack.c.bf16 %v2269, %v2268
  %2273 = vrot.lane.b32.xlu0 %v1826, 96
  %v2274 = vpop.permute.xlu0 %2273
  %2275 = vrot.lane.b32.xlu0 %v1827, 96
  %v2276 = vpop.permute.xlu0 %2275
  %2277 = vrot.lane.b32.xlu0 %v1828, 96
  %v2278 = vpop.permute.xlu0 %2277
  %v2283 = vsel %vm398, %v2270, 0
  %v2286 = vsel %vm398, %v2271, 0
  %v2289 = vsel %vm398, %v2272, 0
  %2291 = vmatpush.bf16.msra.mxu0 0
  %2292 = vmatpush.bf16.msra.mxu0 0
  %2293 = vmatpush.bf16.msra.mxu0 0
  %2294 = vmatpush.bf16.msra.mxu0 0
  %2295 = vmatpush.bf16.msra.mxu0 0
  %2296 = vmatpush.bf16.msra.mxu0 %v2278
  %2297 = vmatpush.bf16.msra.mxu0 %v2276
  %2298 = vmatpush.bf16.msra.mxu0 %v2274
  %2299 = vmatmul.bf16.gmra.mxu0 %v2283
  %v2300 = vpop.f32.mrf.mxu0
  %v2301 = vadd.f32 0.0, %v2300
  %v2302 = vpop.f32.mrf.mxu0
  %v2303 = vadd.f32 0.0, %v2302
  %2304 = vmatmul.bf16.gmra.mxu0 %v2286
  %v2305 = vpop.f32.mrf.mxu0
  %v2306 = vadd.f32 0.0, %v2305
  %v2307 = vpop.f32.mrf.mxu0
  %v2308 = vadd.f32 0.0, %v2307
  %2309 = vmatmul.bf16.gmra.mxu0 %v2289
  %v2310 = vpop.f32.mrf.mxu0
  %v2311 = vadd.f32 0.0, %v2310
  %v2312 = vpop.f32.mrf.mxu0
  %v2313 = vadd.f32 0.0, %v2312
  %2314 = vdwg.mxu0
  %2315 = vrot.lane.b32.xlu0 %v1823, 80
  %v2316 = vpop.permute.xlu0 %2315
  %2317 = vrot.lane.b32.xlu0 %v1824, 80
  %v2318 = vpop.permute.xlu0 %2317
  %2319 = vrot.lane.b32.xlu0 %v1825, 80
  %v2320 = vpop.permute.xlu0 %2319
  %2321 = vrot.lane.b32.xlu0 %v1823, 16
  %v2322 = vpop.permute.xlu0 %2321
  %2323 = vrot.lane.b32.xlu0 %v1824, 16
  %v2324 = vpop.permute.xlu0 %2323
  %2325 = vrot.lane.b32.xlu0 %v1825, 16
  %v2326 = vpop.permute.xlu0 %2325
  %v2328 = vsel %vm355, %v2316, 0
  %v2331 = vsel %vm355, %v2318, 0
  %v2334 = vsel %vm355, %v2320, 0
  %v2337 = vsel %vm355, %v2322, 0
  %v2340 = vsel %vm355, %v2324, 0
  %v2343 = vsel %vm355, %v2326, 0
  %2345 = vmatpush.bf16.xpose.msra.mxu0 0
  %2346 = vmatpush.bf16.xpose.msra.mxu0 0
  %2347 = vmatpush.bf16.xpose.msra.mxu0 0
  %2348 = vmatpush.bf16.xpose.msra.mxu0 0
  %2349 = vmatpush.bf16.xpose.msra.mxu0 0
  %2350 = vmatpush.bf16.xpose.msra.mxu0 %v2343
  %2351 = vmatpush.bf16.xpose.msra.mxu0 %v2340
  %2352 = vmatpush.bf16.xpose.msra.mxu0 %v2337
  %2353 = vmatmul.bf16.gmra.mxu0 %v2328
  %v2354 = vpop.f32.mrf.mxu0
  %v2355 = vadd.f32 %v60, %v2354
  %v2356 = vpop.f32.mrf.mxu0
  %v2357 = vadd.f32 %v61, %v2356
  %2358 = vmatmul.bf16.gmra.mxu0 %v2331
  %v2359 = vpop.f32.mrf.mxu0
  %v2360 = vadd.f32 %v62, %v2359
  %v2361 = vpop.f32.mrf.mxu0
  %v2362 = vadd.f32 %v63, %v2361
  %2363 = vmatmul.bf16.gmra.mxu0 %v2334
  %v2364 = vpop.f32.mrf.mxu0
  %v2365 = vadd.f32 %v64, %v2364
  %v2366 = vpop.f32.mrf.mxu0
  %v2367 = vadd.f32 %v65, %v2366
  %2368 = vdwg.mxu0
  %v2369 = vsel %vm398, %v2355, -inf
  %2370 = vmax.xlane.f32.xlu0 %v2369
  %v2371 = vpop.xlane.xlu0 %2370
  %v2372 = vsel %vm398, %v2357, -inf
  %2373 = vmax.xlane.f32.xlu0 %v2372
  %v2374 = vpop.xlane.xlu0 %2373
  %v2375 = vsel %vm398, %v2360, -inf
  %2376 = vmax.xlane.f32.xlu0 %v2375
  %v2377 = vpop.xlane.xlu0 %2376
  %v2378 = vsel %vm398, %v2362, -inf
  %2379 = vmax.xlane.f32.xlu0 %v2378
  %v2380 = vpop.xlane.xlu0 %2379
  %v2381 = vsel %vm398, %v2365, -inf
  %2382 = vmax.xlane.f32.xlu0 %v2381
  %v2383 = vpop.xlane.xlu0 %2382
  %v2384 = vsel %vm398, %v2367, -inf
  %2385 = vmax.xlane.f32.xlu0 %v2384
  %v2386 = vpop.xlane.xlu0 %2385
  %v2387 = vsub.f32 %v2355, %v2371
  %v2388 = vsub.f32 %v2357, %v2374
  %v2389 = vsub.f32 %v2360, %v2377
  %v2390 = vsub.f32 %v2362, %v2380
  %v2391 = vsub.f32 %v2365, %v2383
  %v2392 = vsub.f32 %v2367, %v2386
  %v2393 = vmul.f32 %v2387, 1.442695
  %v2394 = vpow.pop %v2393
  %v2395 = vmul.f32 %v2388, 1.442695
  %v2396 = vpow.pop %v2395
  %v2397 = vmul.f32 %v2389, 1.442695
  %v2398 = vpow.pop %v2397
  %v2399 = vmul.f32 %v2390, 1.442695
  %v2400 = vpow.pop %v2399
  %v2401 = vmul.f32 %v2391, 1.442695
  %v2402 = vpow.pop %v2401
  %v2403 = vmul.f32 %v2392, 1.442695
  %v2404 = vpow.pop %v2403
  %v2405 = vsel %vm398, %v2394, 0.0
  %2406 = vadd.xlane.f32.xlu0 %v2405
  %v2407 = vpop.xlane.xlu0 %2406
  %v2408 = vsel %vm398, %v2396, 0.0
  %2409 = vadd.xlane.f32.xlu0 %v2408
  %v2410 = vpop.xlane.xlu0 %2409
  %v2411 = vsel %vm398, %v2398, 0.0
  %2412 = vadd.xlane.f32.xlu0 %v2411
  %v2413 = vpop.xlane.xlu0 %2412
  %v2414 = vsel %vm398, %v2400, 0.0
  %2415 = vadd.xlane.f32.xlu0 %v2414
  %v2416 = vpop.xlane.xlu0 %2415
  %v2417 = vsel %vm398, %v2402, 0.0
  %2418 = vadd.xlane.f32.xlu0 %v2417
  %v2419 = vpop.xlane.xlu0 %2418
  %v2420 = vsel %vm398, %v2404, 0.0
  %2421 = vadd.xlane.f32.xlu0 %v2420
  %v2422 = vpop.xlane.xlu0 %2421
  %v2423 = vrcp.pop %v2407
  %v2424 = vrcp.pop %v2410
  %v2425 = vrcp.pop %v2413
  %v2426 = vrcp.pop %v2416
  %v2427 = vrcp.pop %v2419
  %v2428 = vrcp.pop %v2422
  %v2429 = vmul.f32 %v2394, %v2423
  %v2430 = vmul.f32 %v2396, %v2424
  %v2431 = vmul.f32 %v2398, %v2425
  %v2432 = vmul.f32 %v2400, %v2426
  %v2433 = vmul.f32 %v2402, %v2427
  %v2434 = vmul.f32 %v2404, %v2428
  %v2435 = vpack.c.bf16 %v2430, %v2429
  %v2436 = vpack.c.bf16 %v2432, %v2431
  %v2437 = vpack.c.bf16 %v2434, %v2433
  %2438 = vrot.lane.b32.xlu0 %v1826, 80
  %v2439 = vpop.permute.xlu0 %2438
  %2440 = vrot.lane.b32.xlu0 %v1827, 80
  %v2441 = vpop.permute.xlu0 %2440
  %2442 = vrot.lane.b32.xlu0 %v1828, 80
  %v2443 = vpop.permute.xlu0 %2442
  %v2448 = vsel %vm398, %v2435, 0
  %v2451 = vsel %vm398, %v2436, 0
  %v2454 = vsel %vm398, %v2437, 0
  %2456 = vmatpush.bf16.msra.mxu0 0
  %2457 = vmatpush.bf16.msra.mxu0 0
  %2458 = vmatpush.bf16.msra.mxu0 0
  %2459 = vmatpush.bf16.msra.mxu0 0
  %2460 = vmatpush.bf16.msra.mxu0 0
  %2461 = vmatpush.bf16.msra.mxu0 %v2443
  %2462 = vmatpush.bf16.msra.mxu0 %v2441
  %2463 = vmatpush.bf16.msra.mxu0 %v2439
  %2464 = vmatmul.bf16.gmra.mxu0 %v2448
  %v2465 = vpop.f32.mrf.mxu0
  %v2466 = vadd.f32 0.0, %v2465
  %v2467 = vpop.f32.mrf.mxu0
  %v2468 = vadd.f32 0.0, %v2467
  %2469 = vmatmul.bf16.gmra.mxu0 %v2451
  %v2470 = vpop.f32.mrf.mxu0
  %v2471 = vadd.f32 0.0, %v2470
  %v2472 = vpop.f32.mrf.mxu0
  %v2473 = vadd.f32 0.0, %v2472
  %2474 = vmatmul.bf16.gmra.mxu0 %v2454
  %v2475 = vpop.f32.mrf.mxu0
  %v2476 = vadd.f32 0.0, %v2475
  %v2477 = vpop.f32.mrf.mxu0
  %v2478 = vadd.f32 0.0, %v2477
  %2479 = vdwg.mxu0
  %2486 = vrot.lane.b32.xlu0 %v2136, 16
  %v2487 = vpop.permute.xlu0 %2486
  %2488 = vrot.lane.b32.xlu0 %v2138, 16
  %v2489 = vpop.permute.xlu0 %2488
  %2490 = vrot.lane.b32.xlu0 %v2141, 16
  %v2491 = vpop.permute.xlu0 %2490
  %2492 = vrot.lane.b32.xlu0 %v2143, 16
  %v2493 = vpop.permute.xlu0 %2492
  %2494 = vrot.lane.b32.xlu0 %v2146, 16
  %v2495 = vpop.permute.xlu0 %2494
  %2496 = vrot.lane.b32.xlu0 %v2148, 16
  %v2497 = vpop.permute.xlu0 %2496
  %2510 = vrot.lane.b32.xlu0 %v2301, 32
  %v2511 = vpop.permute.xlu0 %2510
  %2512 = vrot.lane.b32.xlu0 %v2303, 32
  %v2513 = vpop.permute.xlu0 %2512
  %2514 = vrot.lane.b32.xlu0 %v2306, 32
  %v2515 = vpop.permute.xlu0 %2514
  %2516 = vrot.lane.b32.xlu0 %v2308, 32
  %v2517 = vpop.permute.xlu0 %2516
  %2518 = vrot.lane.b32.xlu0 %v2311, 32
  %v2519 = vpop.permute.xlu0 %2518
  %2520 = vrot.lane.b32.xlu0 %v2313, 32
  %v2521 = vpop.permute.xlu0 %2520
  %2534 = vrot.lane.b32.xlu0 %v2466, 48
  %v2535 = vpop.permute.xlu0 %2534
  %2536 = vrot.lane.b32.xlu0 %v2468, 48
  %v2537 = vpop.permute.xlu0 %2536
  %2538 = vrot.lane.b32.xlu0 %v2471, 48
  %v2539 = vpop.permute.xlu0 %2538
  %2540 = vrot.lane.b32.xlu0 %v2473, 48
  %v2541 = vpop.permute.xlu0 %2540
  %2542 = vrot.lane.b32.xlu0 %v2476, 48
  %v2543 = vpop.permute.xlu0 %2542
  %2544 = vrot.lane.b32.xlu0 %v2478, 48
  %v2545 = vpop.permute.xlu0 %2544
  %v2552 = vsel %vm355, %v1968, %v2487
  %v2553 = vsel %vm355, %v1970, %v2489
  %v2554 = vsel %vm355, %v1973, %v2491
  %v2555 = vsel %vm355, %v1975, %v2493
  %v2556 = vsel %vm355, %v1978, %v2495
  %v2557 = vsel %vm355, %v1980, %v2497
  %v2558 = vsel %vm1077, %v2552, %v2511
  %v2559 = vsel %vm1077, %v2553, %v2513
  %v2560 = vsel %vm1077, %v2554, %v2515
  %v2561 = vsel %vm1077, %v2555, %v2517
  %v2562 = vsel %vm1077, %v2556, %v2519
  %v2563 = vsel %vm1077, %v2557, %v2521
  %v2564 = vsel %vm398, %v2558, %v2535
  %v2565 = vsel %vm398, %v2559, %v2537
  %v2566 = vsel %vm398, %v2560, %v2539
  %v2567 = vsel %vm398, %v2561, %v2541
  %v2568 = vsel %vm398, %v2562, %v2543
  %v2569 = vsel %vm398, %v2563, %v2545
  %s2570 = scalar_lea.vmem %s8, 32
  %v2571 = vld [vmem:[%s2570] sm:$0xf]
  %v2572 = vld [vmem:[%s2570 + $0x4] sm:$0xf]
  %v2573 = vld [vmem:[%s2570 + $0x8] sm:$0xf]
  %v2574 = vld [vmem:[%s2570 + $0xc] sm:$0xf]
  %v2575 = vld [vmem:[%s2570 + $0x10] sm:$0xf]
  %v2576 = vld [vmem:[%s2570 + $0x14] sm:$0xf]
  %v2577 = vld [vmem:[%s2570 + $0x18] sm:$0xf]
  %v2578 = vld [vmem:[%s2570 + $0x1c] sm:$0xf]
  %v2579 = vpack.c.bf16 %v2565, %v2564
  %v2580 = vpack.c.bf16 %v2567, %v2566
  %v2581 = vpack.c.bf16 %v2569, %v2568
  %v2590 = vunpack.c.l.b16 %v2571
  %v2591 = vunpack.c.l.b16 %v2572
  %v2592 = vunpack.c.l.b16 %v2573
  %v2593 = vunpack.c.l.b16 %v2574
  %v2594 = vunpack.c.l.b16 %v2575
  %v2595 = vunpack.c.l.b16 %v2576
  %v2596 = vunpack.c.l.b16 %v2577
  %v2597 = vunpack.c.l.b16 %v2578
  %v2598 = vpack.c.b16 %v2591, %v2590
  %v2599 = vpack.c.b16 %v2593, %v2592
  %v2600 = vpack.c.b16 %v2595, %v2594
  %v2601 = vpack.c.b16 %v2597, %v2596
  %v2607 = vsel %vm68, %v2579, 0
  %v2610 = vsel %vm68, %v2580, 0
  %v2613 = vsel %vm68, %v2581, 0
  %2615 = vmatpush.bf16.msra.mxu0 0
  %2616 = vmatpush.bf16.msra.mxu0 0
  %2617 = vmatpush.bf16.msra.mxu0 0
  %2618 = vmatpush.bf16.msra.mxu0 0
  %2619 = vmatpush.bf16.msra.mxu0 %v2601
  %2620 = vmatpush.bf16.msra.mxu0 %v2600
  %2621 = vmatpush.bf16.msra.mxu0 %v2599
  %2622 = vmatpush.bf16.msra.mxu0 %v2598
  %2623 = vmatmul.bf16.gmra.mxu0 %v2607
  %v2624 = vpop.f32.mrf.mxu0
  %v2625 = vadd.f32 0.0, %v2624
  %v2626 = vpop.f32.mrf.mxu0
  %v2627 = vadd.f32 0.0, %v2626
  %2628 = vmatmul.bf16.gmra.mxu0 %v2610
  %v2629 = vpop.f32.mrf.mxu0
  %v2630 = vadd.f32 0.0, %v2629
  %v2631 = vpop.f32.mrf.mxu0
  %v2632 = vadd.f32 0.0, %v2631
  %2633 = vmatmul.bf16.gmra.mxu0 %v2613
  %v2634 = vpop.f32.mrf.mxu0
  %v2635 = vadd.f32 0.0, %v2634
  %v2636 = vpop.f32.mrf.mxu0
  %v2637 = vadd.f32 0.0, %v2636
  %2638 = vdwg.mxu0
  %v2639 = vadd.f32 %v1547, %v2625
  %v2640 = vadd.f32 %v1548, %v2627
  %v2641 = vadd.f32 %v1549, %v2630
  %v2642 = vadd.f32 %v1550, %v2632
  %v2643 = vadd.f32 %v1551, %v2635
  %v2644 = vadd.f32 %v1552, %v2637
  %s2645 = scalar_lea.vmem %s9, 1
  %v2646 = vld [vmem:[%s2645] sm:$0x1]
  %v2648 = vperm.slane %v2646, 0
  %v2650 = vadd.f32 %v2639, %v2648
  %v2651 = vadd.f32 %v2640, %v2648
  %v2652 = vadd.f32 %v2641, %v2648
  %v2653 = vadd.f32 %v2642, %v2648
  %v2654 = vadd.f32 %v2643, %v2648
  %v2655 = vadd.f32 %v2644, %v2648
  %s2656 = scalar_lea.vmem %s10, 1
  %v2657 = vld [vmem:[%s2656] sm:$0x1]
  %s2658 = scalar_lea.vmem %s11, 1
  %v2659 = vld [vmem:[%s2658] sm:$0x1]
  %v2660 = vsel %vm68, %v2650, 0.0
  %2661 = vadd.xlane.f32.xlu0 %v2660
  %v2662 = vpop.xlane.xlu0 %2661
  %v2663 = vsel %vm68, %v2651, 0.0
  %2664 = vadd.xlane.f32.xlu0 %v2663
  %v2665 = vpop.xlane.xlu0 %2664
  %v2666 = vsel %vm68, %v2652, 0.0
  %2667 = vadd.xlane.f32.xlu0 %v2666
  %v2668 = vpop.xlane.xlu0 %2667
  %v2669 = vsel %vm68, %v2653, 0.0
  %2670 = vadd.xlane.f32.xlu0 %v2669
  %v2671 = vpop.xlane.xlu0 %2670
  %v2672 = vsel %vm68, %v2654, 0.0
  %2673 = vadd.xlane.f32.xlu0 %v2672
  %v2674 = vpop.xlane.xlu0 %2673
  %v2675 = vsel %vm68, %v2655, 0.0
  %2676 = vadd.xlane.f32.xlu0 %v2675
  %v2677 = vpop.xlane.xlu0 %2676
  %v2678 = vmul.f32 %v2662, %v93
  %v2679 = vmul.f32 %v2665, %v93
  %v2680 = vmul.f32 %v2668, %v93
  %v2681 = vmul.f32 %v2671, %v93
  %v2682 = vmul.f32 %v2674, %v93
  %v2683 = vmul.f32 %v2677, %v93
  %v2684 = vsub.f32 %v2650, %v2678
  %v2685 = vsub.f32 %v2651, %v2679
  %v2686 = vsub.f32 %v2652, %v2680
  %v2687 = vsub.f32 %v2653, %v2681
  %v2688 = vsub.f32 %v2654, %v2682
  %v2689 = vsub.f32 %v2655, %v2683
  %v2690 = vmul.f32 %v2684, %v2684
  %v2691 = vmul.f32 %v2685, %v2685
  %v2692 = vmul.f32 %v2686, %v2686
  %v2693 = vmul.f32 %v2687, %v2687
  %v2694 = vmul.f32 %v2688, %v2688
  %v2695 = vmul.f32 %v2689, %v2689
  %v2696 = vsel %vm68, %v2690, 0.0
  %2697 = vadd.xlane.f32.xlu0 %v2696
  %v2698 = vpop.xlane.xlu0 %2697
  %v2699 = vsel %vm68, %v2691, 0.0
  %2700 = vadd.xlane.f32.xlu0 %v2699
  %v2701 = vpop.xlane.xlu0 %2700
  %v2702 = vsel %vm68, %v2692, 0.0
  %2703 = vadd.xlane.f32.xlu0 %v2702
  %v2704 = vpop.xlane.xlu0 %2703
  %v2705 = vsel %vm68, %v2693, 0.0
  %2706 = vadd.xlane.f32.xlu0 %v2705
  %v2707 = vpop.xlane.xlu0 %2706
  %v2708 = vsel %vm68, %v2694, 0.0
  %2709 = vadd.xlane.f32.xlu0 %v2708
  %v2710 = vpop.xlane.xlu0 %2709
  %v2711 = vsel %vm68, %v2695, 0.0
  %2712 = vadd.xlane.f32.xlu0 %v2711
  %v2713 = vpop.xlane.xlu0 %2712
  %v2714 = vmul.f32 %v2698, %v93
  %v2715 = vmul.f32 %v2701, %v93
  %v2716 = vmul.f32 %v2704, %v93
  %v2717 = vmul.f32 %v2707, %v93
  %v2718 = vmul.f32 %v2710, %v93
  %v2719 = vmul.f32 %v2713, %v93
  %v2720 = vadd.f32 %v2714, 1e-05
  %v2721 = vadd.f32 %v2715, 1e-05
  %v2722 = vadd.f32 %v2716, 1e-05
  %v2723 = vadd.f32 %v2717, 1e-05
  %v2724 = vadd.f32 %v2718, 1e-05
  %v2725 = vadd.f32 %v2719, 1e-05
  %v2726 = vrsqrt.pop %v2720
  %v2727 = vmul.f32 %v2726, %v2720
  %v2728 = vmul.f32 %v2727, %v2726
  %v2729 = vmul.f32 0.5, %v2728
  %v2730 = vsub.f32 1.5, %v2729
  %v2731 = vmul.f32 %v2726, %v2730
  %vm2732 = vweird.f32 %v2720
  %vm2733 = vweird.f32 %v2726
  %vm2734 = vmor %vm2732, %vm2733
  %v2735 = vsel %vm2734, %v2726, %v2731
  %v2736 = vrsqrt.pop %v2721
  %v2737 = vmul.f32 %v2736, %v2721
  %v2738 = vmul.f32 %v2737, %v2736
  %v2739 = vmul.f32 0.5, %v2738
  %v2740 = vsub.f32 1.5, %v2739
  %v2741 = vmul.f32 %v2736, %v2740
  %vm2742 = vweird.f32 %v2721
  %vm2743 = vweird.f32 %v2736
  %vm2744 = vmor %vm2742, %vm2743
  %v2745 = vsel %vm2744, %v2736, %v2741
  %v2746 = vrsqrt.pop %v2722
  %v2747 = vmul.f32 %v2746, %v2722
  %v2748 = vmul.f32 %v2747, %v2746
  %v2749 = vmul.f32 0.5, %v2748
  %v2750 = vsub.f32 1.5, %v2749
  %v2751 = vmul.f32 %v2746, %v2750
  %vm2752 = vweird.f32 %v2722
  %vm2753 = vweird.f32 %v2746
  %vm2754 = vmor %vm2752, %vm2753
  %v2755 = vsel %vm2754, %v2746, %v2751
  %v2756 = vrsqrt.pop %v2723
  %v2757 = vmul.f32 %v2756, %v2723
  %v2758 = vmul.f32 %v2757, %v2756
  %v2759 = vmul.f32 0.5, %v2758
  %v2760 = vsub.f32 1.5, %v2759
  %v2761 = vmul.f32 %v2756, %v2760
  %vm2762 = vweird.f32 %v2723
  %vm2763 = vweird.f32 %v2756
  %vm2764 = vmor %vm2762, %vm2763
  %v2765 = vsel %vm2764, %v2756, %v2761
  %v2766 = vrsqrt.pop %v2724
  %v2767 = vmul.f32 %v2766, %v2724
  %v2768 = vmul.f32 %v2767, %v2766
  %v2769 = vmul.f32 0.5, %v2768
  %v2770 = vsub.f32 1.5, %v2769
  %v2771 = vmul.f32 %v2766, %v2770
  %vm2772 = vweird.f32 %v2724
  %vm2773 = vweird.f32 %v2766
  %vm2774 = vmor %vm2772, %vm2773
  %v2775 = vsel %vm2774, %v2766, %v2771
  %v2776 = vrsqrt.pop %v2725
  %v2777 = vmul.f32 %v2776, %v2725
  %v2778 = vmul.f32 %v2777, %v2776
  %v2779 = vmul.f32 0.5, %v2778
  %v2780 = vsub.f32 1.5, %v2779
  %v2781 = vmul.f32 %v2776, %v2780
  %vm2782 = vweird.f32 %v2725
  %vm2783 = vweird.f32 %v2776
  %vm2784 = vmor %vm2782, %vm2783
  %v2785 = vsel %vm2784, %v2776, %v2781
  %v2786 = vmul.f32 %v2684, %v2735
  %v2787 = vmul.f32 %v2685, %v2745
  %v2788 = vmul.f32 %v2686, %v2755
  %v2789 = vmul.f32 %v2687, %v2765
  %v2790 = vmul.f32 %v2688, %v2775
  %v2791 = vmul.f32 %v2689, %v2785
  %v2793 = vperm.slane %v2657, 0
  %v2795 = vmul.f32 %v2786, %v2793
  %v2796 = vmul.f32 %v2787, %v2793
  %v2797 = vmul.f32 %v2788, %v2793
  %v2798 = vmul.f32 %v2789, %v2793
  %v2799 = vmul.f32 %v2790, %v2793
  %v2800 = vmul.f32 %v2791, %v2793
  %v2802 = vperm.slane %v2659, 0
  %v2804 = vadd.f32 %v2795, %v2802
  %v2805 = vadd.f32 %v2796, %v2802
  %v2806 = vadd.f32 %v2797, %v2802
  %v2807 = vadd.f32 %v2798, %v2802
  %v2808 = vadd.f32 %v2799, %v2802
  %v2809 = vadd.f32 %v2800, %v2802
  %s2810 = scalar_lea.vmem %s12, 32
  %v2811 = vld [vmem:[%s2810] sm:$0xf]
  %v2812 = vld [vmem:[%s2810 + $0x4] sm:$0xf]
  %v2813 = vld [vmem:[%s2810 + $0x8] sm:$0xf]
  %v2814 = vld [vmem:[%s2810 + $0xc] sm:$0xf]
  %v2815 = vld [vmem:[%s2810 + $0x10] sm:$0xf]
  %v2816 = vld [vmem:[%s2810 + $0x14] sm:$0xf]
  %v2817 = vld [vmem:[%s2810 + $0x18] sm:$0xf]
  %v2818 = vld [vmem:[%s2810 + $0x1c] sm:$0xf]
  %v2819 = vpack.c.bf16 %v2805, %v2804
  %v2820 = vpack.c.bf16 %v2807, %v2806
  %v2821 = vpack.c.bf16 %v2809, %v2808
  %s2822 = scalar_lea.vmem %s13, 1
  %v2823 = vld [vmem:[%s2822] sm:$0x1]
  %v2825 = vperm.slane %v2823, 0
  %v2835 = vunpack.c.l.b16 %v2811
  %v2836 = vunpack.c.l.b16 %v2812
  %v2837 = vunpack.c.l.b16 %v2813
  %v2838 = vunpack.c.l.b16 %v2814
  %v2839 = vunpack.c.l.b16 %v2815
  %v2840 = vunpack.c.l.b16 %v2816
  %v2841 = vunpack.c.l.b16 %v2817
  %v2842 = vunpack.c.l.b16 %v2818
  %v2843 = vpack.c.b16 %v2836, %v2835
  %v2844 = vpack.c.b16 %v2838, %v2837
  %v2845 = vpack.c.b16 %v2840, %v2839
  %v2846 = vpack.c.b16 %v2842, %v2841
  %v2852 = vsel %vm68, %v2819, 0
  %v2855 = vsel %vm68, %v2820, 0
  %v2858 = vsel %vm68, %v2821, 0
  %2860 = vmatpush.bf16.msra.mxu0 0
  %2861 = vmatpush.bf16.msra.mxu0 0
  %2862 = vmatpush.bf16.msra.mxu0 0
  %2863 = vmatpush.bf16.msra.mxu0 0
  %2864 = vmatpush.bf16.msra.mxu0 %v2846
  %2865 = vmatpush.bf16.msra.mxu0 %v2845
  %2866 = vmatpush.bf16.msra.mxu0 %v2844
  %2867 = vmatpush.bf16.msra.mxu0 %v2843
  %2868 = vmatmul.bf16.gmra.mxu0 %v2852
  %v2869 = vpop.f32.mrf.mxu0
  %v2870 = vadd.f32 %v2825, %v2869
  %v2871 = vpop.f32.mrf.mxu0
  %v2872 = vadd.f32 %v2825, %v2871
  %2873 = vmatmul.bf16.gmra.mxu0 %v2855
  %v2874 = vpop.f32.mrf.mxu0
  %v2875 = vadd.f32 %v2825, %v2874
  %v2876 = vpop.f32.mrf.mxu0
  %v2877 = vadd.f32 %v2825, %v2876
  %2878 = vmatmul.bf16.gmra.mxu0 %v2858
  %v2879 = vpop.f32.mrf.mxu0
  %v2880 = vadd.f32 %v2825, %v2879
  %v2881 = vpop.f32.mrf.mxu0
  %v2882 = vadd.f32 %v2825, %v2881
  %2883 = vdwg.mxu0
  %v2884 = vmul.f32 %v2870, 0.5
  %v2885 = vmul.f32 %v2872, 0.5
  %v2886 = vmul.f32 %v2875, 0.5
  %v2887 = vmul.f32 %v2877, 0.5
  %v2888 = vmul.f32 %v2880, 0.5
  %v2889 = vmul.f32 %v2882, 0.5
  %v2890 = vmul.f32 %v2870, 0.044715
  %v2891 = vmul.f32 %v2872, 0.044715
  %v2892 = vmul.f32 %v2875, 0.044715
  %v2893 = vmul.f32 %v2877, 0.044715
  %v2894 = vmul.f32 %v2880, 0.044715
  %v2895 = vmul.f32 %v2882, 0.044715
  %v2896 = vmul.f32 %v2890, %v2870
  %v2897 = vmul.f32 %v2891, %v2872
  %v2898 = vmul.f32 %v2892, %v2875
  %v2899 = vmul.f32 %v2893, %v2877
  %v2900 = vmul.f32 %v2894, %v2880
  %v2901 = vmul.f32 %v2895, %v2882
  %v2902 = vmul.f32 %v2896, %v2870
  %v2903 = vmul.f32 %v2897, %v2872
  %v2904 = vmul.f32 %v2898, %v2875
  %v2905 = vmul.f32 %v2899, %v2877
  %v2906 = vmul.f32 %v2900, %v2880
  %v2907 = vmul.f32 %v2901, %v2882
  %v2908 = vadd.f32 %v2870, %v2902
  %v2909 = vadd.f32 %v2872, %v2903
  %v2910 = vadd.f32 %v2875, %v2904
  %v2911 = vadd.f32 %v2877, %v2905
  %v2912 = vadd.f32 %v2880, %v2906
  %v2913 = vadd.f32 %v2882, %v2907
  %v2914 = vmul.f32 %v2908, 0.7978846
  %v2915 = vmul.f32 %v2909, 0.7978846
  %v2916 = vmul.f32 %v2910, 0.7978846
  %v2917 = vmul.f32 %v2911, 0.7978846
  %v2918 = vmul.f32 %v2912, 0.7978846
  %v2919 = vmul.f32 %v2913, 0.7978846
  %v2920 = vtanh.pop %v2914
  %v2921 = vtanh.pop %v2915
  %v2922 = vtanh.pop %v2916
  %v2923 = vtanh.pop %v2917
  %v2924 = vtanh.pop %v2918
  %v2925 = vtanh.pop %v2919
  %v2926 = vadd.f32 %v2920, 1.0
  %v2927 = vadd.f32 %v2921, 1.0
  %v2928 = vadd.f32 %v2922, 1.0
  %v2929 = vadd.f32 %v2923, 1.0
  %v2930 = vadd.f32 %v2924, 1.0
  %v2931 = vadd.f32 %v2925, 1.0
  %v2932 = vmul.f32 %v2884, %v2926
  %v2933 = vmul.f32 %v2885, %v2927
  %v2934 = vmul.f32 %v2886, %v2928
  %v2935 = vmul.f32 %v2887, %v2929
  %v2936 = vmul.f32 %v2888, %v2930
  %v2937 = vmul.f32 %v2889, %v2931
  %s2938 = scalar_lea.vmem %s14, 64
  %v2939 = vld [vmem:[%s2938] sm:$0xf]
  %v2940 = vld [vmem:[%s2938 + $0x4] sm:$0xf]
  %v2941 = vld [vmem:[%s2938 + $0x8] sm:$0xf]
  %v2942 = vld [vmem:[%s2938 + $0xc] sm:$0xf]
  %v2943 = vld [vmem:[%s2938 + $0x10] sm:$0xf]
  %v2944 = vld [vmem:[%s2938 + $0x14] sm:$0xf]
  %v2945 = vld [vmem:[%s2938 + $0x18] sm:$0xf]
  %v2946 = vld [vmem:[%s2938 + $0x1c] sm:$0xf]
  %v2947 = vld [vmem:[%s2938 + $0x20] sm:$0xf]
  %v2948 = vld [vmem:[%s2938 + $0x24] sm:$0xf]
  %v2949 = vld [vmem:[%s2938 + $0x28] sm:$0xf]
  %v2950 = vld [vmem:[%s2938 + $0x2c] sm:$0xf]
  %v2951 = vld [vmem:[%s2938 + $0x30] sm:$0xf]
  %v2952 = vld [vmem:[%s2938 + $0x34] sm:$0xf]
  %v2953 = vld [vmem:[%s2938 + $0x38] sm:$0xf]
  %v2954 = vld [vmem:[%s2938 + $0x3c] sm:$0xf]
  %v2955 = vpack.c.bf16 %v2933, %v2932
  %v2956 = vpack.c.bf16 %v2935, %v2934
  %v2957 = vpack.c.bf16 %v2937, %v2936
  %s2958 = scalar_lea.vmem %s15, 1
  %v2959 = vld [vmem:[%s2958] sm:$0x1]
  %v2961 = vperm.slane %v2959, 0
  %v2979 = vunpack.c.l.b16 %v2939
  %v2980 = vunpack.c.l.b16 %v2940
  %v2981 = vunpack.c.l.b16 %v2941
  %v2982 = vunpack.c.l.b16 %v2942
  %v2983 = vunpack.c.l.b16 %v2943
  %v2984 = vunpack.c.l.b16 %v2944
  %v2985 = vunpack.c.l.b16 %v2945
  %v2986 = vunpack.c.l.b16 %v2946
  %v2987 = vunpack.c.l.b16 %v2947
  %v2988 = vunpack.c.l.b16 %v2948
  %v2989 = vunpack.c.l.b16 %v2949
  %v2990 = vunpack.c.l.b16 %v2950
  %v2991 = vunpack.c.l.b16 %v2951
  %v2992 = vunpack.c.l.b16 %v2952
  %v2993 = vunpack.c.l.b16 %v2953
  %v2994 = vunpack.c.l.b16 %v2954
  %v2995 = vpack.c.b16 %v2980, %v2979
  %v2996 = vpack.c.b16 %v2982, %v2981
  %v2997 = vpack.c.b16 %v2984, %v2983
  %v2998 = vpack.c.b16 %v2986, %v2985
  %v2999 = vpack.c.b16 %v2988, %v2987
  %v3000 = vpack.c.b16 %v2990, %v2989
  %v3001 = vpack.c.b16 %v2992, %v2991
  %v3002 = vpack.c.b16 %v2994, %v2993
  %3011 = vmatpush.bf16.msra.mxu0 %v3002
  %3012 = vmatpush.bf16.msra.mxu0 %v3001
  %3013 = vmatpush.bf16.msra.mxu0 %v3000
  %3014 = vmatpush.bf16.msra.mxu0 %v2999
  %3015 = vmatpush.bf16.msra.mxu0 %v2998
  %3016 = vmatpush.bf16.msra.mxu0 %v2997
  %3017 = vmatpush.bf16.msra.mxu0 %v2996
  %3018 = vmatpush.bf16.msra.mxu0 %v2995
  %3019 = vmatmul.bf16.gmra.mxu0 %v2955
  %v3020 = vpop.f32.mrf.mxu0
  %v3021 = vadd.f32 %v2961, %v3020
  %v3022 = vpop.f32.mrf.mxu0
  %v3023 = vadd.f32 %v2961, %v3022
  %3024 = vmatmul.bf16.gmra.mxu0 %v2956
  %v3025 = vpop.f32.mrf.mxu0
  %v3026 = vadd.f32 %v2961, %v3025
  %v3027 = vpop.f32.mrf.mxu0
  %v3028 = vadd.f32 %v2961, %v3027
  %3029 = vmatmul.bf16.gmra.mxu0 %v2957
  %v3030 = vpop.f32.mrf.mxu0
  %v3031 = vadd.f32 %v2961, %v3030
  %v3032 = vpop.f32.mrf.mxu0
  %v3033 = vadd.f32 %v2961, %v3032
  %3034 = vdwg.mxu0
  %v3035 = vadd.f32 %v2650, %v3021
  %v3036 = vadd.f32 %v2651, %v3023
  %v3037 = vadd.f32 %v2652, %v3026
  %v3038 = vadd.f32 %v2653, %v3028
  %v3039 = vadd.f32 %v2654, %v3031
  %v3040 = vadd.f32 %v2655, %v3033
  %v3041 = vld [vmem:[%s2] sm:$0xf]
  %v3042 = vld [vmem:[%s2 + $0x4] sm:$0xf]
  %v3043 = vld [vmem:[%s2 + $0x8] sm:$0xf]
  %v3044 = vld [vmem:[%s2 + $0xc] sm:$0xf]
  %v3045 = vld [vmem:[%s2 + $0x10] sm:$0xf]
  %v3046 = vld [vmem:[%s2 + $0x14] sm:$0xf]
  %v3047 = vld [vmem:[%s2 + $0x18] sm:$0xf]
  %v3048 = vld [vmem:[%s2 + $0x1c] sm:$0xf]
  %v3049 = vpack.c.bf16 %v3036, %v3035
  %v3050 = vpack.c.bf16 %v3038, %v3037
  %v3051 = vpack.c.bf16 %v3040, %v3039
  %v3052 = vld [vmem:[%s3] sm:$0x1]
  %v3054 = vperm.slane %v3052, 0
  %v3064 = vunpack.c.l.b16 %v3041
  %v3065 = vunpack.c.l.b16 %v3042
  %v3066 = vunpack.c.l.b16 %v3043
  %v3067 = vunpack.c.l.b16 %v3044
  %v3068 = vunpack.c.l.b16 %v3045
  %v3069 = vunpack.c.l.b16 %v3046
  %v3070 = vunpack.c.l.b16 %v3047
  %v3071 = vunpack.c.l.b16 %v3048
  %v3072 = vpack.c.b16 %v3065, %v3064
  %v3073 = vpack.c.b16 %v3067, %v3066
  %v3074 = vpack.c.b16 %v3069, %v3068
  %v3075 = vpack.c.b16 %v3071, %v3070
  %v3081 = vsel %vm68, %v3049, 0
  %v3084 = vsel %vm68, %v3050, 0
  %v3087 = vsel %vm68, %v3051, 0
  %3089 = vmatpush.bf16.msra.mxu0 0
  %3090 = vmatpush.bf16.msra.mxu0 0
  %3091 = vmatpush.bf16.msra.mxu0 0
  %3092 = vmatpush.bf16.msra.mxu0 0
  %3093 = vmatpush.bf16.msra.mxu0 %v3075
  %3094 = vmatpush.bf16.msra.mxu0 %v3074
  %3095 = vmatpush.bf16.msra.mxu0 %v3073
  %3096 = vmatpush.bf16.msra.mxu0 %v3072
  %3097 = vmatmul.bf16.gmra.mxu0 %v3081
  %v3098 = vpop.f32.mrf.mxu0
  %v3099 = vadd.f32 %v3054, %v3098
  %v3100 = vpop.f32.mrf.mxu0
  %v3101 = vadd.f32 %v3054, %v3100
  %3102 = vmatmul.bf16.gmra.mxu0 %v3084
  %v3103 = vpop.f32.mrf.mxu0
  %v3104 = vadd.f32 %v3054, %v3103
  %v3105 = vpop.f32.mrf.mxu0
  %v3106 = vadd.f32 %v3054, %v3105
  %3107 = vmatmul.bf16.gmra.mxu0 %v3087
  %v3108 = vpop.f32.mrf.mxu0
  %v3109 = vadd.f32 %v3054, %v3108
  %v3110 = vpop.f32.mrf.mxu0
  %v3111 = vadd.f32 %v3054, %v3110
  %3112 = vdwg.mxu0
  %3113 = vst.msk [vmem:[%s16] sm:$0xff] %vm68, %v3099
  %3114 = vst.msk [vmem:[%s16 + $0x8] sm:$0xff] %vm68, %v3101
  %3115 = vst.msk [vmem:[%s16 + $0x10] sm:$0xff] %vm68, %v3104
  %3116 = vst.msk [vmem:[%s16 + $0x18] sm:$0xff] %vm68, %v3106
  %3117 = vst.msk [vmem:[%s16 + $0x20] sm:$0xff] %vm68, %v3109
  %3118 = vst.msk [vmem:[%s16 + $0x28] sm:$0xff] %vm68, %v3111
  // Predicated region
  $region66: #{vit_mae_forward.3} parent=0 // pred_check
    _
  $region67: #{vit_mae_forward.3} parent=0 // pred_check_branch
    %3120 = sbr.rel (0) target = $region69
  $region68: #{vit_mae_forward.3} parent=0 // pred_region
    _
  $region69: #{vit_mae_forward.3} parent=0 // pred_fallthru
    _
  // Predicated region
  $region70: #{vit_mae_forward.3} parent=0 // pred_check
    _
  $region71: #{vit_mae_forward.3} parent=0 // pred_check_branch
    %3122 = sbr.rel (0) target = $region73
  $region72: #{vit_mae_forward.3} parent=0 // pred_region
    _
  $region73: #{vit_mae_forward.3} parent=0 // pred_fallthru
    _

</llo_original>
